<compile_context>
chip_gen: v6e
topology: v6e:2x2x1
jax: 0.10.0
libtpu: 0.0.40
codegen_flags: <defaults>
</compile_context>

<pallas_src>
import functools

import jax
import jax.numpy as jnp
from jax.experimental import pallas as pl
from jax.experimental.pallas import tpu as pltpu

DIM = 32          # GIN hidden width (lane axis)
DIM2 = 16         # linear_before width (zero-padded to DIM inside the packed slabs)
BN_EPS = 1e-5     # PyTorch BatchNorm1d default eps
NEG_BIG = -1e30   # finite "-inf" for the pooling mask (avoids NaN via 0*inf)


def _make_kernel(gpt, ng):
    """Kernel for one tile of `gpt` graphs with `ng` node slots each."""

    def kernel(x_ref, adj_ref, pm_ref, w_ref, b_ref, out_ref):
        adj = adj_ref[0]          # (TM, TM) bf16; already includes +I (GIN eps=0 self term)
        W = w_ref[...]            # (8, 32, 32) bf16 packed/zero-padded weights
        B = b_ref[...]            # (16, 32)    f32 packed biases + folded BN scale/shift

        def gin_layer(h_bf16, wi, bi):
            # (A + I) @ h  ->  MLP(Linear, ReLU, Linear)  ->  ReLU  ->  BN(eval) = h*scale+shift
            agg = jnp.dot(adj, h_bf16, preferred_element_type=jnp.float32)
            t = jnp.maximum(
                jnp.dot(agg.astype(jnp.bfloat16), W[wi],
                        preferred_element_type=jnp.float32) + B[bi], 0.0)
            t = jnp.dot(t.astype(jnp.bfloat16), W[wi + 1],
                        preferred_element_type=jnp.float32) + B[bi + 1]
            t = jnp.maximum(t, 0.0)
            return t * B[bi + 2] + B[bi + 3]          # f32

        h = gin_layer(x_ref[0], 0, 0)                 # x tile arrives in bf16
        h = gin_layer(h.astype(jnp.bfloat16), 2, 4)
        h = gin_layer(h.astype(jnp.bfloat16), 4, 8)

        # Global max pool per graph: nodes of graph g occupy rows [g*ng, (g+1)*ng).
        h = h + pm_ref[0].astype(jnp.float32)          # padded node slots -> -1e30
        pooled = jnp.max(h.reshape(gpt, ng, DIM), axis=1)    # (GPT, 32)

        e = jnp.maximum(
            jnp.dot(pooled.astype(jnp.bfloat16), W[6],
                    preferred_element_type=jnp.float32) + B[12], 0.0)
        # TODO(synk): dropout(p=0.1) is identity in eval mode; training-mode dropout and
        # batch-statistics BatchNorm are not implemented.
        o = jnp.dot(e.astype(jnp.bfloat16), W[7],
                    preferred_element_type=jnp.float32) + B[13]
        # Column 0 of the 32-wide slab is the prediction; store stays as-is (review:
        # lane-sparse but negligible at this size), sliced in the wrapper.
        out_ref[0] = jax.nn.sigmoid(o).astype(out_ref.dtype)

    return kernel


def _pack_params(params):
    """Pack 28 parameter tensors into two VMEM-resident slabs.

    W slab (8, 32, 32) bf16: [w1a, w1b, w2a, w2b, w3a, w3b, linear_before.W,
    linear_mean.W], each zero-padded to 32x32 (stored [in, out] so the kernel does x @ W).
    B slab (16, 32) f32: per conv layer [bias_a, bias_b, bn_scale, bn_shift] with
    bn_scale = gamma*rsqrt(var+eps), bn_shift = beta - mean*bn_scale, then
    [linear_before.b, linear_mean.b, 0, 0].
    """
    (w1a, b1a, w1b, b1b, g1, be1, m1, v1,
     w2a, b2a, w2b, b2b, g2, be2, m2, v2,
     w3a, b3a, w3b, b3b, g3, be3, m3, v3,
     wb, bb, wm, bm) = params

    def pad_w(w):
        return jnp.zeros((DIM, DIM), jnp.float32).at[:w.shape[0], :w.shape[1]].set(w)

    def pad_v(v):
        v = jnp.reshape(v, (-1,)).astype(jnp.float32)
        return jnp.zeros((DIM,), jnp.float32).at[:v.shape[0]].set(v)

    def bn_fold(g, be, m, v):
        scale = jnp.reshape(g, (-1,)) * jax.lax.rsqrt(jnp.reshape(v, (-1,)) + BN_EPS)
        shift = jnp.reshape(be, (-1,)) - jnp.reshape(m, (-1,)) * scale
        return pad_v(scale), pad_v(shift)

    W = jnp.stack([pad_w(w1a), pad_w(w1b), pad_w(w2a), pad_w(w2b),
                   pad_w(w3a), pad_w(w3b), pad_w(wb), pad_w(wm)]).astype(jnp.bfloat16)
    s1, t1 = bn_fold(g1, be1, m1, v1)
    s2, t2 = bn_fold(g2, be2, m2, v2)
    s3, t3 = bn_fold(g3, be3, m3, v3)
    zeros = jnp.zeros((DIM,), jnp.float32)
    B = jnp.stack([pad_v(b1a), pad_v(b1b), s1, t1,
                   pad_v(b2a), pad_v(b2b), s2, t2,
                   pad_v(b3a), pad_v(b3b), s3, t3,
                   pad_v(bb), pad_v(bm), zeros, zeros])
    return W, B


def make_params(key, input_dim=6, output_dim=1):
    """Deterministic parameter init matching the module's __init__ shapes.

    Weights are stored as [in, out] (transposed vs. PyTorch) so the kernel does x @ W.
    """
    dim, dim2 = DIM, DIM2
    keys = iter(jax.random.split(key, 16))

    def torch_default_linear(k, fan_in, fan_out):
        # PyTorch nn.Linear default: kaiming_uniform(a=sqrt(5)) => bound 1/sqrt(fan_in)
        kw, kb = jax.random.split(k)
        bound = 1.0 / jnp.sqrt(float(fan_in))
        w = jax.random.uniform(kw, (fan_in, fan_out), jnp.float32, -bound, bound)
        b = jax.random.uniform(kb, (1, fan_out), jnp.float32, -bound, bound)
        return [w, b]

    def kaiming_a1_linear(k, fan_in, fan_out):
        # nn.init.kaiming_uniform_(w, a=1) => bound sqrt(3/fan_in); bias = 0
        bound = jnp.sqrt(3.0 / float(fan_in))
        w = jax.random.uniform(k, (fan_in, fan_out), jnp.float32, -bound, bound)
        b = jnp.zeros((1, fan_out), jnp.float32)
        return [w, b]

    def bn_params(d):
        return [jnp.ones((1, d), jnp.float32), jnp.zeros((1, d), jnp.float32),
                jnp.zeros((1, d), jnp.float32), jnp.ones((1, d), jnp.float32)]

    params = []
    params += torch_default_linear(next(keys), input_dim, dim)   # conv1 lin a
    params += torch_default_linear(next(keys), dim, dim)         # conv1 lin b
    params += bn_params(dim)                                     # bn1
    params += torch_default_linear(next(keys), dim, dim)         # conv2 lin a
    params += torch_default_linear(next(keys), dim, dim)         # conv2 lin b
    params += bn_params(dim)                                     # bn2
    params += torch_default_linear(next(keys), dim, dim)         # conv3 lin a
    params += torch_default_linear(next(keys), dim, dim)         # conv3 lin b
    params += bn_params(dim)                                     # bn3
    params += kaiming_a1_linear(next(keys), dim, dim2)           # linear_before
    params += kaiming_a1_linear(next(keys), dim2, output_dim)    # linear_mean
    return params


@functools.partial(jax.jit,
                   static_argnames=("num_graphs", "nodes_per_graph", "graphs_per_tile"))
def gin_predictor_forward(x, edge_index, batch, params, *, num_graphs,
                          nodes_per_graph, graphs_per_tile=32):
    """x: [N, Fin]; edge_index: [2, E] int (src, dst); batch: [N] sorted graph ids.

    Graphs may have up to `nodes_per_graph` nodes each; nodes of a graph must be
    contiguous (standard PyG batching).  Duplicate edges accumulate (GIN sum-aggregation).
    `graphs_per_tile`: 32 (tm=256) is a good default on v6e/v7x; cap ~32 on v5e.
    Keep cdiv(num_graphs, graphs_per_tile) >= 2 so v7x can use both TensorCores.
    """
    # TODO(synk): unsorted `batch` vectors / graphs larger than `nodes_per_graph`
    # are not supported by this tiled layout.
    n, fin = x.shape
    ng = nodes_per_graph
    gpt = graphs_per_tile
    t = pl.cdiv(num_graphs, gpt)
    g_pad = t * gpt
    tm = gpt * ng

    # Local index of each node within its graph (batch assumed sorted / contiguous).
    counts = jax.ops.segment_sum(jnp.ones((n,), jnp.int32), batch,
                                 num_segments=num_graphs)
    starts = jnp.cumsum(counts) - counts
    local = jnp.arange(n, dtype=batch.dtype) - starts[batch]

    # Flat row of each node inside its tile's (tm, DIM) slab.
    tile_id = batch // gpt
    row_in_tile = (batch % gpt) * ng + local
    flat_row = tile_id * tm + row_in_tile

    # Node features scattered into per-graph slots (bf16), channels zero-padded to DIM.
    x_f = jnp.zeros((n, DIM), jnp.float32).at[:, :fin].set(x.astype(jnp.float32))
    x_tiles = (jnp.zeros((t * tm, DIM), jnp.bfloat16)
               .at[flat_row].set(x_f.astype(jnp.bfloat16))
               .reshape(t, tm, DIM))

    # Lane-dense additive pooling mask: 0 for real nodes, -1e30 for padded slots.
    valid = jnp.zeros((t * tm,), jnp.float32).at[flat_row].set(1.0)
    pmask = jnp.where(valid > 0.0, 0.0, NEG_BIG).astype(jnp.bfloat16)
    pmask = jnp.broadcast_to(pmask[:, None], (t * tm, DIM)).reshape(t, tm, DIM)

    # Block-diagonal (A + I) per tile via direct scatter (no dense einsum intermediate).
    src, dst = edge_index[0], edge_index[1]
    e_tile = batch[dst] // gpt
    e_row = (batch[dst] % gpt) * ng + local[dst]
    e_col = (batch[src] % gpt) * ng + local[src]
    diag = jnp.arange(tm, dtype=jnp.int32)
    adj_tiles = (jnp.zeros((t, tm, tm), jnp.bfloat16)
                 .at[:, diag, diag].set(1.0)          # GIN eps=0 self term (+I)
                 .at[e_tile, e_row, e_col].add(1.0))  # dst <- src messages

    W, B = _pack_params(params)
    kernel = _make_kernel(gpt, ng)

    out = pl.pallas_call(
        kernel,
        out_shape=jax.ShapeDtypeStruct((t, gpt, DIM), jnp.float32),
        grid=(t,),
        in_specs=[
            pl.BlockSpec((1, tm, DIM), lambda i: (i, 0, 0)),   # node features tile (bf16)
            # NOTE: pipeline_mode=pl.Buffered(3) is a candidate sweep here if DMA
            # latency at step boundaries ever shows up; default double-buffering kept.
            pl.BlockSpec((1, tm, tm), lambda i: (i, 0, 0)),    # block-diag (A+I) tile, bf16
            pl.BlockSpec((1, tm, DIM), lambda i: (i, 0, 0)),   # lane-dense pooling mask, bf16
            pl.BlockSpec((8, DIM, DIM), lambda i: (0, 0, 0)),  # packed weights bf16 (resident)
            pl.BlockSpec((16, DIM), lambda i: (0, 0)),         # packed biases/BN f32 (resident)
        ],
        out_specs=pl.BlockSpec((1, gpt, DIM), lambda i: (i, 0, 0)),
        compiler_params=pltpu.CompilerParams(
            dimension_semantics=("parallel",)),
    )(x_tiles, adj_tiles, pmask, W, B)

    # Column 0 is the prediction; drop padded graphs.
    return out[:, :, 0].reshape(g_pad, 1)[:num_graphs]


def gin_predictor_reference(x, edge_index, batch, params, num_graphs):
    """Pure-JAX f32 reference (eval-mode semantics) for validation."""
    (w1a, b1a, w1b, b1b, g1, be1, m1, v1,
     w2a, b2a, w2b, b2b, g2, be2, m2, v2,
     w3a, b3a, w3b, b3b, g3, be3, m3, v3,
     wb, bb, wm, bm) = params
    n = x.shape[0]
    adj = jnp.zeros((n, n), jnp.float32).at[edge_index[1], edge_index[0]].add(1.0)

    def mlp(h, wa, ba, wbb, bbb):
        return jnp.maximum(h @ wa + ba, 0.0) @ wbb + bbb

    def bn(h, g, be, m, v):
        return (h - m) * jax.lax.rsqrt(v + BN_EPS) * g + be

    h = x.astype(jnp.float32)
    h = bn(jnp.maximum(mlp(adj @ h + h, w1a, b1a, w1b, b1b), 0.0), g1, be1, m1, v1)
    h = bn(jnp.maximum(mlp(adj @ h + h, w2a, b2a, w2b, b2b), 0.0), g2, be2, m2, v2)
    h = bn(jnp.maximum(mlp(adj @ h + h, w3a, b3a, w3b, b3b), 0.0), g3, be3, m3, v3)
    pooled = jax.ops.segment_max(h, batch, num_segments=num_graphs)
    e = jnp.maximum(pooled @ wb + bb, 0.0)
    return jax.nn.sigmoid(e @ wm + bm)


if __name__ == "__main__":
    key = jax.random.PRNGKey(0)
    k_x, k_p = jax.random.split(key)

    num_graphs = 80            # -> 3 grid tiles of 32 graphs (last one partially padded)
    nodes_per_graph = 8        # NAS-Bench-like small cells (multiple of 8 -> sublane-aligned pool)
    graphs_per_tile = 32       # 32 graphs x 8 nodes = 256 node rows per MXU tile
    n = num_graphs * nodes_per_graph
    input_dim = 6

    x = jax.random.normal(k_x, (n, input_dim), jnp.float32)

    # Deterministic DAG-ish edges per graph: chain 0->1->...->7 plus skip 0->7.
    edges = []
    for g in range(num_graphs):
        off = g * nodes_per_graph
        for i in range(nodes_per_graph - 1):
            edges.append((off + i, off + i + 1))
        edges.append((off, off + nodes_per_graph - 1))
    edge_index = jnp.array(edges, dtype=jnp.int32).T          # [2, E]
    batch = jnp.repeat(jnp.arange(num_graphs, dtype=jnp.int32), nodes_per_graph)

    params = make_params(k_p, input_dim=input_dim, output_dim=1)

    out = gin_predictor_forward(x, edge_index, batch, params,
                                num_graphs=num_graphs,
                                nodes_per_graph=nodes_per_graph,
                                graphs_per_tile=graphs_per_tile)
    jax.block_until_ready(out)
    assert out.shape == (num_graphs, 1)

    ref = gin_predictor_reference(x, edge_index, batch, params, num_graphs)
    max_err = float(jnp.max(jnp.abs(out - ref)))
    assert jnp.allclose(out, ref, atol=5e-2), f"max abs err vs reference: {max_err}"
    print("KERNEL_OK")
</pallas_src>

<mosaic_0001>
module attributes {stable_mosaic.version = 11 : i64} {
  func.func private @main(%arg0: i32) attributes {dimension_semantics = [#tpu.dimension_semantics<core_parallel>], iteration_bounds = array<i64: 2>, tpu.core_type = #tpu.core_type<sc_scalar_subcore>, window_params = []} {
    return
  }
}

module attributes {stable_mosaic.version = 11 : i64} {
  func.func private @main(%arg0: i32) attributes {dimension_semantics = [#tpu.dimension_semantics<core_parallel>], iteration_bounds = array<i64: 2>, tpu.core_type = #tpu.core_type<sc_scalar_subcore>, window_params = []} {
    return
  }
}

module attributes {stable_mosaic.version = 11 : i64} {
  func.func @kernel(%arg0: i32, %arg1: memref<1x256x32xbf16, #tpu.memory_space<vmem>>, %arg2: memref<1x256x256xbf16, #tpu.memory_space<vmem>>, %arg3: memref<1x256x32xbf16, #tpu.memory_space<vmem>>, %arg4: memref<8x32x32xbf16, #tpu.memory_space<vmem>>, %arg5: memref<16x32xf32, #tpu.memory_space<vmem>>, %arg6: memref<1x32x32xf32, #tpu.memory_space<vmem>>) attributes {dimension_semantics = [#tpu.dimension_semantics<parallel>], iteration_bounds = array<i64: 3>, scalar_prefetch = 0 : i64, scratch_operands = 0 : i64, tpu.core_type = #tpu.core_type<tc>, window_params = [{transform_indices = @transform_0, window_bounds = array<i64: 1, 256, 32>}, {transform_indices = @transform_1, window_bounds = array<i64: 1, 256, 256>}, {transform_indices = @transform_2, window_bounds = array<i64: 1, 256, 32>}, {pipeline_mode = #tpu.pipeline_mode<synchronous>, transform_indices = @transform_3, window_bounds = array<i64: 8, 32, 32>}, {pipeline_mode = #tpu.pipeline_mode<synchronous>, transform_indices = @transform_4, window_bounds = array<i64: 16, 32>}, {transform_indices = @transform_5, window_bounds = array<i64: 1, 32, 32>}]} {
    %c0 = arith.constant 0 : index
    %c0_0 = arith.constant 0 : index
    %c0_1 = arith.constant 0 : index
    %0 = vector.load %arg2[%c0, %c0_0, %c0_1] : memref<1x256x256xbf16, #tpu.memory_space<vmem>>, vector<1x256x256xbf16>
    %1 = vector.shape_cast %0 : vector<1x256x256xbf16> to vector<256x256xbf16>
    %c0_2 = arith.constant 0 : index
    %c0_3 = arith.constant 0 : index
    %c0_4 = arith.constant 0 : index
    %2 = vector.load %arg4[%c0_2, %c0_3, %c0_4] : memref<8x32x32xbf16, #tpu.memory_space<vmem>>, vector<8x32x32xbf16>
    %c0_5 = arith.constant 0 : index
    %c0_6 = arith.constant 0 : index
    %3 = vector.load %arg5[%c0_5, %c0_6] : memref<16x32xf32, #tpu.memory_space<vmem>>, vector<16x32xf32>
    %c0_7 = arith.constant 0 : index
    %c0_8 = arith.constant 0 : index
    %c0_9 = arith.constant 0 : index
    %4 = vector.load %arg1[%c0_7, %c0_8, %c0_9] : memref<1x256x32xbf16, #tpu.memory_space<vmem>>, vector<1x256x32xbf16>
    %5 = vector.shape_cast %4 : vector<1x256x32xbf16> to vector<256x32xbf16>
    %cst = arith.constant dense<0.000000e+00> : vector<256x32xf32>
    %6 = tpu.matmul %1, %5, %cst {dimension_numbers = #tpu.dot_dimension_numbers<[1], [0], [0], [1], [0, 0, 1, 1], [], []>} : vector<256x256xbf16>, vector<256x32xbf16>, vector<256x32xf32> -> vector<256x32xf32>
    %7 = arith.truncf %6 : vector<256x32xf32> to vector<256x32xbf16>
    %8 = vector.extract_strided_slice %2 {offsets = [0, 0, 0], sizes = [1, 32, 32], strides = [1, 1, 1]} : vector<8x32x32xbf16> to vector<1x32x32xbf16>
    %9 = vector.shape_cast %8 : vector<1x32x32xbf16> to vector<32x32xbf16>
    %cst_10 = arith.constant dense<0.000000e+00> : vector<256x32xf32>
    %10 = tpu.matmul %7, %9, %cst_10 {dimension_numbers = #tpu.dot_dimension_numbers<[1], [0], [0], [1], [0, 0, 1, 1], [], []>} : vector<256x32xbf16>, vector<32x32xbf16>, vector<256x32xf32> -> vector<256x32xf32>
    %11 = vector.extract_strided_slice %3 {offsets = [0, 0], sizes = [1, 32], strides = [1, 1]} : vector<16x32xf32> to vector<1x32xf32>
    %12 = vector.shape_cast %11 : vector<1x32xf32> to vector<32xf32>
    %13 = vector.shape_cast %12 : vector<32xf32> to vector<1x32xf32>
    %14 = vector.broadcast %13 : vector<1x32xf32> to vector<256x32xf32>
    %15 = arith.addf %10, %14 : vector<256x32xf32>
    %cst_11 = arith.constant 0.000000e+00 : f32
    %16 = vector.broadcast %cst_11 : f32 to vector<256x32xf32>
    %17 = arith.maximumf %15, %16 : vector<256x32xf32>
    %18 = arith.truncf %17 : vector<256x32xf32> to vector<256x32xbf16>
    %19 = vector.extract_strided_slice %2 {offsets = [1, 0, 0], sizes = [1, 32, 32], strides = [1, 1, 1]} : vector<8x32x32xbf16> to vector<1x32x32xbf16>
    %20 = vector.shape_cast %19 : vector<1x32x32xbf16> to vector<32x32xbf16>
    %cst_12 = arith.constant dense<0.000000e+00> : vector<256x32xf32>
    %21 = tpu.matmul %18, %20, %cst_12 {dimension_numbers = #tpu.dot_dimension_numbers<[1], [0], [0], [1], [0, 0, 1, 1], [], []>} : vector<256x32xbf16>, vector<32x32xbf16>, vector<256x32xf32> -> vector<256x32xf32>
    %22 = vector.extract_strided_slice %3 {offsets = [1, 0], sizes = [1, 32], strides = [1, 1]} : vector<16x32xf32> to vector<1x32xf32>
    %23 = vector.shape_cast %22 : vector<1x32xf32> to vector<32xf32>
    %24 = vector.shape_cast %23 : vector<32xf32> to vector<1x32xf32>
    %25 = vector.broadcast %24 : vector<1x32xf32> to vector<256x32xf32>
    %26 = arith.addf %21, %25 : vector<256x32xf32>
    %cst_13 = arith.constant 0.000000e+00 : f32
    %27 = vector.broadcast %cst_13 : f32 to vector<256x32xf32>
    %28 = arith.maximumf %26, %27 : vector<256x32xf32>
    %29 = vector.extract_strided_slice %3 {offsets = [2, 0], sizes = [1, 32], strides = [1, 1]} : vector<16x32xf32> to vector<1x32xf32>
    %30 = vector.shape_cast %29 : vector<1x32xf32> to vector<32xf32>
    %31 = vector.shape_cast %30 : vector<32xf32> to vector<1x32xf32>
    %32 = vector.broadcast %31 : vector<1x32xf32> to vector<256x32xf32>
    %33 = arith.mulf %28, %32 : vector<256x32xf32>
    %34 = vector.extract_strided_slice %3 {offsets = [3, 0], sizes = [1, 32], strides = [1, 1]} : vector<16x32xf32> to vector<1x32xf32>
    %35 = vector.shape_cast %34 : vector<1x32xf32> to vector<32xf32>
    %36 = vector.shape_cast %35 : vector<32xf32> to vector<1x32xf32>
    %37 = vector.broadcast %36 : vector<1x32xf32> to vector<256x32xf32>
    %38 = arith.addf %33, %37 : vector<256x32xf32>
    %39 = arith.truncf %38 : vector<256x32xf32> to vector<256x32xbf16>
    %cst_14 = arith.constant dense<0.000000e+00> : vector<256x32xf32>
    %40 = tpu.matmul %1, %39, %cst_14 {dimension_numbers = #tpu.dot_dimension_numbers<[1], [0], [0], [1], [0, 0, 1, 1], [], []>} : vector<256x256xbf16>, vector<256x32xbf16>, vector<256x32xf32> -> vector<256x32xf32>
    %41 = arith.truncf %40 : vector<256x32xf32> to vector<256x32xbf16>
    %42 = vector.extract_strided_slice %2 {offsets = [2, 0, 0], sizes = [1, 32, 32], strides = [1, 1, 1]} : vector<8x32x32xbf16> to vector<1x32x32xbf16>
    %43 = vector.shape_cast %42 : vector<1x32x32xbf16> to vector<32x32xbf16>
    %cst_15 = arith.constant dense<0.000000e+00> : vector<256x32xf32>
    %44 = tpu.matmul %41, %43, %cst_15 {dimension_numbers = #tpu.dot_dimension_numbers<[1], [0], [0], [1], [0, 0, 1, 1], [], []>} : vector<256x32xbf16>, vector<32x32xbf16>, vector<256x32xf32> -> vector<256x32xf32>
    %45 = vector.extract_strided_slice %3 {offsets = [4, 0], sizes = [1, 32], strides = [1, 1]} : vector<16x32xf32> to vector<1x32xf32>
    %46 = vector.shape_cast %45 : vector<1x32xf32> to vector<32xf32>
    %47 = vector.shape_cast %46 : vector<32xf32> to vector<1x32xf32>
    %48 = vector.broadcast %47 : vector<1x32xf32> to vector<256x32xf32>
    %49 = arith.addf %44, %48 : vector<256x32xf32>
    %cst_16 = arith.constant 0.000000e+00 : f32
    %50 = vector.broadcast %cst_16 : f32 to vector<256x32xf32>
    %51 = arith.maximumf %49, %50 : vector<256x32xf32>
    %52 = arith.truncf %51 : vector<256x32xf32> to vector<256x32xbf16>
    %53 = vector.extract_strided_slice %2 {offsets = [3, 0, 0], sizes = [1, 32, 32], strides = [1, 1, 1]} : vector<8x32x32xbf16> to vector<1x32x32xbf16>
    %54 = vector.shape_cast %53 : vector<1x32x32xbf16> to vector<32x32xbf16>
    %cst_17 = arith.constant dense<0.000000e+00> : vector<256x32xf32>
    %55 = tpu.matmul %52, %54, %cst_17 {dimension_numbers = #tpu.dot_dimension_numbers<[1], [0], [0], [1], [0, 0, 1, 1], [], []>} : vector<256x32xbf16>, vector<32x32xbf16>, vector<256x32xf32> -> vector<256x32xf32>
    %56 = vector.extract_strided_slice %3 {offsets = [5, 0], sizes = [1, 32], strides = [1, 1]} : vector<16x32xf32> to vector<1x32xf32>
    %57 = vector.shape_cast %56 : vector<1x32xf32> to vector<32xf32>
    %58 = vector.shape_cast %57 : vector<32xf32> to vector<1x32xf32>
    %59 = vector.broadcast %58 : vector<1x32xf32> to vector<256x32xf32>
    %60 = arith.addf %55, %59 : vector<256x32xf32>
    %cst_18 = arith.constant 0.000000e+00 : f32
    %61 = vector.broadcast %cst_18 : f32 to vector<256x32xf32>
    %62 = arith.maximumf %60, %61 : vector<256x32xf32>
    %63 = vector.extract_strided_slice %3 {offsets = [6, 0], sizes = [1, 32], strides = [1, 1]} : vector<16x32xf32> to vector<1x32xf32>
    %64 = vector.shape_cast %63 : vector<1x32xf32> to vector<32xf32>
    %65 = vector.shape_cast %64 : vector<32xf32> to vector<1x32xf32>
    %66 = vector.broadcast %65 : vector<1x32xf32> to vector<256x32xf32>
    %67 = arith.mulf %62, %66 : vector<256x32xf32>
    %68 = vector.extract_strided_slice %3 {offsets = [7, 0], sizes = [1, 32], strides = [1, 1]} : vector<16x32xf32> to vector<1x32xf32>
    %69 = vector.shape_cast %68 : vector<1x32xf32> to vector<32xf32>
    %70 = vector.shape_cast %69 : vector<32xf32> to vector<1x32xf32>
    %71 = vector.broadcast %70 : vector<1x32xf32> to vector<256x32xf32>
    %72 = arith.addf %67, %71 : vector<256x32xf32>
    %73 = arith.truncf %72 : vector<256x32xf32> to vector<256x32xbf16>
    %cst_19 = arith.constant dense<0.000000e+00> : vector<256x32xf32>
    %74 = tpu.matmul %1, %73, %cst_19 {dimension_numbers = #tpu.dot_dimension_numbers<[1], [0], [0], [1], [0, 0, 1, 1], [], []>} : vector<256x256xbf16>, vector<256x32xbf16>, vector<256x32xf32> -> vector<256x32xf32>
    %75 = arith.truncf %74 : vector<256x32xf32> to vector<256x32xbf16>
    %76 = vector.extract_strided_slice %2 {offsets = [4, 0, 0], sizes = [1, 32, 32], strides = [1, 1, 1]} : vector<8x32x32xbf16> to vector<1x32x32xbf16>
    %77 = vector.shape_cast %76 : vector<1x32x32xbf16> to vector<32x32xbf16>
    %cst_20 = arith.constant dense<0.000000e+00> : vector<256x32xf32>
    %78 = tpu.matmul %75, %77, %cst_20 {dimension_numbers = #tpu.dot_dimension_numbers<[1], [0], [0], [1], [0, 0, 1, 1], [], []>} : vector<256x32xbf16>, vector<32x32xbf16>, vector<256x32xf32> -> vector<256x32xf32>
    %79 = vector.extract_strided_slice %3 {offsets = [8, 0], sizes = [1, 32], strides = [1, 1]} : vector<16x32xf32> to vector<1x32xf32>
    %80 = vector.shape_cast %79 : vector<1x32xf32> to vector<32xf32>
    %81 = vector.shape_cast %80 : vector<32xf32> to vector<1x32xf32>
    %82 = vector.broadcast %81 : vector<1x32xf32> to vector<256x32xf32>
    %83 = arith.addf %78, %82 : vector<256x32xf32>
    %cst_21 = arith.constant 0.000000e+00 : f32
    %84 = vector.broadcast %cst_21 : f32 to vector<256x32xf32>
    %85 = arith.maximumf %83, %84 : vector<256x32xf32>
    %86 = arith.truncf %85 : vector<256x32xf32> to vector<256x32xbf16>
    %87 = vector.extract_strided_slice %2 {offsets = [5, 0, 0], sizes = [1, 32, 32], strides = [1, 1, 1]} : vector<8x32x32xbf16> to vector<1x32x32xbf16>
    %88 = vector.shape_cast %87 : vector<1x32x32xbf16> to vector<32x32xbf16>
    %cst_22 = arith.constant dense<0.000000e+00> : vector<256x32xf32>
    %89 = tpu.matmul %86, %88, %cst_22 {dimension_numbers = #tpu.dot_dimension_numbers<[1], [0], [0], [1], [0, 0, 1, 1], [], []>} : vector<256x32xbf16>, vector<32x32xbf16>, vector<256x32xf32> -> vector<256x32xf32>
    %90 = vector.extract_strided_slice %3 {offsets = [9, 0], sizes = [1, 32], strides = [1, 1]} : vector<16x32xf32> to vector<1x32xf32>
    %91 = vector.shape_cast %90 : vector<1x32xf32> to vector<32xf32>
    %92 = vector.shape_cast %91 : vector<32xf32> to vector<1x32xf32>
    %93 = vector.broadcast %92 : vector<1x32xf32> to vector<256x32xf32>
    %94 = arith.addf %89, %93 : vector<256x32xf32>
    %cst_23 = arith.constant 0.000000e+00 : f32
    %95 = vector.broadcast %cst_23 : f32 to vector<256x32xf32>
    %96 = arith.maximumf %94, %95 : vector<256x32xf32>
    %97 = vector.extract_strided_slice %3 {offsets = [10, 0], sizes = [1, 32], strides = [1, 1]} : vector<16x32xf32> to vector<1x32xf32>
    %98 = vector.shape_cast %97 : vector<1x32xf32> to vector<32xf32>
    %99 = vector.shape_cast %98 : vector<32xf32> to vector<1x32xf32>
    %100 = vector.broadcast %99 : vector<1x32xf32> to vector<256x32xf32>
    %101 = arith.mulf %96, %100 : vector<256x32xf32>
    %102 = vector.extract_strided_slice %3 {offsets = [11, 0], sizes = [1, 32], strides = [1, 1]} : vector<16x32xf32> to vector<1x32xf32>
    %103 = vector.shape_cast %102 : vector<1x32xf32> to vector<32xf32>
    %104 = vector.shape_cast %103 : vector<32xf32> to vector<1x32xf32>
    %105 = vector.broadcast %104 : vector<1x32xf32> to vector<256x32xf32>
    %106 = arith.addf %101, %105 : vector<256x32xf32>
    %c0_24 = arith.constant 0 : index
    %c0_25 = arith.constant 0 : index
    %c0_26 = arith.constant 0 : index
    %107 = vector.load %arg3[%c0_24, %c0_25, %c0_26] : memref<1x256x32xbf16, #tpu.memory_space<vmem>>, vector<1x256x32xbf16>
    %108 = vector.shape_cast %107 : vector<1x256x32xbf16> to vector<256x32xbf16>
    %109 = arith.extf %108 : vector<256x32xbf16> to vector<256x32xf32>
    %110 = arith.addf %106, %109 : vector<256x32xf32>
    %111 = vector.shape_cast %110 : vector<256x32xf32> to vector<32x8x32xf32>
    %cst_27 = arith.constant dense<0xFF800000> : vector<32x32xf32>
    %112 = vector.multi_reduction <maximumf>, %111, %cst_27 [1] : vector<32x8x32xf32> to vector<32x32xf32>
    %113 = arith.truncf %112 : vector<32x32xf32> to vector<32x32xbf16>
    %114 = vector.extract_strided_slice %2 {offsets = [6, 0, 0], sizes = [1, 32, 32], strides = [1, 1, 1]} : vector<8x32x32xbf16> to vector<1x32x32xbf16>
    %115 = vector.shape_cast %114 : vector<1x32x32xbf16> to vector<32x32xbf16>
    %cst_28 = arith.constant dense<0.000000e+00> : vector<32x32xf32>
    %116 = tpu.matmul %113, %115, %cst_28 {dimension_numbers = #tpu.dot_dimension_numbers<[1], [0], [0], [1], [0, 0, 1, 1], [], []>} : vector<32x32xbf16>, vector<32x32xbf16>, vector<32x32xf32> -> vector<32x32xf32>
    %117 = vector.extract_strided_slice %3 {offsets = [12, 0], sizes = [1, 32], strides = [1, 1]} : vector<16x32xf32> to vector<1x32xf32>
    %118 = vector.shape_cast %117 : vector<1x32xf32> to vector<32xf32>
    %119 = vector.shape_cast %118 : vector<32xf32> to vector<1x32xf32>
    %120 = vector.broadcast %119 : vector<1x32xf32> to vector<32x32xf32>
    %121 = arith.addf %116, %120 : vector<32x32xf32>
    %cst_29 = arith.constant 0.000000e+00 : f32
    %122 = vector.broadcast %cst_29 : f32 to vector<32x32xf32>
    %123 = arith.maximumf %121, %122 : vector<32x32xf32>
    %124 = arith.truncf %123 : vector<32x32xf32> to vector<32x32xbf16>
    %125 = vector.extract_strided_slice %2 {offsets = [7, 0, 0], sizes = [1, 32, 32], strides = [1, 1, 1]} : vector<8x32x32xbf16> to vector<1x32x32xbf16>
    %126 = vector.shape_cast %125 : vector<1x32x32xbf16> to vector<32x32xbf16>
    %cst_30 = arith.constant dense<0.000000e+00> : vector<32x32xf32>
    %127 = tpu.matmul %124, %126, %cst_30 {dimension_numbers = #tpu.dot_dimension_numbers<[1], [0], [0], [1], [0, 0, 1, 1], [], []>} : vector<32x32xbf16>, vector<32x32xbf16>, vector<32x32xf32> -> vector<32x32xf32>
    %128 = vector.extract_strided_slice %3 {offsets = [13, 0], sizes = [1, 32], strides = [1, 1]} : vector<16x32xf32> to vector<1x32xf32>
    %129 = vector.shape_cast %128 : vector<1x32xf32> to vector<32xf32>
    %130 = vector.shape_cast %129 : vector<32xf32> to vector<1x32xf32>
    %131 = vector.broadcast %130 : vector<1x32xf32> to vector<32x32xf32>
    %132 = arith.addf %127, %131 : vector<32x32xf32>
    %133 = arith.negf %132 : vector<32x32xf32>
    %134 = math.exp %133 : vector<32x32xf32>
    %cst_31 = arith.constant 1.000000e+00 : f32
    %135 = vector.broadcast %cst_31 : f32 to vector<32x32xf32>
    %136 = arith.addf %135, %134 : vector<32x32xf32>
    %137 = arith.divf %135, %136 : vector<32x32xf32>
    %c0_32 = arith.constant 0 : index
    %c0_33 = arith.constant 0 : index
    %c0_34 = arith.constant 0 : index
    %138 = vector.load %arg6[%c0_32, %c0_33, %c0_34] : memref<1x32x32xf32, #tpu.memory_space<vmem>>, vector<1x32x32xf32>
    %139 = vector.shape_cast %138 : vector<1x32x32xf32> to vector<32x32xf32>
    %140 = vector.shape_cast %137 : vector<32x32xf32> to vector<1x32x32xf32>
    tpu.vector_store %arg6[%c0_32, %c0_33, %c0_34], %140 {strides = array<i32>} : memref<1x32x32xf32, #tpu.memory_space<vmem>>, vector<1x32x32xf32>,
    return
  }
  func.func @transform_0(%arg0: i32) -> (i32, i32, i32) {
    %c0_i32 = arith.constant 0 : i32
    %c0_i32_0 = arith.constant 0 : i32
    %c0_i32_1 = arith.constant 0 : i32
    return %arg0, %c0_i32, %c0_i32_0 : i32, i32, i32
  }
  func.func @transform_1(%arg0: i32) -> (i32, i32, i32) {
    %c0_i32 = arith.constant 0 : i32
    %c0_i32_0 = arith.constant 0 : i32
    %c0_i32_1 = arith.constant 0 : i32
    return %arg0, %c0_i32, %c0_i32_0 : i32, i32, i32
  }
  func.func @transform_2(%arg0: i32) -> (i32, i32, i32) {
    %c0_i32 = arith.constant 0 : i32
    %c0_i32_0 = arith.constant 0 : i32
    %c0_i32_1 = arith.constant 0 : i32
    return %arg0, %c0_i32, %c0_i32_0 : i32, i32, i32
  }
  func.func @transform_3(%arg0: i32) -> (i32, i32, i32) {
    %c0_i32 = arith.constant 0 : i32
    %c0_i32_0 = arith.constant 0 : i32
    %c0_i32_1 = arith.constant 0 : i32
    %c0_i32_2 = arith.constant 0 : i32
    return %c0_i32, %c0_i32_0, %c0_i32_1 : i32, i32, i32
  }
  func.func @transform_4(%arg0: i32) -> (i32, i32) {
    %c0_i32 = arith.constant 0 : i32
    %c0_i32_0 = arith.constant 0 : i32
    %c0_i32_1 = arith.constant 0 : i32
    return %c0_i32, %c0_i32_0 : i32, i32
  }
  func.func @transform_5(%arg0: i32) -> (i32, i32, i32) {
    %c0_i32 = arith.constant 0 : i32
    %c0_i32_0 = arith.constant 0 : i32
    %c0_i32_1 = arith.constant 0 : i32
    return %arg0, %c0_i32, %c0_i32_0 : i32, i32, i32
  }
}

</mosaic_0001>

<llo_original>
// kernel: ne.0
$region0: #{ne.0}
  #allocation2 [shape = 's32[1]{0}', space=sflag, size = 0x4, scoped, tag = 'scoped memory for ne.0']
  %s0 = inlined_call_operand.<no memory space> [shape: s32[], index: 0, kind: input, shape index: {}]
  %s1 = inlined_call_operand.hbm [shape: s32[640], index: 1, kind: output, shape index: {}]
  %v2 = vstv %s0
  $region1: #{ne.0} parent=0
    #allocation0 [shape = 'u8[4096]{0}', space=vmem, size = 0x1000, scoped, tag = 'operand span for operand 1']
    #allocation1 [shape = 's32[1]{0}', space=sflag, size = 0x4, scoped, tag = 'scoped memory for ne.0']
    %3 = vsyncpa [#allocation1], 0
    %4 = vst [vmem:[#allocation0] sm:$0xff] %v2
    %s6 = ssub.s32 128, 128
    %7 = vsyncadd [#allocation1], %s6
    %s9 = sshll.u32 [#allocation0], 4
    %s10 = int_to_ptr.vmem [resolvable:$true] %s9
    %12 = dma.vmem_to_hbm [thread:$0]  %s10, 128, %s1, [#allocation1]
    %13 = dma.done [#allocation1], 128
    %14 = vsyncpa [#allocation1], 1

// kernel: sub.9
$region0: #{sub.9}
  #allocation2 [shape = 's32[1]{0}', space=sflag, size = 0x4, scoped, tag = 'scoped memory for sub.9']
  %s0 = inlined_call_operand.vmem [shape: s32[80], index: 0, kind: input, shape index: {}]
  %s1 = inlined_call_operand.hbm [shape: s32[80], index: 1, kind: input, shape index: {}]
  %s2 = inlined_call_operand.vmem [shape: s32[80], index: 2, kind: output, shape index: {}]
  $region1: #{sub.9} parent=0
    #allocation0 [shape = 'u8[512]{0}', space=vmem, size = 0x400, scoped, tag = 'operand span for operand 1']
    #allocation1 [shape = 's32[1]{0}', space=sflag, size = 0x4, scoped, tag = 'scoped memory for sub.9']
    %3 = vsyncpa [#allocation1], 0
    %s5 = ssub.s32 16, 16
    %6 = vsyncadd [#allocation1], %s5
    %s8 = sshll.u32 [#allocation0], 4
    %s9 = int_to_ptr.vmem [resolvable:$true] %s8
    %11 = dma.hbm_to_vmem [thread:$0]  %s1, 16, %s9, [#allocation1]
    %12 = dma.done [#allocation1], 16
    %v13 = vld [vmem:[%s0] sm:$0x1]
    %v14 = vld [vmem:[#allocation0] sm:$0x1]
    %15 = xla_tuple %v13, %v14
    %16 = xla_tuple %15
    %v17 = vsub.s32 %v13, %v14
    %18 = xla_tuple %v17
    %19 = vst [vmem:[%s2] sm:$0x1] %v17
    %20 = vsyncpa [#allocation1], 1

// kernel: squeeze.5
$region0: #{squeeze.5}
  %s0 = inlined_call_operand.vmem [shape: f32[3,32], index: 0, kind: input, shape index: {}]
  %s1 = inlined_call_operand.hbm [shape: f32[96,1], index: 1, kind: output, shape index: {}]
  $region1: #{squeeze.5} parent=0
    #allocation0 [shape = 'u8[512]{0}', space=vmem, size = 0x400, scoped, tag = 'operand span for operand 1']
    #allocation1 [shape = 's32[1]{0}', space=sflag, size = 0x4, scoped, tag = 'scoped memory for squeeze.5']
    #allocation2 [shape = 'u8[4096]{0}', space=vmem, size = 0x1000, scoped, tag = 'scoped mem for output reshape']
    #allocation3 [shape = 'u8[4096]{0}', space=vmem, size = 0x1000, scoped, tag = 'scoped mem for input reshape']
    %2 = vsyncpa [#allocation1], 0
    %s4 = sshll.u32 1, 4
    %s5 = ssub.s32 %s4, 1
    %v6 = vld [vmem:[%s0] sm:%s5]
    %7 = vst [vmem:[#allocation3] sm:%s5] %v6
    %v8 = vld [vmem:[#allocation3] sm:$0x1]
    %vm9 = vcmask 261120
    %10 = vst.msk [vmem:[#allocation2] sm:$0x1] %vm9, %v8
    %s11 = scalar_lea.vmem [#allocation3], 2
    %v12 = vld [vmem:[%s11] sm:$0x1]
    %13 = vrot.lane.b32.xlu0 %v12, 64
    %v14 = vpop.permute.xlu0 %13
    %vm15 = vcmask 785920
    %16 = vst.msk [vmem:[#allocation2] sm:$0x1] %vm15, %v14
    %s17 = scalar_lea.vmem [#allocation3], 1
    %v18 = vld [vmem:[%s17] sm:$0x1]
    %19 = vrot.lane.b32.xlu0 %v18, 32
    %v20 = vpop.permute.xlu0 %19
    %vm21 = vcmask 523520
    %22 = vst.msk [vmem:[#allocation2] sm:$0x1] %vm21, %v20
    %s24 = sshll.u32 1, 1
    %s25 = ssub.s32 %s24, 1
    %v27 = vld [vmem:[#allocation2] sm:%s25]
    %s28 = sshll.u32 1, 1
    %s29 = ssub.s32 %s28, 1
    %30 = vst [vmem:[#allocation0] sm:%s29] %v27
    %s32 = ssub.s32 16, 16
    %33 = vsyncadd [#allocation1], %s32
    %s35 = sshll.u32 [#allocation0], 4
    %s36 = int_to_ptr.vmem [resolvable:$true] %s35
    %38 = dma.vmem_to_hbm [thread:$0]  %s36, 16, %s1, [#allocation1]
    %39 = dma.done [#allocation1], 16
    %40 = vsyncpa [#allocation1], 1

// kernel: gin_predictor_forward.1
$region0: #{gin_predictor_forward.1}
  #allocation0 [shape = 'u32[]', space=smem, size = 0x4, offset = 0x4, fixed_abs, tag = 'smem constant byte address 0x4 - core index']
  #allocation1 [shape = 'u32[144,128]{1,0:T(1,128)}', space=vmem, size = 0x12000, scoped, tag = 'internal scratch']
  %s0 = inlined_call_operand.vmem [shape: bf16[3,256,32], index: 0, kind: input, shape index: {}]
  %s1 = inlined_call_operand.vmem [shape: bf16[3,256,256], index: 1, kind: input, shape index: {}]
  %s2 = inlined_call_operand.vmem [shape: bf16[3,256,32], index: 2, kind: input, shape index: {}]
  %s3 = inlined_call_operand.vmem [shape: bf16[8,32,32], index: 3, kind: input, shape index: {}]
  %s4 = inlined_call_operand.vmem [shape: f32[16,32], index: 4, kind: input, shape index: {}]
  %s5 = inlined_call_operand.vmem [shape: f32[3,32,32], index: 5, kind: output, shape index: {}]
  %s6 = sld [smem:[#allocation0]]
  $region53: #{gin_predictor_forward.1} parent=0
    _
  %s8 = ssub.s32 1, %s6
  %s9 = scalar_select 0, %s8, %s6
  loop: start=0, step=1, limit=5
  $region2: #{gin_predictor_forward.1} parent=0 // loop_pre_header
    _
  $region3: #{gin_predictor_forward.1} parent=0 // loop_header
    %s11 = sphi 0, %s15
    %p12 = scmp.ge.s32.totalorder %s11, 5
    %s21 = sphi 0, %s23
    %s24 = sphi 0, %s21
    %s25 = sphi 0, %s24
    %s41 = sphi 0, %s25
    %s47 = sphi 0, %s49
    %s50 = sphi 0, %s47
    %s51 = sphi 0, %s50
    %s67 = sphi 0, %s51
    %s73 = sphi 0, %s75
    %s76 = sphi 0, %s73
    %s77 = sphi 0, %s76
    %s93 = sphi 0, %s77
    %s97 = sphi 0, %s97
    %s99 = sphi 0, %s97
    %s100 = sphi 0, %s99
    %s114 = sphi 0, %s100
    %s118 = sphi 0, %s118
    %s120 = sphi 0, %s118
    %s121 = sphi 0, %s120
    %s135 = sphi 0, %s121
    %s141 = sphi 0, %s143
    %s144 = sphi 0, %s141
    %s145 = sphi 0, %s144
    %s161 = sphi 0, %s145
  $region4: #{gin_predictor_forward.1} parent=0 // loop_header_branch
    %14 = sbr.rel (%p12) target = $region8
  $region5: #{gin_predictor_forward.1} parent=0 // loop_body
    %s16 = ssub.s32 %s11, 1
    %s17 = ssub.s32 %s11, 2
    %s18 = sadd.s32 %s11, 1
    %s19 = ssub.s32 %s11, %s18
    %p20 = scmp.eq.s32.totalorder %s19, 0
    %s22 = sadd.s32 %s21, 1
    %s23 = scalar_select %p20, %s21, %s22
    %p26 = pneg %p20
    %p27 = scmp.eq.s32.totalorder %s11, 2
    %p28 = por %p26, %p27
    %p29 = scmp.ne.s32.totalorder %s21, %s24
    %p30 = scmp.eq.s32.totalorder %s11, 0
    %p31 = por %p29, %p30
    %p32 = scmp.ne.s32.totalorder %s21, %s24
    %p33 = scmp.eq.s32.totalorder %s16, 2
    %p34 = por %p32, %p33
    %p35 = scmp.ne.s32.totalorder %s24, %s25
    %p36 = scmp.eq.s32.totalorder %s16, 0
    %p37 = por %p35, %p36
    %p38 = scmp.ne.s32.totalorder %s24, %s25
    %p39 = scmp.eq.s32.totalorder %s17, 2
    %p40 = por %p38, %p39
    %p42 = scmp.ne.s32.totalorder %s25, %s41
    %p43 = scmp.eq.s32.totalorder %s17, 0
    %p44 = por %p42, %p43
    %s45 = ssub.s32 %s11, %s18
    %p46 = scmp.eq.s32.totalorder %s45, 0
    %s48 = sadd.s32 %s47, 1
    %s49 = scalar_select %p46, %s47, %s48
    %p52 = pneg %p46
    %p53 = scmp.eq.s32.totalorder %s11, 2
    %p54 = por %p52, %p53
    %p55 = scmp.ne.s32.totalorder %s47, %s50
    %p56 = scmp.eq.s32.totalorder %s11, 0
    %p57 = por %p55, %p56
    %p58 = scmp.ne.s32.totalorder %s47, %s50
    %p59 = scmp.eq.s32.totalorder %s16, 2
    %p60 = por %p58, %p59
    %p61 = scmp.ne.s32.totalorder %s50, %s51
    %p62 = scmp.eq.s32.totalorder %s16, 0
    %p63 = por %p61, %p62
    %p64 = scmp.ne.s32.totalorder %s50, %s51
    %p65 = scmp.eq.s32.totalorder %s17, 2
    %p66 = por %p64, %p65
    %p68 = scmp.ne.s32.totalorder %s51, %s67
    %p69 = scmp.eq.s32.totalorder %s17, 0
    %p70 = por %p68, %p69
    %s71 = ssub.s32 %s11, %s18
    %p72 = scmp.eq.s32.totalorder %s71, 0
    %s74 = sadd.s32 %s73, 1
    %s75 = scalar_select %p72, %s73, %s74
    %p78 = pneg %p72
    %p79 = scmp.eq.s32.totalorder %s11, 2
    %p80 = por %p78, %p79
    %p81 = scmp.ne.s32.totalorder %s73, %s76
    %p82 = scmp.eq.s32.totalorder %s11, 0
    %p83 = por %p81, %p82
    %p84 = scmp.ne.s32.totalorder %s73, %s76
    %p85 = scmp.eq.s32.totalorder %s16, 2
    %p86 = por %p84, %p85
    %p87 = scmp.ne.s32.totalorder %s76, %s77
    %p88 = scmp.eq.s32.totalorder %s16, 0
    %p89 = por %p87, %p88
    %p90 = scmp.ne.s32.totalorder %s76, %s77
    %p91 = scmp.eq.s32.totalorder %s17, 2
    %p92 = por %p90, %p91
    %p94 = scmp.ne.s32.totalorder %s77, %s93
    %p95 = scmp.eq.s32.totalorder %s17, 0
    %p96 = por %p94, %p95
    %s98 = sadd.s32 %s97, 1
    %p101 = scmp.eq.s32.totalorder %s11, 2
    %p102 = scmp.ne.s32.totalorder %s97, %s99
    %p103 = scmp.eq.s32.totalorder %s11, 0
    %p104 = por %p102, %p103
    %p105 = scmp.ne.s32.totalorder %s97, %s99
    %p106 = scmp.eq.s32.totalorder %s16, 2
    %p107 = por %p105, %p106
    %p108 = scmp.ne.s32.totalorder %s99, %s100
    %p109 = scmp.eq.s32.totalorder %s16, 0
    %p110 = por %p108, %p109
    %p111 = scmp.ne.s32.totalorder %s99, %s100
    %p112 = scmp.eq.s32.totalorder %s17, 2
    %p113 = por %p111, %p112
    %p115 = scmp.ne.s32.totalorder %s100, %s114
    %p116 = scmp.eq.s32.totalorder %s17, 0
    %p117 = por %p115, %p116
    %s119 = sadd.s32 %s118, 1
    %p122 = scmp.eq.s32.totalorder %s11, 2
    %p123 = scmp.ne.s32.totalorder %s118, %s120
    %p124 = scmp.eq.s32.totalorder %s11, 0
    %p125 = por %p123, %p124
    %p126 = scmp.ne.s32.totalorder %s118, %s120
    %p127 = scmp.eq.s32.totalorder %s16, 2
    %p128 = por %p126, %p127
    %p129 = scmp.ne.s32.totalorder %s120, %s121
    %p130 = scmp.eq.s32.totalorder %s16, 0
    %p131 = por %p129, %p130
    %p132 = scmp.ne.s32.totalorder %s120, %s121
    %p133 = scmp.eq.s32.totalorder %s17, 2
    %p134 = por %p132, %p133
    %p136 = scmp.ne.s32.totalorder %s121, %s135
    %p137 = scmp.eq.s32.totalorder %s17, 0
    %p138 = por %p136, %p137
    %s139 = ssub.s32 %s11, %s18
    %p140 = scmp.eq.s32.totalorder %s139, 0
    %s142 = sadd.s32 %s141, 1
    %s143 = scalar_select %p140, %s141, %s142
    %p146 = pneg %p140
    %p147 = scmp.eq.s32.totalorder %s11, 2
    %p148 = por %p146, %p147
    %p149 = scmp.ne.s32.totalorder %s141, %s144
    %p150 = scmp.eq.s32.totalorder %s11, 0
    %p151 = por %p149, %p150
    %p152 = scmp.ne.s32.totalorder %s141, %s144
    %p153 = scmp.eq.s32.totalorder %s16, 2
    %p154 = por %p152, %p153
    %p155 = scmp.ne.s32.totalorder %s144, %s145
    %p156 = scmp.eq.s32.totalorder %s16, 0
    %p157 = por %p155, %p156
    %p158 = scmp.ne.s32.totalorder %s144, %s145
    %p159 = scmp.eq.s32.totalorder %s17, 2
    %p160 = por %p158, %p159
    %p162 = scmp.ne.s32.totalorder %s145, %s161
    %p163 = scmp.eq.s32.totalorder %s17, 0
    %p164 = por %p162, %p163
    %p165 = scmp.le.s32.totalorder 1, %s11
    %p166 = scmp.lt.s32.totalorder %s11, 4
    %p167 = pnand %p165, %p166
    %p168 = pneg %p167
    // Predicated region
    $region9: #{gin_predictor_forward.1} parent=5 // pred_check
      _
    $region10: #{gin_predictor_forward.1} parent=5 // pred_check_branch
      %170 = sbr.rel (%p167) target = $region12
    $region11: #{gin_predictor_forward.1} parent=5 // pred_region
      %s171 = ssub.s32 %s11, 1
      // Predicated region
      $region13: #{gin_predictor_forward.1} parent=11 // pred_check
        %p172 = pneg %p110
      $region14: #{gin_predictor_forward.1} parent=11 // pred_check_branch
        %174 = sbr.rel (%p172) target = $region16
      $region15: #{gin_predictor_forward.1} parent=11 // pred_region
        _
      $region16: #{gin_predictor_forward.1} parent=11 // pred_fallthru
        _
      // Predicated region
      $region17: #{gin_predictor_forward.1} parent=11 // pred_check
        %p175 = pneg %p131
      $region18: #{gin_predictor_forward.1} parent=11 // pred_check_branch
        %177 = sbr.rel (%p175) target = $region20
      $region19: #{gin_predictor_forward.1} parent=11 // pred_region
        _
      $region20: #{gin_predictor_forward.1} parent=11 // pred_fallthru
        _
    $region12: #{gin_predictor_forward.1} parent=5 // pred_fallthru
      _
    %p178 = scmp.lt.s32.totalorder %s11, 3
    // Predicated region
    $region21: #{gin_predictor_forward.1} parent=5 // pred_check
      %p179 = pneg %p178
    $region22: #{gin_predictor_forward.1} parent=5 // pred_check_branch
      %181 = sbr.rel (%p179) target = $region24
    $region23: #{gin_predictor_forward.1} parent=5 // pred_region
      // Predicated region
      $region25: #{gin_predictor_forward.1} parent=23 // pred_check
        %p182 = pneg %p31
      $region26: #{gin_predictor_forward.1} parent=23 // pred_check_branch
        %184 = sbr.rel (%p182) target = $region28
      $region27: #{gin_predictor_forward.1} parent=23 // pred_region
        %p185 = scmp.lt.s32.totalorder %s11, 2
        %s186 = scalar_select %p185, %s11, 2
        %s187 = smul.addr %s186, 32
        %s188 = smul.addr %s187, 4
        %s189 = scalar_lea.vmem %s0, %s188
      $region28: #{gin_predictor_forward.1} parent=23 // pred_fallthru
        _
      // Predicated region
      $region29: #{gin_predictor_forward.1} parent=23 // pred_check
        %p190 = pneg %p57
      $region30: #{gin_predictor_forward.1} parent=23 // pred_check_branch
        %192 = sbr.rel (%p190) target = $region32
      $region31: #{gin_predictor_forward.1} parent=23 // pred_region
        %p193 = scmp.lt.s32.totalorder %s11, 2
        %s194 = scalar_select %p193, %s11, 2
        %s195 = smul.addr %s194, 64
        %s196 = smul.addr %s195, 4
        %s197 = scalar_lea.vmem %s1, %s196
      $region32: #{gin_predictor_forward.1} parent=23 // pred_fallthru
        _
      // Predicated region
      $region33: #{gin_predictor_forward.1} parent=23 // pred_check
        %p198 = pneg %p83
      $region34: #{gin_predictor_forward.1} parent=23 // pred_check_branch
        %200 = sbr.rel (%p198) target = $region36
      $region35: #{gin_predictor_forward.1} parent=23 // pred_region
        %p201 = scmp.lt.s32.totalorder %s11, 2
        %s202 = scalar_select %p201, %s11, 2
        %s203 = smul.addr %s202, 32
        %s204 = smul.addr %s203, 4
        %s205 = scalar_lea.vmem %s2, %s204
      $region36: #{gin_predictor_forward.1} parent=23 // pred_fallthru
        _
    $region24: #{gin_predictor_forward.1} parent=5 // pred_fallthru
      _
    %p206 = scmp.le.s32.totalorder 1, %s11
    %p207 = scmp.lt.s32.totalorder %s11, 4
    %p208 = pnand %p206, %p207
    %p209 = pneg %p208
    // Predicated region
    $region37: #{gin_predictor_forward.1} parent=5 // pred_check
      _
    $region38: #{gin_predictor_forward.1} parent=5 // pred_check_branch
      %211 = sbr.rel (%p208) target = $region40
    $region39: #{gin_predictor_forward.1} parent=5 // pred_region
      %s212 = ssub.s32 %s11, 1
      %p213 = scmp.lt.s32.totalorder %s16, 2
      %s214 = scalar_select %p213, %s16, 2
      %s215 = smul.addr %s214, 32
      %s216 = smul.addr %s215, 4
      %s217 = scalar_lea.vmem %s0, %s216
      %p218 = pneg %p37
      %p219 = pneg %p34
      %p220 = scmp.lt.s32.totalorder %s16, 2
      %s221 = scalar_select %p220, %s16, 2
      %s222 = smul.addr %s221, 64
      %s223 = smul.addr %s222, 4
      %s224 = scalar_lea.vmem %s1, %s223
      %p225 = pneg %p63
      %p226 = pneg %p60
      %p227 = scmp.lt.s32.totalorder %s16, 2
      %s228 = scalar_select %p227, %s16, 2
      %s229 = smul.addr %s228, 32
      %s230 = smul.addr %s229, 4
      %s231 = scalar_lea.vmem %s2, %s230
      %p232 = pneg %p89
      %p233 = pneg %p86
      %p234 = pneg %p110
      %p235 = pneg %p107
      %p236 = pneg %p131
      %p237 = pneg %p128
      %p238 = pneg %p157
      %p239 = pneg %p154
      %p240 = scmp.lt.s32.totalorder %s16, 2
      %s241 = scalar_select %p240, %s16, 2
      %s242 = smul.addr %s241, 4
      %s243 = smul.addr %s242, 8
      %s244 = scalar_lea.vmem %s5, %s243
      %p245 = scmp.lt.s32.totalorder %s16, 2
      %s246 = scalar_select %p245, %s16, 2
      %s247 = smul.addr %s246, 32
      %s248 = smul.addr %s247, 4
      %s249 = scalar_lea.vmem %s0, %s248
      %p250 = scmp.lt.s32.totalorder %s16, 2
      %s251 = scalar_select %p250, %s16, 2
      %s252 = smul.addr %s251, 64
      %s253 = smul.addr %s252, 4
      %s254 = scalar_lea.vmem %s1, %s253
      %p255 = scmp.lt.s32.totalorder %s16, 2
      %s256 = scalar_select %p255, %s16, 2
      %s257 = smul.addr %s256, 32
      %s258 = smul.addr %s257, 4
      %s259 = scalar_lea.vmem %s2, %s258
      %p260 = scmp.lt.s32.totalorder %s16, 2
      %s261 = scalar_select %p260, %s16, 2
      %s262 = smul.addr %s261, 4
      %s263 = smul.addr %s262, 8
      %s264 = scalar_lea.vmem %s5, %s263
      %v266 = vld [vmem:[%s254] sm:$0xff]
      %v267 = vld [vmem:[%s254 + $0x8] sm:$0xff]
      %v268 = vld [vmem:[%s254 + $0x10] sm:$0xff]
      %v269 = vld [vmem:[%s254 + $0x18] sm:$0xff]
      %v270 = vld [vmem:[%s254 + $0x20] sm:$0xff]
      %v271 = vld [vmem:[%s254 + $0x28] sm:$0xff]
      %v272 = vld [vmem:[%s254 + $0x30] sm:$0xff]
      %v273 = vld [vmem:[%s254 + $0x38] sm:$0xff]
      %v274 = vld [vmem:[%s254 + $0x40] sm:$0xff]
      %v275 = vld [vmem:[%s254 + $0x48] sm:$0xff]
      %v276 = vld [vmem:[%s254 + $0x50] sm:$0xff]
      %v277 = vld [vmem:[%s254 + $0x58] sm:$0xff]
      %v278 = vld [vmem:[%s254 + $0x60] sm:$0xff]
      %v279 = vld [vmem:[%s254 + $0x68] sm:$0xff]
      %v280 = vld [vmem:[%s254 + $0x70] sm:$0xff]
      %v281 = vld [vmem:[%s254 + $0x78] sm:$0xff]
      %v282 = vld [vmem:[%s254 + $0x80] sm:$0xff]
      %v283 = vld [vmem:[%s254 + $0x88] sm:$0xff]
      %v284 = vld [vmem:[%s254 + $0x90] sm:$0xff]
      %v285 = vld [vmem:[%s254 + $0x98] sm:$0xff]
      %v286 = vld [vmem:[%s254 + $0xa0] sm:$0xff]
      %v287 = vld [vmem:[%s254 + $0xa8] sm:$0xff]
      %v288 = vld [vmem:[%s254 + $0xb0] sm:$0xff]
      %v289 = vld [vmem:[%s254 + $0xb8] sm:$0xff]
      %v290 = vld [vmem:[%s254 + $0xc0] sm:$0xff]
      %v291 = vld [vmem:[%s254 + $0xc8] sm:$0xff]
      %v292 = vld [vmem:[%s254 + $0xd0] sm:$0xff]
      %v293 = vld [vmem:[%s254 + $0xd8] sm:$0xff]
      %v294 = vld [vmem:[%s254 + $0xe0] sm:$0xff]
      %v295 = vld [vmem:[%s254 + $0xe8] sm:$0xff]
      %v296 = vld [vmem:[%s254 + $0xf0] sm:$0xff]
      %v297 = vld [vmem:[%s254 + $0xf8] sm:$0xff]
      %v298 = vld [vmem:[%s3] sm:$0xf]
      %v299 = vld [vmem:[%s3 + $0x4] sm:$0xf]
      %v300 = vld [vmem:[%s3 + $0x8] sm:$0xf]
      %v301 = vld [vmem:[%s3 + $0xc] sm:$0xf]
      %v302 = vld [vmem:[%s3 + $0x10] sm:$0xf]
      %v303 = vld [vmem:[%s3 + $0x14] sm:$0xf]
      %v304 = vld [vmem:[%s3 + $0x18] sm:$0xf]
      %v305 = vld [vmem:[%s3 + $0x1c] sm:$0xf]
      %v306 = vld [vmem:[%s3 + $0x20] sm:$0xf]
      %v307 = vld [vmem:[%s3 + $0x24] sm:$0xf]
      %v308 = vld [vmem:[%s3 + $0x28] sm:$0xf]
      %v309 = vld [vmem:[%s3 + $0x2c] sm:$0xf]
      %v310 = vld [vmem:[%s3 + $0x30] sm:$0xf]
      %v311 = vld [vmem:[%s3 + $0x34] sm:$0xf]
      %v312 = vld [vmem:[%s3 + $0x38] sm:$0xf]
      %v313 = vld [vmem:[%s3 + $0x3c] sm:$0xf]
      %v314 = vld [vmem:[%s3 + $0x40] sm:$0xf]
      %v315 = vld [vmem:[%s3 + $0x44] sm:$0xf]
      %v316 = vld [vmem:[%s3 + $0x48] sm:$0xf]
      %v317 = vld [vmem:[%s3 + $0x4c] sm:$0xf]
      %v318 = vld [vmem:[%s3 + $0x50] sm:$0xf]
      %v319 = vld [vmem:[%s3 + $0x54] sm:$0xf]
      %v320 = vld [vmem:[%s3 + $0x58] sm:$0xf]
      %v321 = vld [vmem:[%s3 + $0x5c] sm:$0xf]
      %v322 = vld [vmem:[%s3 + $0x60] sm:$0xf]
      %v323 = vld [vmem:[%s3 + $0x64] sm:$0xf]
      %v324 = vld [vmem:[%s3 + $0x68] sm:$0xf]
      %v325 = vld [vmem:[%s3 + $0x6c] sm:$0xf]
      %v326 = vld [vmem:[%s3 + $0x70] sm:$0xf]
      %v327 = vld [vmem:[%s3 + $0x74] sm:$0xf]
      %v328 = vld [vmem:[%s3 + $0x78] sm:$0xf]
      %v329 = vld [vmem:[%s3 + $0x7c] sm:$0xf]
      %v330 = vld [vmem:[%s4] sm:$0xff]
      %v331 = vld [vmem:[%s4 + $0x8] sm:$0xff]
      %v332 = vld [vmem:[%s249] sm:$0xf]
      %v333 = vld [vmem:[%s249 + $0x4] sm:$0xf]
      %v334 = vld [vmem:[%s249 + $0x8] sm:$0xf]
      %v335 = vld [vmem:[%s249 + $0xc] sm:$0xf]
      %v336 = vld [vmem:[%s249 + $0x10] sm:$0xf]
      %v337 = vld [vmem:[%s249 + $0x14] sm:$0xf]
      %v338 = vld [vmem:[%s249 + $0x18] sm:$0xf]
      %v339 = vld [vmem:[%s249 + $0x1c] sm:$0xf]
      %v340 = vld [vmem:[%s249 + $0x20] sm:$0xf]
      %v341 = vld [vmem:[%s249 + $0x24] sm:$0xf]
      %v342 = vld [vmem:[%s249 + $0x28] sm:$0xf]
      %v343 = vld [vmem:[%s249 + $0x2c] sm:$0xf]
      %v344 = vld [vmem:[%s249 + $0x30] sm:$0xf]
      %v345 = vld [vmem:[%s249 + $0x34] sm:$0xf]
      %v346 = vld [vmem:[%s249 + $0x38] sm:$0xf]
      %v347 = vld [vmem:[%s249 + $0x3c] sm:$0xf]
      %v348 = vld [vmem:[%s249 + $0x40] sm:$0xf]
      %v349 = vld [vmem:[%s249 + $0x44] sm:$0xf]
      %v350 = vld [vmem:[%s249 + $0x48] sm:$0xf]
      %v351 = vld [vmem:[%s249 + $0x4c] sm:$0xf]
      %v352 = vld [vmem:[%s249 + $0x50] sm:$0xf]
      %v353 = vld [vmem:[%s249 + $0x54] sm:$0xf]
      %v354 = vld [vmem:[%s249 + $0x58] sm:$0xf]
      %v355 = vld [vmem:[%s249 + $0x5c] sm:$0xf]
      %v356 = vld [vmem:[%s249 + $0x60] sm:$0xf]
      %v357 = vld [vmem:[%s249 + $0x64] sm:$0xf]
      %v358 = vld [vmem:[%s249 + $0x68] sm:$0xf]
      %v359 = vld [vmem:[%s249 + $0x6c] sm:$0xf]
      %v360 = vld [vmem:[%s249 + $0x70] sm:$0xf]
      %v361 = vld [vmem:[%s249 + $0x74] sm:$0xf]
      %v362 = vld [vmem:[%s249 + $0x78] sm:$0xf]
      %v363 = vld [vmem:[%s249 + $0x7c] sm:$0xf]
      %v396 = vunpack.c.l.b16 %v266
      %v397 = vunpack.c.h.b16 %v266
      %v398 = vunpack.c.l.b16 %v267
      %v399 = vunpack.c.h.b16 %v267
      %v400 = vunpack.c.l.b16 %v268
      %v401 = vunpack.c.h.b16 %v268
      %v402 = vunpack.c.l.b16 %v269
      %v403 = vunpack.c.h.b16 %v269
      %v404 = vunpack.c.l.b16 %v270
      %v405 = vunpack.c.h.b16 %v270
      %v406 = vunpack.c.l.b16 %v271
      %v407 = vunpack.c.h.b16 %v271
      %v408 = vunpack.c.l.b16 %v272
      %v409 = vunpack.c.h.b16 %v272
      %v410 = vunpack.c.l.b16 %v273
      %v411 = vunpack.c.h.b16 %v273
      %v412 = vunpack.c.l.b16 %v274
      %v413 = vunpack.c.h.b16 %v274
      %v414 = vunpack.c.l.b16 %v275
      %v415 = vunpack.c.h.b16 %v275
      %v416 = vunpack.c.l.b16 %v276
      %v417 = vunpack.c.h.b16 %v276
      %v418 = vunpack.c.l.b16 %v277
      %v419 = vunpack.c.h.b16 %v277
      %v420 = vunpack.c.l.b16 %v278
      %v421 = vunpack.c.h.b16 %v278
      %v422 = vunpack.c.l.b16 %v279
      %v423 = vunpack.c.h.b16 %v279
      %v424 = vunpack.c.l.b16 %v280
      %v425 = vunpack.c.h.b16 %v280
      %v426 = vunpack.c.l.b16 %v281
      %v427 = vunpack.c.h.b16 %v281
      %v428 = vunpack.c.l.b16 %v282
      %v429 = vunpack.c.h.b16 %v282
      %v430 = vunpack.c.l.b16 %v283
      %v431 = vunpack.c.h.b16 %v283
      %v432 = vunpack.c.l.b16 %v284
      %v433 = vunpack.c.h.b16 %v284
      %v434 = vunpack.c.l.b16 %v285
      %v435 = vunpack.c.h.b16 %v285
      %v436 = vunpack.c.l.b16 %v286
      %v437 = vunpack.c.h.b16 %v286
      %v438 = vunpack.c.l.b16 %v287
      %v439 = vunpack.c.h.b16 %v287
      %v440 = vunpack.c.l.b16 %v288
      %v441 = vunpack.c.h.b16 %v288
      %v442 = vunpack.c.l.b16 %v289
      %v443 = vunpack.c.h.b16 %v289
      %v444 = vunpack.c.l.b16 %v290
      %v445 = vunpack.c.h.b16 %v290
      %v446 = vunpack.c.l.b16 %v291
      %v447 = vunpack.c.h.b16 %v291
      %v448 = vunpack.c.l.b16 %v292
      %v449 = vunpack.c.h.b16 %v292
      %v450 = vunpack.c.l.b16 %v293
      %v451 = vunpack.c.h.b16 %v293
      %v452 = vunpack.c.l.b16 %v294
      %v453 = vunpack.c.h.b16 %v294
      %v454 = vunpack.c.l.b16 %v295
      %v455 = vunpack.c.h.b16 %v295
      %v456 = vunpack.c.l.b16 %v296
      %v457 = vunpack.c.h.b16 %v296
      %v458 = vunpack.c.l.b16 %v297
      %v459 = vunpack.c.h.b16 %v297
      %v460 = vpack.c.b16 %v398, %v396
      %v461 = vpack.c.b16 %v399, %v397
      %v462 = vpack.c.b16 %v402, %v400
      %v463 = vpack.c.b16 %v403, %v401
      %v464 = vpack.c.b16 %v406, %v404
      %v465 = vpack.c.b16 %v407, %v405
      %v466 = vpack.c.b16 %v410, %v408
      %v467 = vpack.c.b16 %v411, %v409
      %v468 = vpack.c.b16 %v414, %v412
      %v469 = vpack.c.b16 %v415, %v413
      %v470 = vpack.c.b16 %v418, %v416
      %v471 = vpack.c.b16 %v419, %v417
      %v472 = vpack.c.b16 %v422, %v420
      %v473 = vpack.c.b16 %v423, %v421
      %v474 = vpack.c.b16 %v426, %v424
      %v475 = vpack.c.b16 %v427, %v425
      %v476 = vpack.c.b16 %v430, %v428
      %v477 = vpack.c.b16 %v431, %v429
      %v478 = vpack.c.b16 %v434, %v432
      %v479 = vpack.c.b16 %v435, %v433
      %v480 = vpack.c.b16 %v438, %v436
      %v481 = vpack.c.b16 %v439, %v437
      %v482 = vpack.c.b16 %v442, %v440
      %v483 = vpack.c.b16 %v443, %v441
      %v484 = vpack.c.b16 %v446, %v444
      %v485 = vpack.c.b16 %v447, %v445
      %v486 = vpack.c.b16 %v450, %v448
      %v487 = vpack.c.b16 %v451, %v449
      %v488 = vpack.c.b16 %v454, %v452
      %v489 = vpack.c.b16 %v455, %v453
      %v490 = vpack.c.b16 %v458, %v456
      %v491 = vpack.c.b16 %v459, %v457
      %v556 = vunpack.c.l.b16 %v332
      %v557 = vunpack.c.l.b16 %v333
      %v558 = vunpack.c.l.b16 %v334
      %v559 = vunpack.c.l.b16 %v335
      %v560 = vunpack.c.l.b16 %v336
      %v561 = vunpack.c.l.b16 %v337
      %v562 = vunpack.c.l.b16 %v338
      %v563 = vunpack.c.l.b16 %v339
      %v564 = vunpack.c.l.b16 %v340
      %v565 = vunpack.c.l.b16 %v341
      %v566 = vunpack.c.l.b16 %v342
      %v567 = vunpack.c.l.b16 %v343
      %v568 = vunpack.c.l.b16 %v344
      %v569 = vunpack.c.l.b16 %v345
      %v570 = vunpack.c.l.b16 %v346
      %v571 = vunpack.c.l.b16 %v347
      %v572 = vunpack.c.l.b16 %v348
      %v573 = vunpack.c.l.b16 %v349
      %v574 = vunpack.c.l.b16 %v350
      %v575 = vunpack.c.l.b16 %v351
      %v576 = vunpack.c.l.b16 %v352
      %v577 = vunpack.c.l.b16 %v353
      %v578 = vunpack.c.l.b16 %v354
      %v579 = vunpack.c.l.b16 %v355
      %v580 = vunpack.c.l.b16 %v356
      %v581 = vunpack.c.l.b16 %v357
      %v582 = vunpack.c.l.b16 %v358
      %v583 = vunpack.c.l.b16 %v359
      %v584 = vunpack.c.l.b16 %v360
      %v585 = vunpack.c.l.b16 %v361
      %v586 = vunpack.c.l.b16 %v362
      %v587 = vunpack.c.l.b16 %v363
      %v588 = vpack.c.b16 %v557, %v556
      %v589 = vpack.c.b16 %v559, %v558
      %v590 = vpack.c.b16 %v561, %v560
      %v591 = vpack.c.b16 %v563, %v562
      %v592 = vpack.c.b16 %v565, %v564
      %v593 = vpack.c.b16 %v567, %v566
      %v594 = vpack.c.b16 %v569, %v568
      %v595 = vpack.c.b16 %v571, %v570
      %v596 = vpack.c.b16 %v573, %v572
      %v597 = vpack.c.b16 %v575, %v574
      %v598 = vpack.c.b16 %v577, %v576
      %v599 = vpack.c.b16 %v579, %v578
      %v600 = vpack.c.b16 %v581, %v580
      %v601 = vpack.c.b16 %v583, %v582
      %v602 = vpack.c.b16 %v585, %v584
      %v603 = vpack.c.b16 %v587, %v586
      %620 = vmatprep.subr.bf16.mxu0 0
      %621 = vmatpush1.bf16.msra.mxu0 %v595
      %622 = vmatprep.subr.bf16.mxu0 0
      %623 = vmatpush1.bf16.msra.mxu0 %v594
      %624 = vmatprep.subr.bf16.mxu0 0
      %625 = vmatpush1.bf16.msra.mxu0 %v593
      %626 = vmatprep.subr.bf16.mxu0 0
      %627 = vmatpush1.bf16.msra.mxu0 %v592
      %628 = vmatprep.subr.bf16.mxu0 0
      %629 = vmatpush1.bf16.msra.mxu0 %v591
      %630 = vmatprep.subr.bf16.mxu0 0
      %631 = vmatpush1.bf16.msra.mxu0 %v590
      %632 = vmatprep.subr.bf16.mxu0 0
      %633 = vmatpush1.bf16.msra.mxu0 %v589
      %634 = vmatprep.subr.bf16.mxu0 0
      %635 = vmatpush1.bf16.msra.mxu0 %v588
      %636 = vmatprep.subr.bf16.mxu0 0
      %637 = vmatpush2.bf16.msra.mxu0 %v603
      %638 = vmatprep.subr.bf16.mxu0 0
      %639 = vmatpush2.bf16.msra.mxu0 %v602
      %640 = vmatprep.subr.bf16.mxu0 0
      %641 = vmatpush2.bf16.msra.mxu0 %v601
      %642 = vmatprep.subr.bf16.mxu0 0
      %643 = vmatpush2.bf16.msra.mxu0 %v600
      %644 = vmatprep.subr.bf16.mxu0 0
      %645 = vmatpush2.bf16.msra.mxu0 %v599
      %646 = vmatprep.subr.bf16.mxu0 0
      %647 = vmatpush2.bf16.msra.mxu0 %v598
      %648 = vmatprep.subr.bf16.mxu0 0
      %649 = vmatpush2.bf16.msra.mxu0 %v597
      %650 = vmatprep.subr.bf16.mxu0 0
      %651 = vmatpush2.bf16.msra.mxu0 %v596
      %652 = vmatprep.mubr.bf16.mxu0 %v461
      %653 = vmatmul.mubr.bf16.gmra.mxu0 %v460
      %v654 = vpop.f32.mrf.mxu0
      %v655 = vadd.f32 0.0, %v654
      %v656 = vpop.f32.mrf.mxu0
      %v657 = vpop.f32.mrf.mxu0
      %v658 = vadd.f32 0.0, %v657
      %v659 = vpop.f32.mrf.mxu0
      %660 = vmatprep.mubr.bf16.mxu0 %v463
      %661 = vmatmul.mubr.bf16.gmra.mxu0 %v462
      %v662 = vpop.f32.mrf.mxu0
      %v663 = vadd.f32 0.0, %v662
      %v664 = vpop.f32.mrf.mxu0
      %v665 = vpop.f32.mrf.mxu0
      %v666 = vadd.f32 0.0, %v665
      %v667 = vpop.f32.mrf.mxu0
      %668 = vmatprep.mubr.bf16.mxu0 %v465
      %669 = vmatmul.mubr.bf16.gmra.mxu0 %v464
      %v670 = vpop.f32.mrf.mxu0
      %v671 = vadd.f32 0.0, %v670
      %v672 = vpop.f32.mrf.mxu0
      %v673 = vpop.f32.mrf.mxu0
      %v674 = vadd.f32 0.0, %v673
      %v675 = vpop.f32.mrf.mxu0
      %676 = vmatprep.mubr.bf16.mxu0 %v467
      %677 = vmatmul.mubr.bf16.gmra.mxu0 %v466
      %v678 = vpop.f32.mrf.mxu0
      %v679 = vadd.f32 0.0, %v678
      %v680 = vpop.f32.mrf.mxu0
      %v681 = vpop.f32.mrf.mxu0
      %v682 = vadd.f32 0.0, %v681
      %v683 = vpop.f32.mrf.mxu0
      %684 = vmatprep.mubr.bf16.mxu0 %v469
      %685 = vmatmul.mubr.bf16.gmra.mxu0 %v468
      %v686 = vpop.f32.mrf.mxu0
      %v687 = vadd.f32 0.0, %v686
      %v688 = vpop.f32.mrf.mxu0
      %v689 = vpop.f32.mrf.mxu0
      %v690 = vadd.f32 0.0, %v689
      %v691 = vpop.f32.mrf.mxu0
      %692 = vmatprep.mubr.bf16.mxu0 %v471
      %693 = vmatmul.mubr.bf16.gmra.mxu0 %v470
      %v694 = vpop.f32.mrf.mxu0
      %v695 = vadd.f32 0.0, %v694
      %v696 = vpop.f32.mrf.mxu0
      %v697 = vpop.f32.mrf.mxu0
      %v698 = vadd.f32 0.0, %v697
      %v699 = vpop.f32.mrf.mxu0
      %700 = vmatprep.mubr.bf16.mxu0 %v473
      %701 = vmatmul.mubr.bf16.gmra.mxu0 %v472
      %v702 = vpop.f32.mrf.mxu0
      %v703 = vadd.f32 0.0, %v702
      %v704 = vpop.f32.mrf.mxu0
      %v705 = vpop.f32.mrf.mxu0
      %v706 = vadd.f32 0.0, %v705
      %v707 = vpop.f32.mrf.mxu0
      %708 = vmatprep.mubr.bf16.mxu0 %v475
      %709 = vmatmul.mubr.bf16.gmra.mxu0 %v474
      %v710 = vpop.f32.mrf.mxu0
      %v711 = vadd.f32 0.0, %v710
      %v712 = vpop.f32.mrf.mxu0
      %v713 = vpop.f32.mrf.mxu0
      %v714 = vadd.f32 0.0, %v713
      %v715 = vpop.f32.mrf.mxu0
      %716 = vmatprep.mubr.bf16.mxu0 %v477
      %717 = vmatmul.mubr.bf16.gmra.mxu0 %v476
      %v718 = vpop.f32.mrf.mxu0
      %v719 = vadd.f32 0.0, %v718
      %v720 = vpop.f32.mrf.mxu0
      %v721 = vpop.f32.mrf.mxu0
      %v722 = vadd.f32 0.0, %v721
      %v723 = vpop.f32.mrf.mxu0
      %724 = vmatprep.mubr.bf16.mxu0 %v479
      %725 = vmatmul.mubr.bf16.gmra.mxu0 %v478
      %v726 = vpop.f32.mrf.mxu0
      %v727 = vadd.f32 0.0, %v726
      %v728 = vpop.f32.mrf.mxu0
      %v729 = vpop.f32.mrf.mxu0
      %v730 = vadd.f32 0.0, %v729
      %v731 = vpop.f32.mrf.mxu0
      %732 = vmatprep.mubr.bf16.mxu0 %v481
      %733 = vmatmul.mubr.bf16.gmra.mxu0 %v480
      %v734 = vpop.f32.mrf.mxu0
      %v735 = vadd.f32 0.0, %v734
      %v736 = vpop.f32.mrf.mxu0
      %v737 = vpop.f32.mrf.mxu0
      %v738 = vadd.f32 0.0, %v737
      %v739 = vpop.f32.mrf.mxu0
      %740 = vmatprep.mubr.bf16.mxu0 %v483
      %741 = vmatmul.mubr.bf16.gmra.mxu0 %v482
      %v742 = vpop.f32.mrf.mxu0
      %v743 = vadd.f32 0.0, %v742
      %v744 = vpop.f32.mrf.mxu0
      %v745 = vpop.f32.mrf.mxu0
      %v746 = vadd.f32 0.0, %v745
      %v747 = vpop.f32.mrf.mxu0
      %748 = vmatprep.mubr.bf16.mxu0 %v485
      %749 = vmatmul.mubr.bf16.gmra.mxu0 %v484
      %v750 = vpop.f32.mrf.mxu0
      %v751 = vadd.f32 0.0, %v750
      %v752 = vpop.f32.mrf.mxu0
      %v753 = vpop.f32.mrf.mxu0
      %v754 = vadd.f32 0.0, %v753
      %v755 = vpop.f32.mrf.mxu0
      %756 = vmatprep.mubr.bf16.mxu0 %v487
      %757 = vmatmul.mubr.bf16.gmra.mxu0 %v486
      %v758 = vpop.f32.mrf.mxu0
      %v759 = vadd.f32 0.0, %v758
      %v760 = vpop.f32.mrf.mxu0
      %v761 = vpop.f32.mrf.mxu0
      %v762 = vadd.f32 0.0, %v761
      %v763 = vpop.f32.mrf.mxu0
      %764 = vmatprep.mubr.bf16.mxu0 %v489
      %765 = vmatmul.mubr.bf16.gmra.mxu0 %v488
      %v766 = vpop.f32.mrf.mxu0
      %v767 = vadd.f32 0.0, %v766
      %v768 = vpop.f32.mrf.mxu0
      %v769 = vpop.f32.mrf.mxu0
      %v770 = vadd.f32 0.0, %v769
      %v771 = vpop.f32.mrf.mxu0
      %772 = vmatprep.mubr.bf16.mxu0 %v491
      %773 = vmatmul.mubr.bf16.gmra.mxu0 %v490
      %v774 = vpop.f32.mrf.mxu0
      %v775 = vadd.f32 0.0, %v774
      %v776 = vpop.f32.mrf.mxu0
      %v777 = vpop.f32.mrf.mxu0
      %v778 = vadd.f32 0.0, %v777
      %v779 = vpop.f32.mrf.mxu0
      %780 = vdwg.mxu0
      %v781 = vpack.c.bf16 %v658, %v655
      %v782 = vpack.c.bf16 %v666, %v663
      %v783 = vpack.c.bf16 %v674, %v671
      %v784 = vpack.c.bf16 %v682, %v679
      %v785 = vpack.c.bf16 %v690, %v687
      %v786 = vpack.c.bf16 %v698, %v695
      %v787 = vpack.c.bf16 %v706, %v703
      %v788 = vpack.c.bf16 %v714, %v711
      %v789 = vpack.c.bf16 %v722, %v719
      %v790 = vpack.c.bf16 %v730, %v727
      %v791 = vpack.c.bf16 %v738, %v735
      %v792 = vpack.c.bf16 %v746, %v743
      %v793 = vpack.c.bf16 %v754, %v751
      %v794 = vpack.c.bf16 %v762, %v759
      %v795 = vpack.c.bf16 %v770, %v767
      %v796 = vpack.c.bf16 %v778, %v775
      %v797 = vlaneseq
      %v798 = vshrl.u32 %v797, 7
      %v799 = vsub.s32 0, %v798
      %v800 = vrot.slane %v330, %v799
      %v805 = vunpack.c.l.b16 %v298
      %v806 = vunpack.c.l.b16 %v299
      %v807 = vunpack.c.l.b16 %v300
      %v808 = vunpack.c.l.b16 %v301
      %v809 = vpack.c.b16 %v806, %v805
      %v810 = vpack.c.b16 %v808, %v807
      %vm813 = vcmask 261120
      %v815 = vsel %vm813, %v781, 0
      %v818 = vsel %vm813, %v782, 0
      %v821 = vsel %vm813, %v783, 0
      %v824 = vsel %vm813, %v784, 0
      %v827 = vsel %vm813, %v785, 0
      %v830 = vsel %vm813, %v786, 0
      %v833 = vsel %vm813, %v787, 0
      %v836 = vsel %vm813, %v788, 0
      %v839 = vsel %vm813, %v789, 0
      %v842 = vsel %vm813, %v790, 0
      %v845 = vsel %vm813, %v791, 0
      %v848 = vsel %vm813, %v792, 0
      %v851 = vsel %vm813, %v793, 0
      %v854 = vsel %vm813, %v794, 0
      %v857 = vsel %vm813, %v795, 0
      %v860 = vsel %vm813, %v796, 0
      %862 = vmatprep.subr.bf16.mxu0 0
      %863 = vmatpush1.bf16.msra.mxu0 0
      %864 = vmatprep.subr.bf16.mxu0 0
      %865 = vmatpush1.bf16.msra.mxu0 0
      %866 = vmatprep.subr.bf16.mxu0 0
      %867 = vmatpush1.bf16.msra.mxu0 0
      %868 = vmatprep.subr.bf16.mxu0 0
      %869 = vmatpush1.bf16.msra.mxu0 0
      %870 = vmatprep.subr.bf16.mxu0 0
      %871 = vmatpush1.bf16.msra.mxu0 0
      %872 = vmatprep.subr.bf16.mxu0 0
      %873 = vmatpush1.bf16.msra.mxu0 0
      %874 = vmatprep.subr.bf16.mxu0 0
      %875 = vmatpush1.bf16.msra.mxu0 %v810
      %876 = vmatprep.subr.bf16.mxu0 0
      %877 = vmatpush1.bf16.msra.mxu0 %v809
      %878 = vmatprep.subr.bf16.mxu0 0
      %879 = vmatpush2.bf16.msra.mxu0 0
      %880 = vmatprep.subr.bf16.mxu0 0
      %881 = vmatpush2.bf16.msra.mxu0 0
      %882 = vmatprep.subr.bf16.mxu0 0
      %883 = vmatpush2.bf16.msra.mxu0 0
      %884 = vmatprep.subr.bf16.mxu0 0
      %885 = vmatpush2.bf16.msra.mxu0 0
      %886 = vmatprep.subr.bf16.mxu0 0
      %887 = vmatpush2.bf16.msra.mxu0 0
      %888 = vmatprep.subr.bf16.mxu0 0
      %889 = vmatpush2.bf16.msra.mxu0 0
      %890 = vmatprep.subr.bf16.mxu0 0
      %891 = vmatpush2.bf16.msra.mxu0 0
      %892 = vmatprep.subr.bf16.mxu0 0
      %893 = vmatpush2.bf16.msra.mxu0 0
      %894 = vmatprep.mubr.bf16.mxu0 0
      %895 = vmatmul.mubr.bf16.gmra.mxu0 %v815
      %v896 = vpop.f32.mrf.mxu0
      %v897 = vadd.f32 %v800, %v896
      %v898 = vpop.f32.mrf.mxu0
      %v899 = vpop.f32.mrf.mxu0
      %v900 = vadd.f32 %v800, %v899
      %v901 = vpop.f32.mrf.mxu0
      %902 = vmatprep.mubr.bf16.mxu0 0
      %903 = vmatmul.mubr.bf16.gmra.mxu0 %v818
      %v904 = vpop.f32.mrf.mxu0
      %v905 = vadd.f32 %v800, %v904
      %v906 = vpop.f32.mrf.mxu0
      %v907 = vpop.f32.mrf.mxu0
      %v908 = vadd.f32 %v800, %v907
      %v909 = vpop.f32.mrf.mxu0
      %910 = vmatprep.mubr.bf16.mxu0 0
      %911 = vmatmul.mubr.bf16.gmra.mxu0 %v821
      %v912 = vpop.f32.mrf.mxu0
      %v913 = vadd.f32 %v800, %v912
      %v914 = vpop.f32.mrf.mxu0
      %v915 = vpop.f32.mrf.mxu0
      %v916 = vadd.f32 %v800, %v915
      %v917 = vpop.f32.mrf.mxu0
      %918 = vmatprep.mubr.bf16.mxu0 0
      %919 = vmatmul.mubr.bf16.gmra.mxu0 %v824
      %v920 = vpop.f32.mrf.mxu0
      %v921 = vadd.f32 %v800, %v920
      %v922 = vpop.f32.mrf.mxu0
      %v923 = vpop.f32.mrf.mxu0
      %v924 = vadd.f32 %v800, %v923
      %v925 = vpop.f32.mrf.mxu0
      %926 = vmatprep.mubr.bf16.mxu0 0
      %927 = vmatmul.mubr.bf16.gmra.mxu0 %v827
      %v928 = vpop.f32.mrf.mxu0
      %v929 = vadd.f32 %v800, %v928
      %v930 = vpop.f32.mrf.mxu0
      %v931 = vpop.f32.mrf.mxu0
      %v932 = vadd.f32 %v800, %v931
      %v933 = vpop.f32.mrf.mxu0
      %934 = vmatprep.mubr.bf16.mxu0 0
      %935 = vmatmul.mubr.bf16.gmra.mxu0 %v830
      %v936 = vpop.f32.mrf.mxu0
      %v937 = vadd.f32 %v800, %v936
      %v938 = vpop.f32.mrf.mxu0
      %v939 = vpop.f32.mrf.mxu0
      %v940 = vadd.f32 %v800, %v939
      %v941 = vpop.f32.mrf.mxu0
      %942 = vmatprep.mubr.bf16.mxu0 0
      %943 = vmatmul.mubr.bf16.gmra.mxu0 %v833
      %v944 = vpop.f32.mrf.mxu0
      %v945 = vadd.f32 %v800, %v944
      %v946 = vpop.f32.mrf.mxu0
      %v947 = vpop.f32.mrf.mxu0
      %v948 = vadd.f32 %v800, %v947
      %v949 = vpop.f32.mrf.mxu0
      %950 = vmatprep.mubr.bf16.mxu0 0
      %951 = vmatmul.mubr.bf16.gmra.mxu0 %v836
      %v952 = vpop.f32.mrf.mxu0
      %v953 = vadd.f32 %v800, %v952
      %v954 = vpop.f32.mrf.mxu0
      %v955 = vpop.f32.mrf.mxu0
      %v956 = vadd.f32 %v800, %v955
      %v957 = vpop.f32.mrf.mxu0
      %958 = vmatprep.mubr.bf16.mxu0 0
      %959 = vmatmul.mubr.bf16.gmra.mxu0 %v839
      %v960 = vpop.f32.mrf.mxu0
      %v961 = vadd.f32 %v800, %v960
      %v962 = vpop.f32.mrf.mxu0
      %v963 = vpop.f32.mrf.mxu0
      %v964 = vadd.f32 %v800, %v963
      %v965 = vpop.f32.mrf.mxu0
      %966 = vmatprep.mubr.bf16.mxu0 0
      %967 = vmatmul.mubr.bf16.gmra.mxu0 %v842
      %v968 = vpop.f32.mrf.mxu0
      %v969 = vadd.f32 %v800, %v968
      %v970 = vpop.f32.mrf.mxu0
      %v971 = vpop.f32.mrf.mxu0
      %v972 = vadd.f32 %v800, %v971
      %v973 = vpop.f32.mrf.mxu0
      %974 = vmatprep.mubr.bf16.mxu0 0
      %975 = vmatmul.mubr.bf16.gmra.mxu0 %v845
      %v976 = vpop.f32.mrf.mxu0
      %v977 = vadd.f32 %v800, %v976
      %v978 = vpop.f32.mrf.mxu0
      %v979 = vpop.f32.mrf.mxu0
      %v980 = vadd.f32 %v800, %v979
      %v981 = vpop.f32.mrf.mxu0
      %982 = vmatprep.mubr.bf16.mxu0 0
      %983 = vmatmul.mubr.bf16.gmra.mxu0 %v848
      %v984 = vpop.f32.mrf.mxu0
      %v985 = vadd.f32 %v800, %v984
      %v986 = vpop.f32.mrf.mxu0
      %v987 = vpop.f32.mrf.mxu0
      %v988 = vadd.f32 %v800, %v987
      %v989 = vpop.f32.mrf.mxu0
      %990 = vmatprep.mubr.bf16.mxu0 0
      %991 = vmatmul.mubr.bf16.gmra.mxu0 %v851
      %v992 = vpop.f32.mrf.mxu0
      %v993 = vadd.f32 %v800, %v992
      %v994 = vpop.f32.mrf.mxu0
      %v995 = vpop.f32.mrf.mxu0
      %v996 = vadd.f32 %v800, %v995
      %v997 = vpop.f32.mrf.mxu0
      %998 = vmatprep.mubr.bf16.mxu0 0
      %999 = vmatmul.mubr.bf16.gmra.mxu0 %v854
      %v1000 = vpop.f32.mrf.mxu0
      %v1001 = vadd.f32 %v800, %v1000
      %v1002 = vpop.f32.mrf.mxu0
      %v1003 = vpop.f32.mrf.mxu0
      %v1004 = vadd.f32 %v800, %v1003
      %v1005 = vpop.f32.mrf.mxu0
      %1006 = vmatprep.mubr.bf16.mxu0 0
      %1007 = vmatmul.mubr.bf16.gmra.mxu0 %v857
      %v1008 = vpop.f32.mrf.mxu0
      %v1009 = vadd.f32 %v800, %v1008
      %v1010 = vpop.f32.mrf.mxu0
      %v1011 = vpop.f32.mrf.mxu0
      %v1012 = vadd.f32 %v800, %v1011
      %v1013 = vpop.f32.mrf.mxu0
      %1014 = vmatprep.mubr.bf16.mxu0 0
      %1015 = vmatmul.mubr.bf16.gmra.mxu0 %v860
      %v1016 = vpop.f32.mrf.mxu0
      %v1017 = vadd.f32 %v800, %v1016
      %v1018 = vpop.f32.mrf.mxu0
      %v1019 = vpop.f32.mrf.mxu0
      %v1020 = vadd.f32 %v800, %v1019
      %v1021 = vpop.f32.mrf.mxu0
      %1022 = vdwg.mxu0
      %v1023 = vmax.f32 %v897, 0.0
      %v1024 = vmax.f32 %v900, 0.0
      %v1025 = vmax.f32 %v905, 0.0
      %v1026 = vmax.f32 %v908, 0.0
      %v1027 = vmax.f32 %v913, 0.0
      %v1028 = vmax.f32 %v916, 0.0
      %v1029 = vmax.f32 %v921, 0.0
      %v1030 = vmax.f32 %v924, 0.0
      %v1031 = vmax.f32 %v929, 0.0
      %v1032 = vmax.f32 %v932, 0.0
      %v1033 = vmax.f32 %v937, 0.0
      %v1034 = vmax.f32 %v940, 0.0
      %v1035 = vmax.f32 %v945, 0.0
      %v1036 = vmax.f32 %v948, 0.0
      %v1037 = vmax.f32 %v953, 0.0
      %v1038 = vmax.f32 %v956, 0.0
      %v1039 = vmax.f32 %v961, 0.0
      %v1040 = vmax.f32 %v964, 0.0
      %v1041 = vmax.f32 %v969, 0.0
      %v1042 = vmax.f32 %v972, 0.0
      %v1043 = vmax.f32 %v977, 0.0
      %v1044 = vmax.f32 %v980, 0.0
      %v1045 = vmax.f32 %v985, 0.0
      %v1046 = vmax.f32 %v988, 0.0
      %v1047 = vmax.f32 %v993, 0.0
      %v1048 = vmax.f32 %v996, 0.0
      %v1049 = vmax.f32 %v1001, 0.0
      %v1050 = vmax.f32 %v1004, 0.0
      %v1051 = vmax.f32 %v1009, 0.0
      %v1052 = vmax.f32 %v1012, 0.0
      %v1053 = vmax.f32 %v1017, 0.0
      %v1054 = vmax.f32 %v1020, 0.0
      %v1055 = vpack.c.bf16 %v1024, %v1023
      %v1056 = vpack.c.bf16 %v1026, %v1025
      %v1057 = vpack.c.bf16 %v1028, %v1027
      %v1058 = vpack.c.bf16 %v1030, %v1029
      %v1059 = vpack.c.bf16 %v1032, %v1031
      %v1060 = vpack.c.bf16 %v1034, %v1033
      %v1061 = vpack.c.bf16 %v1036, %v1035
      %v1062 = vpack.c.bf16 %v1038, %v1037
      %v1063 = vpack.c.bf16 %v1040, %v1039
      %v1064 = vpack.c.bf16 %v1042, %v1041
      %v1065 = vpack.c.bf16 %v1044, %v1043
      %v1066 = vpack.c.bf16 %v1046, %v1045
      %v1067 = vpack.c.bf16 %v1048, %v1047
      %v1068 = vpack.c.bf16 %v1050, %v1049
      %v1069 = vpack.c.bf16 %v1052, %v1051
      %v1070 = vpack.c.bf16 %v1054, %v1053
      %v1071 = vlaneseq
      %v1072 = vshrl.u32 %v1071, 7
      %v1073 = vsub.s32 1, %v1072
      %v1074 = vrot.slane %v330, %v1073
      %v1079 = vunpack.c.l.b16 %v302
      %v1080 = vunpack.c.l.b16 %v303
      %v1081 = vunpack.c.l.b16 %v304
      %v1082 = vunpack.c.l.b16 %v305
      %v1083 = vpack.c.b16 %v1080, %v1079
      %v1084 = vpack.c.b16 %v1082, %v1081
      %v1088 = vsel %vm813, %v1055, 0
      %v1091 = vsel %vm813, %v1056, 0
      %v1094 = vsel %vm813, %v1057, 0
      %v1097 = vsel %vm813, %v1058, 0
      %v1100 = vsel %vm813, %v1059, 0
      %v1103 = vsel %vm813, %v1060, 0
      %v1106 = vsel %vm813, %v1061, 0
      %v1109 = vsel %vm813, %v1062, 0
      %v1112 = vsel %vm813, %v1063, 0
      %v1115 = vsel %vm813, %v1064, 0
      %v1118 = vsel %vm813, %v1065, 0
      %v1121 = vsel %vm813, %v1066, 0
      %v1124 = vsel %vm813, %v1067, 0
      %v1127 = vsel %vm813, %v1068, 0
      %v1130 = vsel %vm813, %v1069, 0
      %v1133 = vsel %vm813, %v1070, 0
      %1135 = vmatprep.subr.bf16.mxu0 0
      %1136 = vmatpush1.bf16.msra.mxu0 0
      %1137 = vmatprep.subr.bf16.mxu0 0
      %1138 = vmatpush1.bf16.msra.mxu0 0
      %1139 = vmatprep.subr.bf16.mxu0 0
      %1140 = vmatpush1.bf16.msra.mxu0 0
      %1141 = vmatprep.subr.bf16.mxu0 0
      %1142 = vmatpush1.bf16.msra.mxu0 0
      %1143 = vmatprep.subr.bf16.mxu0 0
      %1144 = vmatpush1.bf16.msra.mxu0 0
      %1145 = vmatprep.subr.bf16.mxu0 0
      %1146 = vmatpush1.bf16.msra.mxu0 0
      %1147 = vmatprep.subr.bf16.mxu0 0
      %1148 = vmatpush1.bf16.msra.mxu0 %v1084
      %1149 = vmatprep.subr.bf16.mxu0 0
      %1150 = vmatpush1.bf16.msra.mxu0 %v1083
      %1151 = vmatprep.subr.bf16.mxu0 0
      %1152 = vmatpush2.bf16.msra.mxu0 0
      %1153 = vmatprep.subr.bf16.mxu0 0
      %1154 = vmatpush2.bf16.msra.mxu0 0
      %1155 = vmatprep.subr.bf16.mxu0 0
      %1156 = vmatpush2.bf16.msra.mxu0 0
      %1157 = vmatprep.subr.bf16.mxu0 0
      %1158 = vmatpush2.bf16.msra.mxu0 0
      %1159 = vmatprep.subr.bf16.mxu0 0
      %1160 = vmatpush2.bf16.msra.mxu0 0
      %1161 = vmatprep.subr.bf16.mxu0 0
      %1162 = vmatpush2.bf16.msra.mxu0 0
      %1163 = vmatprep.subr.bf16.mxu0 0
      %1164 = vmatpush2.bf16.msra.mxu0 0
      %1165 = vmatprep.subr.bf16.mxu0 0
      %1166 = vmatpush2.bf16.msra.mxu0 0
      %1167 = vmatprep.mubr.bf16.mxu0 0
      %1168 = vmatmul.mubr.bf16.gmra.mxu0 %v1088
      %v1169 = vpop.f32.mrf.mxu0
      %v1170 = vadd.f32 %v1074, %v1169
      %v1171 = vpop.f32.mrf.mxu0
      %v1172 = vpop.f32.mrf.mxu0
      %v1173 = vadd.f32 %v1074, %v1172
      %v1174 = vpop.f32.mrf.mxu0
      %1175 = vmatprep.mubr.bf16.mxu0 0
      %1176 = vmatmul.mubr.bf16.gmra.mxu0 %v1091
      %v1177 = vpop.f32.mrf.mxu0
      %v1178 = vadd.f32 %v1074, %v1177
      %v1179 = vpop.f32.mrf.mxu0
      %v1180 = vpop.f32.mrf.mxu0
      %v1181 = vadd.f32 %v1074, %v1180
      %v1182 = vpop.f32.mrf.mxu0
      %1183 = vmatprep.mubr.bf16.mxu0 0
      %1184 = vmatmul.mubr.bf16.gmra.mxu0 %v1094
      %v1185 = vpop.f32.mrf.mxu0
      %v1186 = vadd.f32 %v1074, %v1185
      %v1187 = vpop.f32.mrf.mxu0
      %v1188 = vpop.f32.mrf.mxu0
      %v1189 = vadd.f32 %v1074, %v1188
      %v1190 = vpop.f32.mrf.mxu0
      %1191 = vmatprep.mubr.bf16.mxu0 0
      %1192 = vmatmul.mubr.bf16.gmra.mxu0 %v1097
      %v1193 = vpop.f32.mrf.mxu0
      %v1194 = vadd.f32 %v1074, %v1193
      %v1195 = vpop.f32.mrf.mxu0
      %v1196 = vpop.f32.mrf.mxu0
      %v1197 = vadd.f32 %v1074, %v1196
      %v1198 = vpop.f32.mrf.mxu0
      %1199 = vmatprep.mubr.bf16.mxu0 0
      %1200 = vmatmul.mubr.bf16.gmra.mxu0 %v1100
      %v1201 = vpop.f32.mrf.mxu0
      %v1202 = vadd.f32 %v1074, %v1201
      %v1203 = vpop.f32.mrf.mxu0
      %v1204 = vpop.f32.mrf.mxu0
      %v1205 = vadd.f32 %v1074, %v1204
      %v1206 = vpop.f32.mrf.mxu0
      %1207 = vmatprep.mubr.bf16.mxu0 0
      %1208 = vmatmul.mubr.bf16.gmra.mxu0 %v1103
      %v1209 = vpop.f32.mrf.mxu0
      %v1210 = vadd.f32 %v1074, %v1209
      %v1211 = vpop.f32.mrf.mxu0
      %v1212 = vpop.f32.mrf.mxu0
      %v1213 = vadd.f32 %v1074, %v1212
      %v1214 = vpop.f32.mrf.mxu0
      %1215 = vmatprep.mubr.bf16.mxu0 0
      %1216 = vmatmul.mubr.bf16.gmra.mxu0 %v1106
      %v1217 = vpop.f32.mrf.mxu0
      %v1218 = vadd.f32 %v1074, %v1217
      %v1219 = vpop.f32.mrf.mxu0
      %v1220 = vpop.f32.mrf.mxu0
      %v1221 = vadd.f32 %v1074, %v1220
      %v1222 = vpop.f32.mrf.mxu0
      %1223 = vmatprep.mubr.bf16.mxu0 0
      %1224 = vmatmul.mubr.bf16.gmra.mxu0 %v1109
      %v1225 = vpop.f32.mrf.mxu0
      %v1226 = vadd.f32 %v1074, %v1225
      %v1227 = vpop.f32.mrf.mxu0
      %v1228 = vpop.f32.mrf.mxu0
      %v1229 = vadd.f32 %v1074, %v1228
      %v1230 = vpop.f32.mrf.mxu0
      %1231 = vmatprep.mubr.bf16.mxu0 0
      %1232 = vmatmul.mubr.bf16.gmra.mxu0 %v1112
      %v1233 = vpop.f32.mrf.mxu0
      %v1234 = vadd.f32 %v1074, %v1233
      %v1235 = vpop.f32.mrf.mxu0
      %v1236 = vpop.f32.mrf.mxu0
      %v1237 = vadd.f32 %v1074, %v1236
      %v1238 = vpop.f32.mrf.mxu0
      %1239 = vmatprep.mubr.bf16.mxu0 0
      %1240 = vmatmul.mubr.bf16.gmra.mxu0 %v1115
      %v1241 = vpop.f32.mrf.mxu0
      %v1242 = vadd.f32 %v1074, %v1241
      %v1243 = vpop.f32.mrf.mxu0
      %v1244 = vpop.f32.mrf.mxu0
      %v1245 = vadd.f32 %v1074, %v1244
      %v1246 = vpop.f32.mrf.mxu0
      %1247 = vmatprep.mubr.bf16.mxu0 0
      %1248 = vmatmul.mubr.bf16.gmra.mxu0 %v1118
      %v1249 = vpop.f32.mrf.mxu0
      %v1250 = vadd.f32 %v1074, %v1249
      %v1251 = vpop.f32.mrf.mxu0
      %v1252 = vpop.f32.mrf.mxu0
      %v1253 = vadd.f32 %v1074, %v1252
      %v1254 = vpop.f32.mrf.mxu0
      %1255 = vmatprep.mubr.bf16.mxu0 0
      %1256 = vmatmul.mubr.bf16.gmra.mxu0 %v1121
      %v1257 = vpop.f32.mrf.mxu0
      %v1258 = vadd.f32 %v1074, %v1257
      %v1259 = vpop.f32.mrf.mxu0
      %v1260 = vpop.f32.mrf.mxu0
      %v1261 = vadd.f32 %v1074, %v1260
      %v1262 = vpop.f32.mrf.mxu0
      %1263 = vmatprep.mubr.bf16.mxu0 0
      %1264 = vmatmul.mubr.bf16.gmra.mxu0 %v1124
      %v1265 = vpop.f32.mrf.mxu0
      %v1266 = vadd.f32 %v1074, %v1265
      %v1267 = vpop.f32.mrf.mxu0
      %v1268 = vpop.f32.mrf.mxu0
      %v1269 = vadd.f32 %v1074, %v1268
      %v1270 = vpop.f32.mrf.mxu0
      %1271 = vmatprep.mubr.bf16.mxu0 0
      %1272 = vmatmul.mubr.bf16.gmra.mxu0 %v1127
      %v1273 = vpop.f32.mrf.mxu0
      %v1274 = vadd.f32 %v1074, %v1273
      %v1275 = vpop.f32.mrf.mxu0
      %v1276 = vpop.f32.mrf.mxu0
      %v1277 = vadd.f32 %v1074, %v1276
      %v1278 = vpop.f32.mrf.mxu0
      %1279 = vmatprep.mubr.bf16.mxu0 0
      %1280 = vmatmul.mubr.bf16.gmra.mxu0 %v1130
      %v1281 = vpop.f32.mrf.mxu0
      %v1282 = vadd.f32 %v1074, %v1281
      %v1283 = vpop.f32.mrf.mxu0
      %v1284 = vpop.f32.mrf.mxu0
      %v1285 = vadd.f32 %v1074, %v1284
      %v1286 = vpop.f32.mrf.mxu0
      %1287 = vmatprep.mubr.bf16.mxu0 0
      %1288 = vmatmul.mubr.bf16.gmra.mxu0 %v1133
      %v1289 = vpop.f32.mrf.mxu0
      %v1290 = vadd.f32 %v1074, %v1289
      %v1291 = vpop.f32.mrf.mxu0
      %v1292 = vpop.f32.mrf.mxu0
      %v1293 = vadd.f32 %v1074, %v1292
      %v1294 = vpop.f32.mrf.mxu0
      %1295 = vdwg.mxu0
      %v1296 = vmax.f32 %v1170, 0.0
      %v1297 = vmax.f32 %v1173, 0.0
      %v1298 = vmax.f32 %v1178, 0.0
      %v1299 = vmax.f32 %v1181, 0.0
      %v1300 = vmax.f32 %v1186, 0.0
      %v1301 = vmax.f32 %v1189, 0.0
      %v1302 = vmax.f32 %v1194, 0.0
      %v1303 = vmax.f32 %v1197, 0.0
      %v1304 = vmax.f32 %v1202, 0.0
      %v1305 = vmax.f32 %v1205, 0.0
      %v1306 = vmax.f32 %v1210, 0.0
      %v1307 = vmax.f32 %v1213, 0.0
      %v1308 = vmax.f32 %v1218, 0.0
      %v1309 = vmax.f32 %v1221, 0.0
      %v1310 = vmax.f32 %v1226, 0.0
      %v1311 = vmax.f32 %v1229, 0.0
      %v1312 = vmax.f32 %v1234, 0.0
      %v1313 = vmax.f32 %v1237, 0.0
      %v1314 = vmax.f32 %v1242, 0.0
      %v1315 = vmax.f32 %v1245, 0.0
      %v1316 = vmax.f32 %v1250, 0.0
      %v1317 = vmax.f32 %v1253, 0.0
      %v1318 = vmax.f32 %v1258, 0.0
      %v1319 = vmax.f32 %v1261, 0.0
      %v1320 = vmax.f32 %v1266, 0.0
      %v1321 = vmax.f32 %v1269, 0.0
      %v1322 = vmax.f32 %v1274, 0.0
      %v1323 = vmax.f32 %v1277, 0.0
      %v1324 = vmax.f32 %v1282, 0.0
      %v1325 = vmax.f32 %v1285, 0.0
      %v1326 = vmax.f32 %v1290, 0.0
      %v1327 = vmax.f32 %v1293, 0.0
      %v1328 = vlaneseq
      %v1329 = vshrl.u32 %v1328, 7
      %v1330 = vsub.s32 2, %v1329
      %v1331 = vrot.slane %v330, %v1330
      %v1332 = vmul.f32 %v1296, %v1331
      %v1333 = vmul.f32 %v1297, %v1331
      %v1334 = vmul.f32 %v1298, %v1331
      %v1335 = vmul.f32 %v1299, %v1331
      %v1336 = vmul.f32 %v1300, %v1331
      %v1337 = vmul.f32 %v1301, %v1331
      %v1338 = vmul.f32 %v1302, %v1331
      %v1339 = vmul.f32 %v1303, %v1331
      %v1340 = vmul.f32 %v1304, %v1331
      %v1341 = vmul.f32 %v1305, %v1331
      %v1342 = vmul.f32 %v1306, %v1331
      %v1343 = vmul.f32 %v1307, %v1331
      %v1344 = vmul.f32 %v1308, %v1331
      %v1345 = vmul.f32 %v1309, %v1331
      %v1346 = vmul.f32 %v1310, %v1331
      %v1347 = vmul.f32 %v1311, %v1331
      %v1348 = vmul.f32 %v1312, %v1331
      %v1349 = vmul.f32 %v1313, %v1331
      %v1350 = vmul.f32 %v1314, %v1331
      %v1351 = vmul.f32 %v1315, %v1331
      %v1352 = vmul.f32 %v1316, %v1331
      %v1353 = vmul.f32 %v1317, %v1331
      %v1354 = vmul.f32 %v1318, %v1331
      %v1355 = vmul.f32 %v1319, %v1331
      %v1356 = vmul.f32 %v1320, %v1331
      %v1357 = vmul.f32 %v1321, %v1331
      %v1358 = vmul.f32 %v1322, %v1331
      %v1359 = vmul.f32 %v1323, %v1331
      %v1360 = vmul.f32 %v1324, %v1331
      %v1361 = vmul.f32 %v1325, %v1331
      %v1362 = vmul.f32 %v1326, %v1331
      %v1363 = vmul.f32 %v1327, %v1331
      %v1364 = vlaneseq
      %v1365 = vshrl.u32 %v1364, 7
      %v1366 = vsub.s32 3, %v1365
      %v1367 = vrot.slane %v330, %v1366
      %v1368 = vadd.f32 %v1332, %v1367
      %v1369 = vadd.f32 %v1333, %v1367
      %v1370 = vadd.f32 %v1334, %v1367
      %v1371 = vadd.f32 %v1335, %v1367
      %v1372 = vadd.f32 %v1336, %v1367
      %v1373 = vadd.f32 %v1337, %v1367
      %v1374 = vadd.f32 %v1338, %v1367
      %v1375 = vadd.f32 %v1339, %v1367
      %v1376 = vadd.f32 %v1340, %v1367
      %v1377 = vadd.f32 %v1341, %v1367
      %v1378 = vadd.f32 %v1342, %v1367
      %v1379 = vadd.f32 %v1343, %v1367
      %v1380 = vadd.f32 %v1344, %v1367
      %v1381 = vadd.f32 %v1345, %v1367
      %v1382 = vadd.f32 %v1346, %v1367
      %v1383 = vadd.f32 %v1347, %v1367
      %v1384 = vadd.f32 %v1348, %v1367
      %v1385 = vadd.f32 %v1349, %v1367
      %v1386 = vadd.f32 %v1350, %v1367
      %v1387 = vadd.f32 %v1351, %v1367
      %v1388 = vadd.f32 %v1352, %v1367
      %v1389 = vadd.f32 %v1353, %v1367
      %v1390 = vadd.f32 %v1354, %v1367
      %v1391 = vadd.f32 %v1355, %v1367
      %v1392 = vadd.f32 %v1356, %v1367
      %v1393 = vadd.f32 %v1357, %v1367
      %v1394 = vadd.f32 %v1358, %v1367
      %v1395 = vadd.f32 %v1359, %v1367
      %v1396 = vadd.f32 %v1360, %v1367
      %v1397 = vadd.f32 %v1361, %v1367
      %v1398 = vadd.f32 %v1362, %v1367
      %v1399 = vadd.f32 %v1363, %v1367
      %v1400 = vpack.c.bf16 %v1369, %v1368
      %v1401 = vpack.c.bf16 %v1371, %v1370
      %v1402 = vpack.c.bf16 %v1373, %v1372
      %v1403 = vpack.c.bf16 %v1375, %v1374
      %v1404 = vpack.c.bf16 %v1377, %v1376
      %v1405 = vpack.c.bf16 %v1379, %v1378
      %v1406 = vpack.c.bf16 %v1381, %v1380
      %v1407 = vpack.c.bf16 %v1383, %v1382
      %v1408 = vpack.c.bf16 %v1385, %v1384
      %v1409 = vpack.c.bf16 %v1387, %v1386
      %v1410 = vpack.c.bf16 %v1389, %v1388
      %v1411 = vpack.c.bf16 %v1391, %v1390
      %v1412 = vpack.c.bf16 %v1393, %v1392
      %v1413 = vpack.c.bf16 %v1395, %v1394
      %v1414 = vpack.c.bf16 %v1397, %v1396
      %v1415 = vpack.c.bf16 %v1399, %v1398
      %1416 = vmatprep.subr.bf16.mxu0 0
      %1417 = vmatpush1.bf16.msra.mxu0 %v1407
      %1418 = vmatprep.subr.bf16.mxu0 0
      %1419 = vmatpush1.bf16.msra.mxu0 %v1406
      %1420 = vmatprep.subr.bf16.mxu0 0
      %1421 = vmatpush1.bf16.msra.mxu0 %v1405
      %1422 = vmatprep.subr.bf16.mxu0 0
      %1423 = vmatpush1.bf16.msra.mxu0 %v1404
      %1424 = vmatprep.subr.bf16.mxu0 0
      %1425 = vmatpush1.bf16.msra.mxu0 %v1403
      %1426 = vmatprep.subr.bf16.mxu0 0
      %1427 = vmatpush1.bf16.msra.mxu0 %v1402
      %1428 = vmatprep.subr.bf16.mxu0 0
      %1429 = vmatpush1.bf16.msra.mxu0 %v1401
      %1430 = vmatprep.subr.bf16.mxu0 0
      %1431 = vmatpush1.bf16.msra.mxu0 %v1400
      %1432 = vmatprep.subr.bf16.mxu0 0
      %1433 = vmatpush2.bf16.msra.mxu0 %v1415
      %1434 = vmatprep.subr.bf16.mxu0 0
      %1435 = vmatpush2.bf16.msra.mxu0 %v1414
      %1436 = vmatprep.subr.bf16.mxu0 0
      %1437 = vmatpush2.bf16.msra.mxu0 %v1413
      %1438 = vmatprep.subr.bf16.mxu0 0
      %1439 = vmatpush2.bf16.msra.mxu0 %v1412
      %1440 = vmatprep.subr.bf16.mxu0 0
      %1441 = vmatpush2.bf16.msra.mxu0 %v1411
      %1442 = vmatprep.subr.bf16.mxu0 0
      %1443 = vmatpush2.bf16.msra.mxu0 %v1410
      %1444 = vmatprep.subr.bf16.mxu0 0
      %1445 = vmatpush2.bf16.msra.mxu0 %v1409
      %1446 = vmatprep.subr.bf16.mxu0 0
      %1447 = vmatpush2.bf16.msra.mxu0 %v1408
      %1448 = vmatprep.mubr.bf16.mxu0 %v461
      %1449 = vmatmul.mubr.bf16.gmra.mxu0 %v460
      %v1450 = vpop.f32.mrf.mxu0
      %v1451 = vadd.f32 0.0, %v1450
      %v1452 = vpop.f32.mrf.mxu0
      %v1453 = vpop.f32.mrf.mxu0
      %v1454 = vadd.f32 0.0, %v1453
      %v1455 = vpop.f32.mrf.mxu0
      %1456 = vmatprep.mubr.bf16.mxu0 %v463
      %1457 = vmatmul.mubr.bf16.gmra.mxu0 %v462
      %v1458 = vpop.f32.mrf.mxu0
      %v1459 = vadd.f32 0.0, %v1458
      %v1460 = vpop.f32.mrf.mxu0
      %v1461 = vpop.f32.mrf.mxu0
      %v1462 = vadd.f32 0.0, %v1461
      %v1463 = vpop.f32.mrf.mxu0
      %1464 = vmatprep.mubr.bf16.mxu0 %v465
      %1465 = vmatmul.mubr.bf16.gmra.mxu0 %v464
      %v1466 = vpop.f32.mrf.mxu0
      %v1467 = vadd.f32 0.0, %v1466
      %v1468 = vpop.f32.mrf.mxu0
      %v1469 = vpop.f32.mrf.mxu0
      %v1470 = vadd.f32 0.0, %v1469
      %v1471 = vpop.f32.mrf.mxu0
      %1472 = vmatprep.mubr.bf16.mxu0 %v467
      %1473 = vmatmul.mubr.bf16.gmra.mxu0 %v466
      %v1474 = vpop.f32.mrf.mxu0
      %v1475 = vadd.f32 0.0, %v1474
      %v1476 = vpop.f32.mrf.mxu0
      %v1477 = vpop.f32.mrf.mxu0
      %v1478 = vadd.f32 0.0, %v1477
      %v1479 = vpop.f32.mrf.mxu0
      %1480 = vmatprep.mubr.bf16.mxu0 %v469
      %1481 = vmatmul.mubr.bf16.gmra.mxu0 %v468
      %v1482 = vpop.f32.mrf.mxu0
      %v1483 = vadd.f32 0.0, %v1482
      %v1484 = vpop.f32.mrf.mxu0
      %v1485 = vpop.f32.mrf.mxu0
      %v1486 = vadd.f32 0.0, %v1485
      %v1487 = vpop.f32.mrf.mxu0
      %1488 = vmatprep.mubr.bf16.mxu0 %v471
      %1489 = vmatmul.mubr.bf16.gmra.mxu0 %v470
      %v1490 = vpop.f32.mrf.mxu0
      %v1491 = vadd.f32 0.0, %v1490
      %v1492 = vpop.f32.mrf.mxu0
      %v1493 = vpop.f32.mrf.mxu0
      %v1494 = vadd.f32 0.0, %v1493
      %v1495 = vpop.f32.mrf.mxu0
      %1496 = vmatprep.mubr.bf16.mxu0 %v473
      %1497 = vmatmul.mubr.bf16.gmra.mxu0 %v472
      %v1498 = vpop.f32.mrf.mxu0
      %v1499 = vadd.f32 0.0, %v1498
      %v1500 = vpop.f32.mrf.mxu0
      %v1501 = vpop.f32.mrf.mxu0
      %v1502 = vadd.f32 0.0, %v1501
      %v1503 = vpop.f32.mrf.mxu0
      %1504 = vmatprep.mubr.bf16.mxu0 %v475
      %1505 = vmatmul.mubr.bf16.gmra.mxu0 %v474
      %v1506 = vpop.f32.mrf.mxu0
      %v1507 = vadd.f32 0.0, %v1506
      %v1508 = vpop.f32.mrf.mxu0
      %v1509 = vpop.f32.mrf.mxu0
      %v1510 = vadd.f32 0.0, %v1509
      %v1511 = vpop.f32.mrf.mxu0
      %1512 = vmatprep.mubr.bf16.mxu0 %v477
      %1513 = vmatmul.mubr.bf16.gmra.mxu0 %v476
      %v1514 = vpop.f32.mrf.mxu0
      %v1515 = vadd.f32 0.0, %v1514
      %v1516 = vpop.f32.mrf.mxu0
      %v1517 = vpop.f32.mrf.mxu0
      %v1518 = vadd.f32 0.0, %v1517
      %v1519 = vpop.f32.mrf.mxu0
      %1520 = vmatprep.mubr.bf16.mxu0 %v479
      %1521 = vmatmul.mubr.bf16.gmra.mxu0 %v478
      %v1522 = vpop.f32.mrf.mxu0
      %v1523 = vadd.f32 0.0, %v1522
      %v1524 = vpop.f32.mrf.mxu0
      %v1525 = vpop.f32.mrf.mxu0
      %v1526 = vadd.f32 0.0, %v1525
      %v1527 = vpop.f32.mrf.mxu0
      %1528 = vmatprep.mubr.bf16.mxu0 %v481
      %1529 = vmatmul.mubr.bf16.gmra.mxu0 %v480
      %v1530 = vpop.f32.mrf.mxu0
      %v1531 = vadd.f32 0.0, %v1530
      %v1532 = vpop.f32.mrf.mxu0
      %v1533 = vpop.f32.mrf.mxu0
      %v1534 = vadd.f32 0.0, %v1533
      %v1535 = vpop.f32.mrf.mxu0
      %1536 = vmatprep.mubr.bf16.mxu0 %v483
      %1537 = vmatmul.mubr.bf16.gmra.mxu0 %v482
      %v1538 = vpop.f32.mrf.mxu0
      %v1539 = vadd.f32 0.0, %v1538
      %v1540 = vpop.f32.mrf.mxu0
      %v1541 = vpop.f32.mrf.mxu0
      %v1542 = vadd.f32 0.0, %v1541
      %v1543 = vpop.f32.mrf.mxu0
      %1544 = vmatprep.mubr.bf16.mxu0 %v485
      %1545 = vmatmul.mubr.bf16.gmra.mxu0 %v484
      %v1546 = vpop.f32.mrf.mxu0
      %v1547 = vadd.f32 0.0, %v1546
      %v1548 = vpop.f32.mrf.mxu0
      %v1549 = vpop.f32.mrf.mxu0
      %v1550 = vadd.f32 0.0, %v1549
      %v1551 = vpop.f32.mrf.mxu0
      %1552 = vmatprep.mubr.bf16.mxu0 %v487
      %1553 = vmatmul.mubr.bf16.gmra.mxu0 %v486
      %v1554 = vpop.f32.mrf.mxu0
      %v1555 = vadd.f32 0.0, %v1554
      %v1556 = vpop.f32.mrf.mxu0
      %v1557 = vpop.f32.mrf.mxu0
      %v1558 = vadd.f32 0.0, %v1557
      %v1559 = vpop.f32.mrf.mxu0
      %1560 = vmatprep.mubr.bf16.mxu0 %v489
      %1561 = vmatmul.mubr.bf16.gmra.mxu0 %v488
      %v1562 = vpop.f32.mrf.mxu0
      %v1563 = vadd.f32 0.0, %v1562
      %v1564 = vpop.f32.mrf.mxu0
      %v1565 = vpop.f32.mrf.mxu0
      %v1566 = vadd.f32 0.0, %v1565
      %v1567 = vpop.f32.mrf.mxu0
      %1568 = vmatprep.mubr.bf16.mxu0 %v491
      %1569 = vmatmul.mubr.bf16.gmra.mxu0 %v490
      %v1570 = vpop.f32.mrf.mxu0
      %v1571 = vadd.f32 0.0, %v1570
      %v1572 = vpop.f32.mrf.mxu0
      %v1573 = vpop.f32.mrf.mxu0
      %v1574 = vadd.f32 0.0, %v1573
      %v1575 = vpop.f32.mrf.mxu0
      %1576 = vdwg.mxu0
      %v1577 = vpack.c.bf16 %v1454, %v1451
      %v1578 = vpack.c.bf16 %v1462, %v1459
      %v1579 = vpack.c.bf16 %v1470, %v1467
      %v1580 = vpack.c.bf16 %v1478, %v1475
      %v1581 = vpack.c.bf16 %v1486, %v1483
      %v1582 = vpack.c.bf16 %v1494, %v1491
      %v1583 = vpack.c.bf16 %v1502, %v1499
      %v1584 = vpack.c.bf16 %v1510, %v1507
      %v1585 = vpack.c.bf16 %v1518, %v1515
      %v1586 = vpack.c.bf16 %v1526, %v1523
      %v1587 = vpack.c.bf16 %v1534, %v1531
      %v1588 = vpack.c.bf16 %v1542, %v1539
      %v1589 = vpack.c.bf16 %v1550, %v1547
      %v1590 = vpack.c.bf16 %v1558, %v1555
      %v1591 = vpack.c.bf16 %v1566, %v1563
      %v1592 = vpack.c.bf16 %v1574, %v1571
      %v1593 = vlaneseq
      %v1594 = vshrl.u32 %v1593, 7
      %v1595 = vsub.s32 4, %v1594
      %v1596 = vrot.slane %v330, %v1595
      %v1601 = vunpack.c.l.b16 %v306
      %v1602 = vunpack.c.l.b16 %v307
      %v1603 = vunpack.c.l.b16 %v308
      %v1604 = vunpack.c.l.b16 %v309
      %v1605 = vpack.c.b16 %v1602, %v1601
      %v1606 = vpack.c.b16 %v1604, %v1603
      %v1610 = vsel %vm813, %v1577, 0
      %v1613 = vsel %vm813, %v1578, 0
      %v1616 = vsel %vm813, %v1579, 0
      %v1619 = vsel %vm813, %v1580, 0
      %v1622 = vsel %vm813, %v1581, 0
      %v1625 = vsel %vm813, %v1582, 0
      %v1628 = vsel %vm813, %v1583, 0
      %v1631 = vsel %vm813, %v1584, 0
      %v1634 = vsel %vm813, %v1585, 0
      %v1637 = vsel %vm813, %v1586, 0
      %v1640 = vsel %vm813, %v1587, 0
      %v1643 = vsel %vm813, %v1588, 0
      %v1646 = vsel %vm813, %v1589, 0
      %v1649 = vsel %vm813, %v1590, 0
      %v1652 = vsel %vm813, %v1591, 0
      %v1655 = vsel %vm813, %v1592, 0
      %1657 = vmatprep.subr.bf16.mxu0 0
      %1658 = vmatpush1.bf16.msra.mxu0 0
      %1659 = vmatprep.subr.bf16.mxu0 0
      %1660 = vmatpush1.bf16.msra.mxu0 0
      %1661 = vmatprep.subr.bf16.mxu0 0
      %1662 = vmatpush1.bf16.msra.mxu0 0
      %1663 = vmatprep.subr.bf16.mxu0 0
      %1664 = vmatpush1.bf16.msra.mxu0 0
      %1665 = vmatprep.subr.bf16.mxu0 0
      %1666 = vmatpush1.bf16.msra.mxu0 0
      %1667 = vmatprep.subr.bf16.mxu0 0
      %1668 = vmatpush1.bf16.msra.mxu0 0
      %1669 = vmatprep.subr.bf16.mxu0 0
      %1670 = vmatpush1.bf16.msra.mxu0 %v1606
      %1671 = vmatprep.subr.bf16.mxu0 0
      %1672 = vmatpush1.bf16.msra.mxu0 %v1605
      %1673 = vmatprep.subr.bf16.mxu0 0
      %1674 = vmatpush2.bf16.msra.mxu0 0
      %1675 = vmatprep.subr.bf16.mxu0 0
      %1676 = vmatpush2.bf16.msra.mxu0 0
      %1677 = vmatprep.subr.bf16.mxu0 0
      %1678 = vmatpush2.bf16.msra.mxu0 0
      %1679 = vmatprep.subr.bf16.mxu0 0
      %1680 = vmatpush2.bf16.msra.mxu0 0
      %1681 = vmatprep.subr.bf16.mxu0 0
      %1682 = vmatpush2.bf16.msra.mxu0 0
      %1683 = vmatprep.subr.bf16.mxu0 0
      %1684 = vmatpush2.bf16.msra.mxu0 0
      %1685 = vmatprep.subr.bf16.mxu0 0
      %1686 = vmatpush2.bf16.msra.mxu0 0
      %1687 = vmatprep.subr.bf16.mxu0 0
      %1688 = vmatpush2.bf16.msra.mxu0 0
      %1689 = vmatprep.mubr.bf16.mxu0 0
      %1690 = vmatmul.mubr.bf16.gmra.mxu0 %v1610
      %v1691 = vpop.f32.mrf.mxu0
      %v1692 = vadd.f32 %v1596, %v1691
      %v1693 = vpop.f32.mrf.mxu0
      %v1694 = vpop.f32.mrf.mxu0
      %v1695 = vadd.f32 %v1596, %v1694
      %v1696 = vpop.f32.mrf.mxu0
      %1697 = vmatprep.mubr.bf16.mxu0 0
      %1698 = vmatmul.mubr.bf16.gmra.mxu0 %v1613
      %v1699 = vpop.f32.mrf.mxu0
      %v1700 = vadd.f32 %v1596, %v1699
      %v1701 = vpop.f32.mrf.mxu0
      %v1702 = vpop.f32.mrf.mxu0
      %v1703 = vadd.f32 %v1596, %v1702
      %v1704 = vpop.f32.mrf.mxu0
      %1705 = vmatprep.mubr.bf16.mxu0 0
      %1706 = vmatmul.mubr.bf16.gmra.mxu0 %v1616
      %v1707 = vpop.f32.mrf.mxu0
      %v1708 = vadd.f32 %v1596, %v1707
      %v1709 = vpop.f32.mrf.mxu0
      %v1710 = vpop.f32.mrf.mxu0
      %v1711 = vadd.f32 %v1596, %v1710
      %v1712 = vpop.f32.mrf.mxu0
      %1713 = vmatprep.mubr.bf16.mxu0 0
      %1714 = vmatmul.mubr.bf16.gmra.mxu0 %v1619
      %v1715 = vpop.f32.mrf.mxu0
      %v1716 = vadd.f32 %v1596, %v1715
      %v1717 = vpop.f32.mrf.mxu0
      %v1718 = vpop.f32.mrf.mxu0
      %v1719 = vadd.f32 %v1596, %v1718
      %v1720 = vpop.f32.mrf.mxu0
      %1721 = vmatprep.mubr.bf16.mxu0 0
      %1722 = vmatmul.mubr.bf16.gmra.mxu0 %v1622
      %v1723 = vpop.f32.mrf.mxu0
      %v1724 = vadd.f32 %v1596, %v1723
      %v1725 = vpop.f32.mrf.mxu0
      %v1726 = vpop.f32.mrf.mxu0
      %v1727 = vadd.f32 %v1596, %v1726
      %v1728 = vpop.f32.mrf.mxu0
      %1729 = vmatprep.mubr.bf16.mxu0 0
      %1730 = vmatmul.mubr.bf16.gmra.mxu0 %v1625
      %v1731 = vpop.f32.mrf.mxu0
      %v1732 = vadd.f32 %v1596, %v1731
      %v1733 = vpop.f32.mrf.mxu0
      %v1734 = vpop.f32.mrf.mxu0
      %v1735 = vadd.f32 %v1596, %v1734
      %v1736 = vpop.f32.mrf.mxu0
      %1737 = vmatprep.mubr.bf16.mxu0 0
      %1738 = vmatmul.mubr.bf16.gmra.mxu0 %v1628
      %v1739 = vpop.f32.mrf.mxu0
      %v1740 = vadd.f32 %v1596, %v1739
      %v1741 = vpop.f32.mrf.mxu0
      %v1742 = vpop.f32.mrf.mxu0
      %v1743 = vadd.f32 %v1596, %v1742
      %v1744 = vpop.f32.mrf.mxu0
      %1745 = vmatprep.mubr.bf16.mxu0 0
      %1746 = vmatmul.mubr.bf16.gmra.mxu0 %v1631
      %v1747 = vpop.f32.mrf.mxu0
      %v1748 = vadd.f32 %v1596, %v1747
      %v1749 = vpop.f32.mrf.mxu0
      %v1750 = vpop.f32.mrf.mxu0
      %v1751 = vadd.f32 %v1596, %v1750
      %v1752 = vpop.f32.mrf.mxu0
      %1753 = vmatprep.mubr.bf16.mxu0 0
      %1754 = vmatmul.mubr.bf16.gmra.mxu0 %v1634
      %v1755 = vpop.f32.mrf.mxu0
      %v1756 = vadd.f32 %v1596, %v1755
      %v1757 = vpop.f32.mrf.mxu0
      %v1758 = vpop.f32.mrf.mxu0
      %v1759 = vadd.f32 %v1596, %v1758
      %v1760 = vpop.f32.mrf.mxu0
      %1761 = vmatprep.mubr.bf16.mxu0 0
      %1762 = vmatmul.mubr.bf16.gmra.mxu0 %v1637
      %v1763 = vpop.f32.mrf.mxu0
      %v1764 = vadd.f32 %v1596, %v1763
      %v1765 = vpop.f32.mrf.mxu0
      %v1766 = vpop.f32.mrf.mxu0
      %v1767 = vadd.f32 %v1596, %v1766
      %v1768 = vpop.f32.mrf.mxu0
      %1769 = vmatprep.mubr.bf16.mxu0 0
      %1770 = vmatmul.mubr.bf16.gmra.mxu0 %v1640
      %v1771 = vpop.f32.mrf.mxu0
      %v1772 = vadd.f32 %v1596, %v1771
      %v1773 = vpop.f32.mrf.mxu0
      %v1774 = vpop.f32.mrf.mxu0
      %v1775 = vadd.f32 %v1596, %v1774
      %v1776 = vpop.f32.mrf.mxu0
      %1777 = vmatprep.mubr.bf16.mxu0 0
      %1778 = vmatmul.mubr.bf16.gmra.mxu0 %v1643
      %v1779 = vpop.f32.mrf.mxu0
      %v1780 = vadd.f32 %v1596, %v1779
      %v1781 = vpop.f32.mrf.mxu0
      %v1782 = vpop.f32.mrf.mxu0
      %v1783 = vadd.f32 %v1596, %v1782
      %v1784 = vpop.f32.mrf.mxu0
      %1785 = vmatprep.mubr.bf16.mxu0 0
      %1786 = vmatmul.mubr.bf16.gmra.mxu0 %v1646
      %v1787 = vpop.f32.mrf.mxu0
      %v1788 = vadd.f32 %v1596, %v1787
      %v1789 = vpop.f32.mrf.mxu0
      %v1790 = vpop.f32.mrf.mxu0
      %v1791 = vadd.f32 %v1596, %v1790
      %v1792 = vpop.f32.mrf.mxu0
      %1793 = vmatprep.mubr.bf16.mxu0 0
      %1794 = vmatmul.mubr.bf16.gmra.mxu0 %v1649
      %v1795 = vpop.f32.mrf.mxu0
      %v1796 = vadd.f32 %v1596, %v1795
      %v1797 = vpop.f32.mrf.mxu0
      %v1798 = vpop.f32.mrf.mxu0
      %v1799 = vadd.f32 %v1596, %v1798
      %v1800 = vpop.f32.mrf.mxu0
      %1801 = vmatprep.mubr.bf16.mxu0 0
      %1802 = vmatmul.mubr.bf16.gmra.mxu0 %v1652
      %v1803 = vpop.f32.mrf.mxu0
      %v1804 = vadd.f32 %v1596, %v1803
      %v1805 = vpop.f32.mrf.mxu0
      %v1806 = vpop.f32.mrf.mxu0
      %v1807 = vadd.f32 %v1596, %v1806
      %v1808 = vpop.f32.mrf.mxu0
      %1809 = vmatprep.mubr.bf16.mxu0 0
      %1810 = vmatmul.mubr.bf16.gmra.mxu0 %v1655
      %v1811 = vpop.f32.mrf.mxu0
      %v1812 = vadd.f32 %v1596, %v1811
      %v1813 = vpop.f32.mrf.mxu0
      %v1814 = vpop.f32.mrf.mxu0
      %v1815 = vadd.f32 %v1596, %v1814
      %v1816 = vpop.f32.mrf.mxu0
      %1817 = vdwg.mxu0
      %v1818 = vmax.f32 %v1692, 0.0
      %v1819 = vmax.f32 %v1695, 0.0
      %v1820 = vmax.f32 %v1700, 0.0
      %v1821 = vmax.f32 %v1703, 0.0
      %v1822 = vmax.f32 %v1708, 0.0
      %v1823 = vmax.f32 %v1711, 0.0
      %v1824 = vmax.f32 %v1716, 0.0
      %v1825 = vmax.f32 %v1719, 0.0
      %v1826 = vmax.f32 %v1724, 0.0
      %v1827 = vmax.f32 %v1727, 0.0
      %v1828 = vmax.f32 %v1732, 0.0
      %v1829 = vmax.f32 %v1735, 0.0
      %v1830 = vmax.f32 %v1740, 0.0
      %v1831 = vmax.f32 %v1743, 0.0
      %v1832 = vmax.f32 %v1748, 0.0
      %v1833 = vmax.f32 %v1751, 0.0
      %v1834 = vmax.f32 %v1756, 0.0
      %v1835 = vmax.f32 %v1759, 0.0
      %v1836 = vmax.f32 %v1764, 0.0
      %v1837 = vmax.f32 %v1767, 0.0
      %v1838 = vmax.f32 %v1772, 0.0
      %v1839 = vmax.f32 %v1775, 0.0
      %v1840 = vmax.f32 %v1780, 0.0
      %v1841 = vmax.f32 %v1783, 0.0
      %v1842 = vmax.f32 %v1788, 0.0
      %v1843 = vmax.f32 %v1791, 0.0
      %v1844 = vmax.f32 %v1796, 0.0
      %v1845 = vmax.f32 %v1799, 0.0
      %v1846 = vmax.f32 %v1804, 0.0
      %v1847 = vmax.f32 %v1807, 0.0
      %v1848 = vmax.f32 %v1812, 0.0
      %v1849 = vmax.f32 %v1815, 0.0
      %v1850 = vpack.c.bf16 %v1819, %v1818
      %v1851 = vpack.c.bf16 %v1821, %v1820
      %v1852 = vpack.c.bf16 %v1823, %v1822
      %v1853 = vpack.c.bf16 %v1825, %v1824
      %v1854 = vpack.c.bf16 %v1827, %v1826
      %v1855 = vpack.c.bf16 %v1829, %v1828
      %v1856 = vpack.c.bf16 %v1831, %v1830
      %v1857 = vpack.c.bf16 %v1833, %v1832
      %v1858 = vpack.c.bf16 %v1835, %v1834
      %v1859 = vpack.c.bf16 %v1837, %v1836
      %v1860 = vpack.c.bf16 %v1839, %v1838
      %v1861 = vpack.c.bf16 %v1841, %v1840
      %v1862 = vpack.c.bf16 %v1843, %v1842
      %v1863 = vpack.c.bf16 %v1845, %v1844
      %v1864 = vpack.c.bf16 %v1847, %v1846
      %v1865 = vpack.c.bf16 %v1849, %v1848
      %v1866 = vlaneseq
      %v1867 = vshrl.u32 %v1866, 7
      %v1868 = vsub.s32 5, %v1867
      %v1869 = vrot.slane %v330, %v1868
      %v1874 = vunpack.c.l.b16 %v310
      %v1875 = vunpack.c.l.b16 %v311
      %v1876 = vunpack.c.l.b16 %v312
      %v1877 = vunpack.c.l.b16 %v313
      %v1878 = vpack.c.b16 %v1875, %v1874
      %v1879 = vpack.c.b16 %v1877, %v1876
      %v1883 = vsel %vm813, %v1850, 0
      %v1886 = vsel %vm813, %v1851, 0
      %v1889 = vsel %vm813, %v1852, 0
      %v1892 = vsel %vm813, %v1853, 0
      %v1895 = vsel %vm813, %v1854, 0
      %v1898 = vsel %vm813, %v1855, 0
      %v1901 = vsel %vm813, %v1856, 0
      %v1904 = vsel %vm813, %v1857, 0
      %v1907 = vsel %vm813, %v1858, 0
      %v1910 = vsel %vm813, %v1859, 0
      %v1913 = vsel %vm813, %v1860, 0
      %v1916 = vsel %vm813, %v1861, 0
      %v1919 = vsel %vm813, %v1862, 0
      %v1922 = vsel %vm813, %v1863, 0
      %v1925 = vsel %vm813, %v1864, 0
      %v1928 = vsel %vm813, %v1865, 0
      %1930 = vmatprep.subr.bf16.mxu0 0
      %1931 = vmatpush1.bf16.msra.mxu0 0
      %1932 = vmatprep.subr.bf16.mxu0 0
      %1933 = vmatpush1.bf16.msra.mxu0 0
      %1934 = vmatprep.subr.bf16.mxu0 0
      %1935 = vmatpush1.bf16.msra.mxu0 0
      %1936 = vmatprep.subr.bf16.mxu0 0
      %1937 = vmatpush1.bf16.msra.mxu0 0
      %1938 = vmatprep.subr.bf16.mxu0 0
      %1939 = vmatpush1.bf16.msra.mxu0 0
      %1940 = vmatprep.subr.bf16.mxu0 0
      %1941 = vmatpush1.bf16.msra.mxu0 0
      %1942 = vmatprep.subr.bf16.mxu0 0
      %1943 = vmatpush1.bf16.msra.mxu0 %v1879
      %1944 = vmatprep.subr.bf16.mxu0 0
      %1945 = vmatpush1.bf16.msra.mxu0 %v1878
      %1946 = vmatprep.subr.bf16.mxu0 0
      %1947 = vmatpush2.bf16.msra.mxu0 0
      %1948 = vmatprep.subr.bf16.mxu0 0
      %1949 = vmatpush2.bf16.msra.mxu0 0
      %1950 = vmatprep.subr.bf16.mxu0 0
      %1951 = vmatpush2.bf16.msra.mxu0 0
      %1952 = vmatprep.subr.bf16.mxu0 0
      %1953 = vmatpush2.bf16.msra.mxu0 0
      %1954 = vmatprep.subr.bf16.mxu0 0
      %1955 = vmatpush2.bf16.msra.mxu0 0
      %1956 = vmatprep.subr.bf16.mxu0 0
      %1957 = vmatpush2.bf16.msra.mxu0 0
      %1958 = vmatprep.subr.bf16.mxu0 0
      %1959 = vmatpush2.bf16.msra.mxu0 0
      %1960 = vmatprep.subr.bf16.mxu0 0
      %1961 = vmatpush2.bf16.msra.mxu0 0
      %1962 = vmatprep.mubr.bf16.mxu0 0
      %1963 = vmatmul.mubr.bf16.gmra.mxu0 %v1883
      %v1964 = vpop.f32.mrf.mxu0
      %v1965 = vadd.f32 %v1869, %v1964
      %v1966 = vpop.f32.mrf.mxu0
      %v1967 = vpop.f32.mrf.mxu0
      %v1968 = vadd.f32 %v1869, %v1967
      %v1969 = vpop.f32.mrf.mxu0
      %1970 = vmatprep.mubr.bf16.mxu0 0
      %1971 = vmatmul.mubr.bf16.gmra.mxu0 %v1886
      %v1972 = vpop.f32.mrf.mxu0
      %v1973 = vadd.f32 %v1869, %v1972
      %v1974 = vpop.f32.mrf.mxu0
      %v1975 = vpop.f32.mrf.mxu0
      %v1976 = vadd.f32 %v1869, %v1975
      %v1977 = vpop.f32.mrf.mxu0
      %1978 = vmatprep.mubr.bf16.mxu0 0
      %1979 = vmatmul.mubr.bf16.gmra.mxu0 %v1889
      %v1980 = vpop.f32.mrf.mxu0
      %v1981 = vadd.f32 %v1869, %v1980
      %v1982 = vpop.f32.mrf.mxu0
      %v1983 = vpop.f32.mrf.mxu0
      %v1984 = vadd.f32 %v1869, %v1983
      %v1985 = vpop.f32.mrf.mxu0
      %1986 = vmatprep.mubr.bf16.mxu0 0
      %1987 = vmatmul.mubr.bf16.gmra.mxu0 %v1892
      %v1988 = vpop.f32.mrf.mxu0
      %v1989 = vadd.f32 %v1869, %v1988
      %v1990 = vpop.f32.mrf.mxu0
      %v1991 = vpop.f32.mrf.mxu0
      %v1992 = vadd.f32 %v1869, %v1991
      %v1993 = vpop.f32.mrf.mxu0
      %1994 = vmatprep.mubr.bf16.mxu0 0
      %1995 = vmatmul.mubr.bf16.gmra.mxu0 %v1895
      %v1996 = vpop.f32.mrf.mxu0
      %v1997 = vadd.f32 %v1869, %v1996
      %v1998 = vpop.f32.mrf.mxu0
      %v1999 = vpop.f32.mrf.mxu0
      %v2000 = vadd.f32 %v1869, %v1999
      %v2001 = vpop.f32.mrf.mxu0
      %2002 = vmatprep.mubr.bf16.mxu0 0
      %2003 = vmatmul.mubr.bf16.gmra.mxu0 %v1898
      %v2004 = vpop.f32.mrf.mxu0
      %v2005 = vadd.f32 %v1869, %v2004
      %v2006 = vpop.f32.mrf.mxu0
      %v2007 = vpop.f32.mrf.mxu0
      %v2008 = vadd.f32 %v1869, %v2007
      %v2009 = vpop.f32.mrf.mxu0
      %2010 = vmatprep.mubr.bf16.mxu0 0
      %2011 = vmatmul.mubr.bf16.gmra.mxu0 %v1901
      %v2012 = vpop.f32.mrf.mxu0
      %v2013 = vadd.f32 %v1869, %v2012
      %v2014 = vpop.f32.mrf.mxu0
      %v2015 = vpop.f32.mrf.mxu0
      %v2016 = vadd.f32 %v1869, %v2015
      %v2017 = vpop.f32.mrf.mxu0
      %2018 = vmatprep.mubr.bf16.mxu0 0
      %2019 = vmatmul.mubr.bf16.gmra.mxu0 %v1904
      %v2020 = vpop.f32.mrf.mxu0
      %v2021 = vadd.f32 %v1869, %v2020
      %v2022 = vpop.f32.mrf.mxu0
      %v2023 = vpop.f32.mrf.mxu0
      %v2024 = vadd.f32 %v1869, %v2023
      %v2025 = vpop.f32.mrf.mxu0
      %2026 = vmatprep.mubr.bf16.mxu0 0
      %2027 = vmatmul.mubr.bf16.gmra.mxu0 %v1907
      %v2028 = vpop.f32.mrf.mxu0
      %v2029 = vadd.f32 %v1869, %v2028
      %v2030 = vpop.f32.mrf.mxu0
      %v2031 = vpop.f32.mrf.mxu0
      %v2032 = vadd.f32 %v1869, %v2031
      %v2033 = vpop.f32.mrf.mxu0
      %2034 = vmatprep.mubr.bf16.mxu0 0
      %2035 = vmatmul.mubr.bf16.gmra.mxu0 %v1910
      %v2036 = vpop.f32.mrf.mxu0
      %v2037 = vadd.f32 %v1869, %v2036
      %v2038 = vpop.f32.mrf.mxu0
      %v2039 = vpop.f32.mrf.mxu0
      %v2040 = vadd.f32 %v1869, %v2039
      %v2041 = vpop.f32.mrf.mxu0
      %2042 = vmatprep.mubr.bf16.mxu0 0
      %2043 = vmatmul.mubr.bf16.gmra.mxu0 %v1913
      %v2044 = vpop.f32.mrf.mxu0
      %v2045 = vadd.f32 %v1869, %v2044
      %v2046 = vpop.f32.mrf.mxu0
      %v2047 = vpop.f32.mrf.mxu0
      %v2048 = vadd.f32 %v1869, %v2047
      %v2049 = vpop.f32.mrf.mxu0
      %2050 = vmatprep.mubr.bf16.mxu0 0
      %2051 = vmatmul.mubr.bf16.gmra.mxu0 %v1916
      %v2052 = vpop.f32.mrf.mxu0
      %v2053 = vadd.f32 %v1869, %v2052
      %v2054 = vpop.f32.mrf.mxu0
      %v2055 = vpop.f32.mrf.mxu0
      %v2056 = vadd.f32 %v1869, %v2055
      %v2057 = vpop.f32.mrf.mxu0
      %2058 = vmatprep.mubr.bf16.mxu0 0
      %2059 = vmatmul.mubr.bf16.gmra.mxu0 %v1919
      %v2060 = vpop.f32.mrf.mxu0
      %v2061 = vadd.f32 %v1869, %v2060
      %v2062 = vpop.f32.mrf.mxu0
      %v2063 = vpop.f32.mrf.mxu0
      %v2064 = vadd.f32 %v1869, %v2063
      %v2065 = vpop.f32.mrf.mxu0
      %2066 = vmatprep.mubr.bf16.mxu0 0
      %2067 = vmatmul.mubr.bf16.gmra.mxu0 %v1922
      %v2068 = vpop.f32.mrf.mxu0
      %v2069 = vadd.f32 %v1869, %v2068
      %v2070 = vpop.f32.mrf.mxu0
      %v2071 = vpop.f32.mrf.mxu0
      %v2072 = vadd.f32 %v1869, %v2071
      %v2073 = vpop.f32.mrf.mxu0
      %2074 = vmatprep.mubr.bf16.mxu0 0
      %2075 = vmatmul.mubr.bf16.gmra.mxu0 %v1925
      %v2076 = vpop.f32.mrf.mxu0
      %v2077 = vadd.f32 %v1869, %v2076
      %v2078 = vpop.f32.mrf.mxu0
      %v2079 = vpop.f32.mrf.mxu0
      %v2080 = vadd.f32 %v1869, %v2079
      %v2081 = vpop.f32.mrf.mxu0
      %2082 = vmatprep.mubr.bf16.mxu0 0
      %2083 = vmatmul.mubr.bf16.gmra.mxu0 %v1928
      %v2084 = vpop.f32.mrf.mxu0
      %v2085 = vadd.f32 %v1869, %v2084
      %v2086 = vpop.f32.mrf.mxu0
      %v2087 = vpop.f32.mrf.mxu0
      %v2088 = vadd.f32 %v1869, %v2087
      %v2089 = vpop.f32.mrf.mxu0
      %2090 = vdwg.mxu0
      %v2091 = vmax.f32 %v1965, 0.0
      %v2092 = vmax.f32 %v1968, 0.0
      %v2093 = vmax.f32 %v1973, 0.0
      %v2094 = vmax.f32 %v1976, 0.0
      %v2095 = vmax.f32 %v1981, 0.0
      %v2096 = vmax.f32 %v1984, 0.0
      %v2097 = vmax.f32 %v1989, 0.0
      %v2098 = vmax.f32 %v1992, 0.0
      %v2099 = vmax.f32 %v1997, 0.0
      %v2100 = vmax.f32 %v2000, 0.0
      %v2101 = vmax.f32 %v2005, 0.0
      %v2102 = vmax.f32 %v2008, 0.0
      %v2103 = vmax.f32 %v2013, 0.0
      %v2104 = vmax.f32 %v2016, 0.0
      %v2105 = vmax.f32 %v2021, 0.0
      %v2106 = vmax.f32 %v2024, 0.0
      %v2107 = vmax.f32 %v2029, 0.0
      %v2108 = vmax.f32 %v2032, 0.0
      %v2109 = vmax.f32 %v2037, 0.0
      %v2110 = vmax.f32 %v2040, 0.0
      %v2111 = vmax.f32 %v2045, 0.0
      %v2112 = vmax.f32 %v2048, 0.0
      %v2113 = vmax.f32 %v2053, 0.0
      %v2114 = vmax.f32 %v2056, 0.0
      %v2115 = vmax.f32 %v2061, 0.0
      %v2116 = vmax.f32 %v2064, 0.0
      %v2117 = vmax.f32 %v2069, 0.0
      %v2118 = vmax.f32 %v2072, 0.0
      %v2119 = vmax.f32 %v2077, 0.0
      %v2120 = vmax.f32 %v2080, 0.0
      %v2121 = vmax.f32 %v2085, 0.0
      %v2122 = vmax.f32 %v2088, 0.0
      %v2123 = vlaneseq
      %v2124 = vshrl.u32 %v2123, 7
      %v2125 = vsub.s32 6, %v2124
      %v2126 = vrot.slane %v330, %v2125
      %v2127 = vmul.f32 %v2091, %v2126
      %v2128 = vmul.f32 %v2092, %v2126
      %v2129 = vmul.f32 %v2093, %v2126
      %v2130 = vmul.f32 %v2094, %v2126
      %v2131 = vmul.f32 %v2095, %v2126
      %v2132 = vmul.f32 %v2096, %v2126
      %v2133 = vmul.f32 %v2097, %v2126
      %v2134 = vmul.f32 %v2098, %v2126
      %v2135 = vmul.f32 %v2099, %v2126
      %v2136 = vmul.f32 %v2100, %v2126
      %v2137 = vmul.f32 %v2101, %v2126
      %v2138 = vmul.f32 %v2102, %v2126
      %v2139 = vmul.f32 %v2103, %v2126
      %v2140 = vmul.f32 %v2104, %v2126
      %v2141 = vmul.f32 %v2105, %v2126
      %v2142 = vmul.f32 %v2106, %v2126
      %v2143 = vmul.f32 %v2107, %v2126
      %v2144 = vmul.f32 %v2108, %v2126
      %v2145 = vmul.f32 %v2109, %v2126
      %v2146 = vmul.f32 %v2110, %v2126
      %v2147 = vmul.f32 %v2111, %v2126
      %v2148 = vmul.f32 %v2112, %v2126
      %v2149 = vmul.f32 %v2113, %v2126
      %v2150 = vmul.f32 %v2114, %v2126
      %v2151 = vmul.f32 %v2115, %v2126
      %v2152 = vmul.f32 %v2116, %v2126
      %v2153 = vmul.f32 %v2117, %v2126
      %v2154 = vmul.f32 %v2118, %v2126
      %v2155 = vmul.f32 %v2119, %v2126
      %v2156 = vmul.f32 %v2120, %v2126
      %v2157 = vmul.f32 %v2121, %v2126
      %v2158 = vmul.f32 %v2122, %v2126
      %v2159 = vlaneseq
      %v2160 = vshrl.u32 %v2159, 7
      %v2161 = vsub.s32 7, %v2160
      %v2162 = vrot.slane %v330, %v2161
      %v2163 = vadd.f32 %v2127, %v2162
      %v2164 = vadd.f32 %v2128, %v2162
      %v2165 = vadd.f32 %v2129, %v2162
      %v2166 = vadd.f32 %v2130, %v2162
      %v2167 = vadd.f32 %v2131, %v2162
      %v2168 = vadd.f32 %v2132, %v2162
      %v2169 = vadd.f32 %v2133, %v2162
      %v2170 = vadd.f32 %v2134, %v2162
      %v2171 = vadd.f32 %v2135, %v2162
      %v2172 = vadd.f32 %v2136, %v2162
      %v2173 = vadd.f32 %v2137, %v2162
      %v2174 = vadd.f32 %v2138, %v2162
      %v2175 = vadd.f32 %v2139, %v2162
      %v2176 = vadd.f32 %v2140, %v2162
      %v2177 = vadd.f32 %v2141, %v2162
      %v2178 = vadd.f32 %v2142, %v2162
      %v2179 = vadd.f32 %v2143, %v2162
      %v2180 = vadd.f32 %v2144, %v2162
      %v2181 = vadd.f32 %v2145, %v2162
      %v2182 = vadd.f32 %v2146, %v2162
      %v2183 = vadd.f32 %v2147, %v2162
      %v2184 = vadd.f32 %v2148, %v2162
      %v2185 = vadd.f32 %v2149, %v2162
      %v2186 = vadd.f32 %v2150, %v2162
      %v2187 = vadd.f32 %v2151, %v2162
      %v2188 = vadd.f32 %v2152, %v2162
      %v2189 = vadd.f32 %v2153, %v2162
      %v2190 = vadd.f32 %v2154, %v2162
      %v2191 = vadd.f32 %v2155, %v2162
      %v2192 = vadd.f32 %v2156, %v2162
      %v2193 = vadd.f32 %v2157, %v2162
      %v2194 = vadd.f32 %v2158, %v2162
      %v2195 = vpack.c.bf16 %v2164, %v2163
      %v2196 = vpack.c.bf16 %v2166, %v2165
      %v2197 = vpack.c.bf16 %v2168, %v2167
      %v2198 = vpack.c.bf16 %v2170, %v2169
      %v2199 = vpack.c.bf16 %v2172, %v2171
      %v2200 = vpack.c.bf16 %v2174, %v2173
      %v2201 = vpack.c.bf16 %v2176, %v2175
      %v2202 = vpack.c.bf16 %v2178, %v2177
      %v2203 = vpack.c.bf16 %v2180, %v2179
      %v2204 = vpack.c.bf16 %v2182, %v2181
      %v2205 = vpack.c.bf16 %v2184, %v2183
      %v2206 = vpack.c.bf16 %v2186, %v2185
      %v2207 = vpack.c.bf16 %v2188, %v2187
      %v2208 = vpack.c.bf16 %v2190, %v2189
      %v2209 = vpack.c.bf16 %v2192, %v2191
      %v2210 = vpack.c.bf16 %v2194, %v2193
      %2211 = vmatprep.subr.bf16.mxu0 0
      %2212 = vmatpush1.bf16.msra.mxu0 %v2202
      %2213 = vmatprep.subr.bf16.mxu0 0
      %2214 = vmatpush1.bf16.msra.mxu0 %v2201
      %2215 = vmatprep.subr.bf16.mxu0 0
      %2216 = vmatpush1.bf16.msra.mxu0 %v2200
      %2217 = vmatprep.subr.bf16.mxu0 0
      %2218 = vmatpush1.bf16.msra.mxu0 %v2199
      %2219 = vmatprep.subr.bf16.mxu0 0
      %2220 = vmatpush1.bf16.msra.mxu0 %v2198
      %2221 = vmatprep.subr.bf16.mxu0 0
      %2222 = vmatpush1.bf16.msra.mxu0 %v2197
      %2223 = vmatprep.subr.bf16.mxu0 0
      %2224 = vmatpush1.bf16.msra.mxu0 %v2196
      %2225 = vmatprep.subr.bf16.mxu0 0
      %2226 = vmatpush1.bf16.msra.mxu0 %v2195
      %2227 = vmatprep.subr.bf16.mxu0 0
      %2228 = vmatpush2.bf16.msra.mxu0 %v2210
      %2229 = vmatprep.subr.bf16.mxu0 0
      %2230 = vmatpush2.bf16.msra.mxu0 %v2209
      %2231 = vmatprep.subr.bf16.mxu0 0
      %2232 = vmatpush2.bf16.msra.mxu0 %v2208
      %2233 = vmatprep.subr.bf16.mxu0 0
      %2234 = vmatpush2.bf16.msra.mxu0 %v2207
      %2235 = vmatprep.subr.bf16.mxu0 0
      %2236 = vmatpush2.bf16.msra.mxu0 %v2206
      %2237 = vmatprep.subr.bf16.mxu0 0
      %2238 = vmatpush2.bf16.msra.mxu0 %v2205
      %2239 = vmatprep.subr.bf16.mxu0 0
      %2240 = vmatpush2.bf16.msra.mxu0 %v2204
      %2241 = vmatprep.subr.bf16.mxu0 0
      %2242 = vmatpush2.bf16.msra.mxu0 %v2203
      %2243 = vmatprep.mubr.bf16.mxu0 %v461
      %2244 = vmatmul.mubr.bf16.gmra.mxu0 %v460
      %v2245 = vpop.f32.mrf.mxu0
      %v2246 = vadd.f32 0.0, %v2245
      %v2247 = vpop.f32.mrf.mxu0
      %v2248 = vpop.f32.mrf.mxu0
      %v2249 = vadd.f32 0.0, %v2248
      %v2250 = vpop.f32.mrf.mxu0
      %2251 = vmatprep.mubr.bf16.mxu0 %v463
      %2252 = vmatmul.mubr.bf16.gmra.mxu0 %v462
      %v2253 = vpop.f32.mrf.mxu0
      %v2254 = vadd.f32 0.0, %v2253
      %v2255 = vpop.f32.mrf.mxu0
      %v2256 = vpop.f32.mrf.mxu0
      %v2257 = vadd.f32 0.0, %v2256
      %v2258 = vpop.f32.mrf.mxu0
      %2259 = vmatprep.mubr.bf16.mxu0 %v465
      %2260 = vmatmul.mubr.bf16.gmra.mxu0 %v464
      %v2261 = vpop.f32.mrf.mxu0
      %v2262 = vadd.f32 0.0, %v2261
      %v2263 = vpop.f32.mrf.mxu0
      %v2264 = vpop.f32.mrf.mxu0
      %v2265 = vadd.f32 0.0, %v2264
      %v2266 = vpop.f32.mrf.mxu0
      %2267 = vmatprep.mubr.bf16.mxu0 %v467
      %2268 = vmatmul.mubr.bf16.gmra.mxu0 %v466
      %v2269 = vpop.f32.mrf.mxu0
      %v2270 = vadd.f32 0.0, %v2269
      %v2271 = vpop.f32.mrf.mxu0
      %v2272 = vpop.f32.mrf.mxu0
      %v2273 = vadd.f32 0.0, %v2272
      %v2274 = vpop.f32.mrf.mxu0
      %2275 = vmatprep.mubr.bf16.mxu0 %v469
      %2276 = vmatmul.mubr.bf16.gmra.mxu0 %v468
      %v2277 = vpop.f32.mrf.mxu0
      %v2278 = vadd.f32 0.0, %v2277
      %v2279 = vpop.f32.mrf.mxu0
      %v2280 = vpop.f32.mrf.mxu0
      %v2281 = vadd.f32 0.0, %v2280
      %v2282 = vpop.f32.mrf.mxu0
      %2283 = vmatprep.mubr.bf16.mxu0 %v471
      %2284 = vmatmul.mubr.bf16.gmra.mxu0 %v470
      %v2285 = vpop.f32.mrf.mxu0
      %v2286 = vadd.f32 0.0, %v2285
      %v2287 = vpop.f32.mrf.mxu0
      %v2288 = vpop.f32.mrf.mxu0
      %v2289 = vadd.f32 0.0, %v2288
      %v2290 = vpop.f32.mrf.mxu0
      %2291 = vmatprep.mubr.bf16.mxu0 %v473
      %2292 = vmatmul.mubr.bf16.gmra.mxu0 %v472
      %v2293 = vpop.f32.mrf.mxu0
      %v2294 = vadd.f32 0.0, %v2293
      %v2295 = vpop.f32.mrf.mxu0
      %v2296 = vpop.f32.mrf.mxu0
      %v2297 = vadd.f32 0.0, %v2296
      %v2298 = vpop.f32.mrf.mxu0
      %2299 = vmatprep.mubr.bf16.mxu0 %v475
      %2300 = vmatmul.mubr.bf16.gmra.mxu0 %v474
      %v2301 = vpop.f32.mrf.mxu0
      %v2302 = vadd.f32 0.0, %v2301
      %v2303 = vpop.f32.mrf.mxu0
      %v2304 = vpop.f32.mrf.mxu0
      %v2305 = vadd.f32 0.0, %v2304
      %v2306 = vpop.f32.mrf.mxu0
      %2307 = vmatprep.mubr.bf16.mxu0 %v477
      %2308 = vmatmul.mubr.bf16.gmra.mxu0 %v476
      %v2309 = vpop.f32.mrf.mxu0
      %v2310 = vadd.f32 0.0, %v2309
      %v2311 = vpop.f32.mrf.mxu0
      %v2312 = vpop.f32.mrf.mxu0
      %v2313 = vadd.f32 0.0, %v2312
      %v2314 = vpop.f32.mrf.mxu0
      %2315 = vmatprep.mubr.bf16.mxu0 %v479
      %2316 = vmatmul.mubr.bf16.gmra.mxu0 %v478
      %v2317 = vpop.f32.mrf.mxu0
      %v2318 = vadd.f32 0.0, %v2317
      %v2319 = vpop.f32.mrf.mxu0
      %v2320 = vpop.f32.mrf.mxu0
      %v2321 = vadd.f32 0.0, %v2320
      %v2322 = vpop.f32.mrf.mxu0
      %2323 = vmatprep.mubr.bf16.mxu0 %v481
      %2324 = vmatmul.mubr.bf16.gmra.mxu0 %v480
      %v2325 = vpop.f32.mrf.mxu0
      %v2326 = vadd.f32 0.0, %v2325
      %v2327 = vpop.f32.mrf.mxu0
      %v2328 = vpop.f32.mrf.mxu0
      %v2329 = vadd.f32 0.0, %v2328
      %v2330 = vpop.f32.mrf.mxu0
      %2331 = vmatprep.mubr.bf16.mxu0 %v483
      %2332 = vmatmul.mubr.bf16.gmra.mxu0 %v482
      %v2333 = vpop.f32.mrf.mxu0
      %v2334 = vadd.f32 0.0, %v2333
      %v2335 = vpop.f32.mrf.mxu0
      %v2336 = vpop.f32.mrf.mxu0
      %v2337 = vadd.f32 0.0, %v2336
      %v2338 = vpop.f32.mrf.mxu0
      %2339 = vmatprep.mubr.bf16.mxu0 %v485
      %2340 = vmatmul.mubr.bf16.gmra.mxu0 %v484
      %v2341 = vpop.f32.mrf.mxu0
      %v2342 = vadd.f32 0.0, %v2341
      %v2343 = vpop.f32.mrf.mxu0
      %v2344 = vpop.f32.mrf.mxu0
      %v2345 = vadd.f32 0.0, %v2344
      %v2346 = vpop.f32.mrf.mxu0
      %2347 = vmatprep.mubr.bf16.mxu0 %v487
      %2348 = vmatmul.mubr.bf16.gmra.mxu0 %v486
      %v2349 = vpop.f32.mrf.mxu0
      %v2350 = vadd.f32 0.0, %v2349
      %v2351 = vpop.f32.mrf.mxu0
      %v2352 = vpop.f32.mrf.mxu0
      %v2353 = vadd.f32 0.0, %v2352
      %v2354 = vpop.f32.mrf.mxu0
      %2355 = vmatprep.mubr.bf16.mxu0 %v489
      %2356 = vmatmul.mubr.bf16.gmra.mxu0 %v488
      %v2357 = vpop.f32.mrf.mxu0
      %v2358 = vadd.f32 0.0, %v2357
      %v2359 = vpop.f32.mrf.mxu0
      %v2360 = vpop.f32.mrf.mxu0
      %v2361 = vadd.f32 0.0, %v2360
      %v2362 = vpop.f32.mrf.mxu0
      %2363 = vmatprep.mubr.bf16.mxu0 %v491
      %2364 = vmatmul.mubr.bf16.gmra.mxu0 %v490
      %v2365 = vpop.f32.mrf.mxu0
      %v2366 = vadd.f32 0.0, %v2365
      %v2367 = vpop.f32.mrf.mxu0
      %v2368 = vpop.f32.mrf.mxu0
      %v2369 = vadd.f32 0.0, %v2368
      %v2370 = vpop.f32.mrf.mxu0
      %2371 = vdwg.mxu0
      %v2372 = vpack.c.bf16 %v2249, %v2246
      %v2373 = vpack.c.bf16 %v2257, %v2254
      %v2374 = vpack.c.bf16 %v2265, %v2262
      %v2375 = vpack.c.bf16 %v2273, %v2270
      %v2376 = vpack.c.bf16 %v2281, %v2278
      %v2377 = vpack.c.bf16 %v2289, %v2286
      %v2378 = vpack.c.bf16 %v2297, %v2294
      %v2379 = vpack.c.bf16 %v2305, %v2302
      %v2380 = vpack.c.bf16 %v2313, %v2310
      %v2381 = vpack.c.bf16 %v2321, %v2318
      %v2382 = vpack.c.bf16 %v2329, %v2326
      %v2383 = vpack.c.bf16 %v2337, %v2334
      %v2384 = vpack.c.bf16 %v2345, %v2342
      %v2385 = vpack.c.bf16 %v2353, %v2350
      %v2386 = vpack.c.bf16 %v2361, %v2358
      %v2387 = vpack.c.bf16 %v2369, %v2366
      %v2388 = vlaneseq
      %v2389 = vshrl.u32 %v2388, 7
      %v2390 = vsub.s32 0, %v2389
      %v2391 = vrot.slane %v331, %v2390
      %v2396 = vunpack.c.l.b16 %v314
      %v2397 = vunpack.c.l.b16 %v315
      %v2398 = vunpack.c.l.b16 %v316
      %v2399 = vunpack.c.l.b16 %v317
      %v2400 = vpack.c.b16 %v2397, %v2396
      %v2401 = vpack.c.b16 %v2399, %v2398
      %v2405 = vsel %vm813, %v2372, 0
      %v2408 = vsel %vm813, %v2373, 0
      %v2411 = vsel %vm813, %v2374, 0
      %v2414 = vsel %vm813, %v2375, 0
      %v2417 = vsel %vm813, %v2376, 0
      %v2420 = vsel %vm813, %v2377, 0
      %v2423 = vsel %vm813, %v2378, 0
      %v2426 = vsel %vm813, %v2379, 0
      %v2429 = vsel %vm813, %v2380, 0
      %v2432 = vsel %vm813, %v2381, 0
      %v2435 = vsel %vm813, %v2382, 0
      %v2438 = vsel %vm813, %v2383, 0
      %v2441 = vsel %vm813, %v2384, 0
      %v2444 = vsel %vm813, %v2385, 0
      %v2447 = vsel %vm813, %v2386, 0
      %v2450 = vsel %vm813, %v2387, 0
      %2452 = vmatprep.subr.bf16.mxu0 0
      %2453 = vmatpush1.bf16.msra.mxu0 0
      %2454 = vmatprep.subr.bf16.mxu0 0
      %2455 = vmatpush1.bf16.msra.mxu0 0
      %2456 = vmatprep.subr.bf16.mxu0 0
      %2457 = vmatpush1.bf16.msra.mxu0 0
      %2458 = vmatprep.subr.bf16.mxu0 0
      %2459 = vmatpush1.bf16.msra.mxu0 0
      %2460 = vmatprep.subr.bf16.mxu0 0
      %2461 = vmatpush1.bf16.msra.mxu0 0
      %2462 = vmatprep.subr.bf16.mxu0 0
      %2463 = vmatpush1.bf16.msra.mxu0 0
      %2464 = vmatprep.subr.bf16.mxu0 0
      %2465 = vmatpush1.bf16.msra.mxu0 %v2401
      %2466 = vmatprep.subr.bf16.mxu0 0
      %2467 = vmatpush1.bf16.msra.mxu0 %v2400
      %2468 = vmatprep.subr.bf16.mxu0 0
      %2469 = vmatpush2.bf16.msra.mxu0 0
      %2470 = vmatprep.subr.bf16.mxu0 0
      %2471 = vmatpush2.bf16.msra.mxu0 0
      %2472 = vmatprep.subr.bf16.mxu0 0
      %2473 = vmatpush2.bf16.msra.mxu0 0
      %2474 = vmatprep.subr.bf16.mxu0 0
      %2475 = vmatpush2.bf16.msra.mxu0 0
      %2476 = vmatprep.subr.bf16.mxu0 0
      %2477 = vmatpush2.bf16.msra.mxu0 0
      %2478 = vmatprep.subr.bf16.mxu0 0
      %2479 = vmatpush2.bf16.msra.mxu0 0
      %2480 = vmatprep.subr.bf16.mxu0 0
      %2481 = vmatpush2.bf16.msra.mxu0 0
      %2482 = vmatprep.subr.bf16.mxu0 0
      %2483 = vmatpush2.bf16.msra.mxu0 0
      %2484 = vmatprep.mubr.bf16.mxu0 0
      %2485 = vmatmul.mubr.bf16.gmra.mxu0 %v2405
      %v2486 = vpop.f32.mrf.mxu0
      %v2487 = vadd.f32 %v2391, %v2486
      %v2488 = vpop.f32.mrf.mxu0
      %v2489 = vpop.f32.mrf.mxu0
      %v2490 = vadd.f32 %v2391, %v2489
      %v2491 = vpop.f32.mrf.mxu0
      %2492 = vmatprep.mubr.bf16.mxu0 0
      %2493 = vmatmul.mubr.bf16.gmra.mxu0 %v2408
      %v2494 = vpop.f32.mrf.mxu0
      %v2495 = vadd.f32 %v2391, %v2494
      %v2496 = vpop.f32.mrf.mxu0
      %v2497 = vpop.f32.mrf.mxu0
      %v2498 = vadd.f32 %v2391, %v2497
      %v2499 = vpop.f32.mrf.mxu0
      %2500 = vmatprep.mubr.bf16.mxu0 0
      %2501 = vmatmul.mubr.bf16.gmra.mxu0 %v2411
      %v2502 = vpop.f32.mrf.mxu0
      %v2503 = vadd.f32 %v2391, %v2502
      %v2504 = vpop.f32.mrf.mxu0
      %v2505 = vpop.f32.mrf.mxu0
      %v2506 = vadd.f32 %v2391, %v2505
      %v2507 = vpop.f32.mrf.mxu0
      %2508 = vmatprep.mubr.bf16.mxu0 0
      %2509 = vmatmul.mubr.bf16.gmra.mxu0 %v2414
      %v2510 = vpop.f32.mrf.mxu0
      %v2511 = vadd.f32 %v2391, %v2510
      %v2512 = vpop.f32.mrf.mxu0
      %v2513 = vpop.f32.mrf.mxu0
      %v2514 = vadd.f32 %v2391, %v2513
      %v2515 = vpop.f32.mrf.mxu0
      %2516 = vmatprep.mubr.bf16.mxu0 0
      %2517 = vmatmul.mubr.bf16.gmra.mxu0 %v2417
      %v2518 = vpop.f32.mrf.mxu0
      %v2519 = vadd.f32 %v2391, %v2518
      %v2520 = vpop.f32.mrf.mxu0
      %v2521 = vpop.f32.mrf.mxu0
      %v2522 = vadd.f32 %v2391, %v2521
      %v2523 = vpop.f32.mrf.mxu0
      %2524 = vmatprep.mubr.bf16.mxu0 0
      %2525 = vmatmul.mubr.bf16.gmra.mxu0 %v2420
      %v2526 = vpop.f32.mrf.mxu0
      %v2527 = vadd.f32 %v2391, %v2526
      %v2528 = vpop.f32.mrf.mxu0
      %v2529 = vpop.f32.mrf.mxu0
      %v2530 = vadd.f32 %v2391, %v2529
      %v2531 = vpop.f32.mrf.mxu0
      %2532 = vmatprep.mubr.bf16.mxu0 0
      %2533 = vmatmul.mubr.bf16.gmra.mxu0 %v2423
      %v2534 = vpop.f32.mrf.mxu0
      %v2535 = vadd.f32 %v2391, %v2534
      %v2536 = vpop.f32.mrf.mxu0
      %v2537 = vpop.f32.mrf.mxu0
      %v2538 = vadd.f32 %v2391, %v2537
      %v2539 = vpop.f32.mrf.mxu0
      %2540 = vmatprep.mubr.bf16.mxu0 0
      %2541 = vmatmul.mubr.bf16.gmra.mxu0 %v2426
      %v2542 = vpop.f32.mrf.mxu0
      %v2543 = vadd.f32 %v2391, %v2542
      %v2544 = vpop.f32.mrf.mxu0
      %v2545 = vpop.f32.mrf.mxu0
      %v2546 = vadd.f32 %v2391, %v2545
      %v2547 = vpop.f32.mrf.mxu0
      %2548 = vmatprep.mubr.bf16.mxu0 0
      %2549 = vmatmul.mubr.bf16.gmra.mxu0 %v2429
      %v2550 = vpop.f32.mrf.mxu0
      %v2551 = vadd.f32 %v2391, %v2550
      %v2552 = vpop.f32.mrf.mxu0
      %v2553 = vpop.f32.mrf.mxu0
      %v2554 = vadd.f32 %v2391, %v2553
      %v2555 = vpop.f32.mrf.mxu0
      %2556 = vmatprep.mubr.bf16.mxu0 0
      %2557 = vmatmul.mubr.bf16.gmra.mxu0 %v2432
      %v2558 = vpop.f32.mrf.mxu0
      %v2559 = vadd.f32 %v2391, %v2558
      %v2560 = vpop.f32.mrf.mxu0
      %v2561 = vpop.f32.mrf.mxu0
      %v2562 = vadd.f32 %v2391, %v2561
      %v2563 = vpop.f32.mrf.mxu0
      %2564 = vmatprep.mubr.bf16.mxu0 0
      %2565 = vmatmul.mubr.bf16.gmra.mxu0 %v2435
      %v2566 = vpop.f32.mrf.mxu0
      %v2567 = vadd.f32 %v2391, %v2566
      %v2568 = vpop.f32.mrf.mxu0
      %v2569 = vpop.f32.mrf.mxu0
      %v2570 = vadd.f32 %v2391, %v2569
      %v2571 = vpop.f32.mrf.mxu0
      %2572 = vmatprep.mubr.bf16.mxu0 0
      %2573 = vmatmul.mubr.bf16.gmra.mxu0 %v2438
      %v2574 = vpop.f32.mrf.mxu0
      %v2575 = vadd.f32 %v2391, %v2574
      %v2576 = vpop.f32.mrf.mxu0
      %v2577 = vpop.f32.mrf.mxu0
      %v2578 = vadd.f32 %v2391, %v2577
      %v2579 = vpop.f32.mrf.mxu0
      %2580 = vmatprep.mubr.bf16.mxu0 0
      %2581 = vmatmul.mubr.bf16.gmra.mxu0 %v2441
      %v2582 = vpop.f32.mrf.mxu0
      %v2583 = vadd.f32 %v2391, %v2582
      %v2584 = vpop.f32.mrf.mxu0
      %v2585 = vpop.f32.mrf.mxu0
      %v2586 = vadd.f32 %v2391, %v2585
      %v2587 = vpop.f32.mrf.mxu0
      %2588 = vmatprep.mubr.bf16.mxu0 0
      %2589 = vmatmul.mubr.bf16.gmra.mxu0 %v2444
      %v2590 = vpop.f32.mrf.mxu0
      %v2591 = vadd.f32 %v2391, %v2590
      %v2592 = vpop.f32.mrf.mxu0
      %v2593 = vpop.f32.mrf.mxu0
      %v2594 = vadd.f32 %v2391, %v2593
      %v2595 = vpop.f32.mrf.mxu0
      %2596 = vmatprep.mubr.bf16.mxu0 0
      %2597 = vmatmul.mubr.bf16.gmra.mxu0 %v2447
      %v2598 = vpop.f32.mrf.mxu0
      %v2599 = vadd.f32 %v2391, %v2598
      %v2600 = vpop.f32.mrf.mxu0
      %v2601 = vpop.f32.mrf.mxu0
      %v2602 = vadd.f32 %v2391, %v2601
      %v2603 = vpop.f32.mrf.mxu0
      %2604 = vmatprep.mubr.bf16.mxu0 0
      %2605 = vmatmul.mubr.bf16.gmra.mxu0 %v2450
      %v2606 = vpop.f32.mrf.mxu0
      %v2607 = vadd.f32 %v2391, %v2606
      %v2608 = vpop.f32.mrf.mxu0
      %v2609 = vpop.f32.mrf.mxu0
      %v2610 = vadd.f32 %v2391, %v2609
      %v2611 = vpop.f32.mrf.mxu0
      %2612 = vdwg.mxu0
      %v2613 = vmax.f32 %v2487, 0.0
      %v2614 = vmax.f32 %v2490, 0.0
      %v2615 = vmax.f32 %v2495, 0.0
      %v2616 = vmax.f32 %v2498, 0.0
      %v2617 = vmax.f32 %v2503, 0.0
      %v2618 = vmax.f32 %v2506, 0.0
      %v2619 = vmax.f32 %v2511, 0.0
      %v2620 = vmax.f32 %v2514, 0.0
      %v2621 = vmax.f32 %v2519, 0.0
      %v2622 = vmax.f32 %v2522, 0.0
      %v2623 = vmax.f32 %v2527, 0.0
      %v2624 = vmax.f32 %v2530, 0.0
      %v2625 = vmax.f32 %v2535, 0.0
      %v2626 = vmax.f32 %v2538, 0.0
      %v2627 = vmax.f32 %v2543, 0.0
      %v2628 = vmax.f32 %v2546, 0.0
      %v2629 = vmax.f32 %v2551, 0.0
      %v2630 = vmax.f32 %v2554, 0.0
      %v2631 = vmax.f32 %v2559, 0.0
      %v2632 = vmax.f32 %v2562, 0.0
      %v2633 = vmax.f32 %v2567, 0.0
      %v2634 = vmax.f32 %v2570, 0.0
      %v2635 = vmax.f32 %v2575, 0.0
      %v2636 = vmax.f32 %v2578, 0.0
      %v2637 = vmax.f32 %v2583, 0.0
      %v2638 = vmax.f32 %v2586, 0.0
      %v2639 = vmax.f32 %v2591, 0.0
      %v2640 = vmax.f32 %v2594, 0.0
      %v2641 = vmax.f32 %v2599, 0.0
      %v2642 = vmax.f32 %v2602, 0.0
      %v2643 = vmax.f32 %v2607, 0.0
      %v2644 = vmax.f32 %v2610, 0.0
      %v2645 = vpack.c.bf16 %v2614, %v2613
      %v2646 = vpack.c.bf16 %v2616, %v2615
      %v2647 = vpack.c.bf16 %v2618, %v2617
      %v2648 = vpack.c.bf16 %v2620, %v2619
      %v2649 = vpack.c.bf16 %v2622, %v2621
      %v2650 = vpack.c.bf16 %v2624, %v2623
      %v2651 = vpack.c.bf16 %v2626, %v2625
      %v2652 = vpack.c.bf16 %v2628, %v2627
      %v2653 = vpack.c.bf16 %v2630, %v2629
      %v2654 = vpack.c.bf16 %v2632, %v2631
      %v2655 = vpack.c.bf16 %v2634, %v2633
      %v2656 = vpack.c.bf16 %v2636, %v2635
      %v2657 = vpack.c.bf16 %v2638, %v2637
      %v2658 = vpack.c.bf16 %v2640, %v2639
      %v2659 = vpack.c.bf16 %v2642, %v2641
      %v2660 = vpack.c.bf16 %v2644, %v2643
      %v2661 = vlaneseq
      %v2662 = vshrl.u32 %v2661, 7
      %v2663 = vsub.s32 1, %v2662
      %v2664 = vrot.slane %v331, %v2663
      %v2669 = vunpack.c.l.b16 %v318
      %v2670 = vunpack.c.l.b16 %v319
      %v2671 = vunpack.c.l.b16 %v320
      %v2672 = vunpack.c.l.b16 %v321
      %v2673 = vpack.c.b16 %v2670, %v2669
      %v2674 = vpack.c.b16 %v2672, %v2671
      %v2678 = vsel %vm813, %v2645, 0
      %v2681 = vsel %vm813, %v2646, 0
      %v2684 = vsel %vm813, %v2647, 0
      %v2687 = vsel %vm813, %v2648, 0
      %v2690 = vsel %vm813, %v2649, 0
      %v2693 = vsel %vm813, %v2650, 0
      %v2696 = vsel %vm813, %v2651, 0
      %v2699 = vsel %vm813, %v2652, 0
      %v2702 = vsel %vm813, %v2653, 0
      %v2705 = vsel %vm813, %v2654, 0
      %v2708 = vsel %vm813, %v2655, 0
      %v2711 = vsel %vm813, %v2656, 0
      %v2714 = vsel %vm813, %v2657, 0
      %v2717 = vsel %vm813, %v2658, 0
      %v2720 = vsel %vm813, %v2659, 0
      %v2723 = vsel %vm813, %v2660, 0
      %2725 = vmatprep.subr.bf16.mxu0 0
      %2726 = vmatpush1.bf16.msra.mxu0 0
      %2727 = vmatprep.subr.bf16.mxu0 0
      %2728 = vmatpush1.bf16.msra.mxu0 0
      %2729 = vmatprep.subr.bf16.mxu0 0
      %2730 = vmatpush1.bf16.msra.mxu0 0
      %2731 = vmatprep.subr.bf16.mxu0 0
      %2732 = vmatpush1.bf16.msra.mxu0 0
      %2733 = vmatprep.subr.bf16.mxu0 0
      %2734 = vmatpush1.bf16.msra.mxu0 0
      %2735 = vmatprep.subr.bf16.mxu0 0
      %2736 = vmatpush1.bf16.msra.mxu0 0
      %2737 = vmatprep.subr.bf16.mxu0 0
      %2738 = vmatpush1.bf16.msra.mxu0 %v2674
      %2739 = vmatprep.subr.bf16.mxu0 0
      %2740 = vmatpush1.bf16.msra.mxu0 %v2673
      %2741 = vmatprep.subr.bf16.mxu0 0
      %2742 = vmatpush2.bf16.msra.mxu0 0
      %2743 = vmatprep.subr.bf16.mxu0 0
      %2744 = vmatpush2.bf16.msra.mxu0 0
      %2745 = vmatprep.subr.bf16.mxu0 0
      %2746 = vmatpush2.bf16.msra.mxu0 0
      %2747 = vmatprep.subr.bf16.mxu0 0
      %2748 = vmatpush2.bf16.msra.mxu0 0
      %2749 = vmatprep.subr.bf16.mxu0 0
      %2750 = vmatpush2.bf16.msra.mxu0 0
      %2751 = vmatprep.subr.bf16.mxu0 0
      %2752 = vmatpush2.bf16.msra.mxu0 0
      %2753 = vmatprep.subr.bf16.mxu0 0
      %2754 = vmatpush2.bf16.msra.mxu0 0
      %2755 = vmatprep.subr.bf16.mxu0 0
      %2756 = vmatpush2.bf16.msra.mxu0 0
      %2757 = vmatprep.mubr.bf16.mxu0 0
      %2758 = vmatmul.mubr.bf16.gmra.mxu0 %v2678
      %v2759 = vpop.f32.mrf.mxu0
      %v2760 = vadd.f32 %v2664, %v2759
      %v2761 = vpop.f32.mrf.mxu0
      %v2762 = vpop.f32.mrf.mxu0
      %v2763 = vadd.f32 %v2664, %v2762
      %v2764 = vpop.f32.mrf.mxu0
      %2765 = vmatprep.mubr.bf16.mxu0 0
      %2766 = vmatmul.mubr.bf16.gmra.mxu0 %v2681
      %v2767 = vpop.f32.mrf.mxu0
      %v2768 = vadd.f32 %v2664, %v2767
      %v2769 = vpop.f32.mrf.mxu0
      %v2770 = vpop.f32.mrf.mxu0
      %v2771 = vadd.f32 %v2664, %v2770
      %v2772 = vpop.f32.mrf.mxu0
      %2773 = vmatprep.mubr.bf16.mxu0 0
      %2774 = vmatmul.mubr.bf16.gmra.mxu0 %v2684
      %v2775 = vpop.f32.mrf.mxu0
      %v2776 = vadd.f32 %v2664, %v2775
      %v2777 = vpop.f32.mrf.mxu0
      %v2778 = vpop.f32.mrf.mxu0
      %v2779 = vadd.f32 %v2664, %v2778
      %v2780 = vpop.f32.mrf.mxu0
      %2781 = vmatprep.mubr.bf16.mxu0 0
      %2782 = vmatmul.mubr.bf16.gmra.mxu0 %v2687
      %v2783 = vpop.f32.mrf.mxu0
      %v2784 = vadd.f32 %v2664, %v2783
      %v2785 = vpop.f32.mrf.mxu0
      %v2786 = vpop.f32.mrf.mxu0
      %v2787 = vadd.f32 %v2664, %v2786
      %v2788 = vpop.f32.mrf.mxu0
      %2789 = vmatprep.mubr.bf16.mxu0 0
      %2790 = vmatmul.mubr.bf16.gmra.mxu0 %v2690
      %v2791 = vpop.f32.mrf.mxu0
      %v2792 = vadd.f32 %v2664, %v2791
      %v2793 = vpop.f32.mrf.mxu0
      %v2794 = vpop.f32.mrf.mxu0
      %v2795 = vadd.f32 %v2664, %v2794
      %v2796 = vpop.f32.mrf.mxu0
      %2797 = vmatprep.mubr.bf16.mxu0 0
      %2798 = vmatmul.mubr.bf16.gmra.mxu0 %v2693
      %v2799 = vpop.f32.mrf.mxu0
      %v2800 = vadd.f32 %v2664, %v2799
      %v2801 = vpop.f32.mrf.mxu0
      %v2802 = vpop.f32.mrf.mxu0
      %v2803 = vadd.f32 %v2664, %v2802
      %v2804 = vpop.f32.mrf.mxu0
      %2805 = vmatprep.mubr.bf16.mxu0 0
      %2806 = vmatmul.mubr.bf16.gmra.mxu0 %v2696
      %v2807 = vpop.f32.mrf.mxu0
      %v2808 = vadd.f32 %v2664, %v2807
      %v2809 = vpop.f32.mrf.mxu0
      %v2810 = vpop.f32.mrf.mxu0
      %v2811 = vadd.f32 %v2664, %v2810
      %v2812 = vpop.f32.mrf.mxu0
      %2813 = vmatprep.mubr.bf16.mxu0 0
      %2814 = vmatmul.mubr.bf16.gmra.mxu0 %v2699
      %v2815 = vpop.f32.mrf.mxu0
      %v2816 = vadd.f32 %v2664, %v2815
      %v2817 = vpop.f32.mrf.mxu0
      %v2818 = vpop.f32.mrf.mxu0
      %v2819 = vadd.f32 %v2664, %v2818
      %v2820 = vpop.f32.mrf.mxu0
      %2821 = vmatprep.mubr.bf16.mxu0 0
      %2822 = vmatmul.mubr.bf16.gmra.mxu0 %v2702
      %v2823 = vpop.f32.mrf.mxu0
      %v2824 = vadd.f32 %v2664, %v2823
      %v2825 = vpop.f32.mrf.mxu0
      %v2826 = vpop.f32.mrf.mxu0
      %v2827 = vadd.f32 %v2664, %v2826
      %v2828 = vpop.f32.mrf.mxu0
      %2829 = vmatprep.mubr.bf16.mxu0 0
      %2830 = vmatmul.mubr.bf16.gmra.mxu0 %v2705
      %v2831 = vpop.f32.mrf.mxu0
      %v2832 = vadd.f32 %v2664, %v2831
      %v2833 = vpop.f32.mrf.mxu0
      %v2834 = vpop.f32.mrf.mxu0
      %v2835 = vadd.f32 %v2664, %v2834
      %v2836 = vpop.f32.mrf.mxu0
      %2837 = vmatprep.mubr.bf16.mxu0 0
      %2838 = vmatmul.mubr.bf16.gmra.mxu0 %v2708
      %v2839 = vpop.f32.mrf.mxu0
      %v2840 = vadd.f32 %v2664, %v2839
      %v2841 = vpop.f32.mrf.mxu0
      %v2842 = vpop.f32.mrf.mxu0
      %v2843 = vadd.f32 %v2664, %v2842
      %v2844 = vpop.f32.mrf.mxu0
      %2845 = vmatprep.mubr.bf16.mxu0 0
      %2846 = vmatmul.mubr.bf16.gmra.mxu0 %v2711
      %v2847 = vpop.f32.mrf.mxu0
      %v2848 = vadd.f32 %v2664, %v2847
      %v2849 = vpop.f32.mrf.mxu0
      %v2850 = vpop.f32.mrf.mxu0
      %v2851 = vadd.f32 %v2664, %v2850
      %v2852 = vpop.f32.mrf.mxu0
      %2853 = vmatprep.mubr.bf16.mxu0 0
      %2854 = vmatmul.mubr.bf16.gmra.mxu0 %v2714
      %v2855 = vpop.f32.mrf.mxu0
      %v2856 = vadd.f32 %v2664, %v2855
      %v2857 = vpop.f32.mrf.mxu0
      %v2858 = vpop.f32.mrf.mxu0
      %v2859 = vadd.f32 %v2664, %v2858
      %v2860 = vpop.f32.mrf.mxu0
      %2861 = vmatprep.mubr.bf16.mxu0 0
      %2862 = vmatmul.mubr.bf16.gmra.mxu0 %v2717
      %v2863 = vpop.f32.mrf.mxu0
      %v2864 = vadd.f32 %v2664, %v2863
      %v2865 = vpop.f32.mrf.mxu0
      %v2866 = vpop.f32.mrf.mxu0
      %v2867 = vadd.f32 %v2664, %v2866
      %v2868 = vpop.f32.mrf.mxu0
      %2869 = vmatprep.mubr.bf16.mxu0 0
      %2870 = vmatmul.mubr.bf16.gmra.mxu0 %v2720
      %v2871 = vpop.f32.mrf.mxu0
      %v2872 = vadd.f32 %v2664, %v2871
      %v2873 = vpop.f32.mrf.mxu0
      %v2874 = vpop.f32.mrf.mxu0
      %v2875 = vadd.f32 %v2664, %v2874
      %v2876 = vpop.f32.mrf.mxu0
      %2877 = vmatprep.mubr.bf16.mxu0 0
      %2878 = vmatmul.mubr.bf16.gmra.mxu0 %v2723
      %v2879 = vpop.f32.mrf.mxu0
      %v2880 = vadd.f32 %v2664, %v2879
      %v2881 = vpop.f32.mrf.mxu0
      %v2882 = vpop.f32.mrf.mxu0
      %v2883 = vadd.f32 %v2664, %v2882
      %v2884 = vpop.f32.mrf.mxu0
      %2885 = vdwg.mxu0
      %v2886 = vmax.f32 %v2760, 0.0
      %v2887 = vmax.f32 %v2763, 0.0
      %v2888 = vmax.f32 %v2768, 0.0
      %v2889 = vmax.f32 %v2771, 0.0
      %v2890 = vmax.f32 %v2776, 0.0
      %v2891 = vmax.f32 %v2779, 0.0
      %v2892 = vmax.f32 %v2784, 0.0
      %v2893 = vmax.f32 %v2787, 0.0
      %v2894 = vmax.f32 %v2792, 0.0
      %v2895 = vmax.f32 %v2795, 0.0
      %v2896 = vmax.f32 %v2800, 0.0
      %v2897 = vmax.f32 %v2803, 0.0
      %v2898 = vmax.f32 %v2808, 0.0
      %v2899 = vmax.f32 %v2811, 0.0
      %v2900 = vmax.f32 %v2816, 0.0
      %v2901 = vmax.f32 %v2819, 0.0
      %v2902 = vmax.f32 %v2824, 0.0
      %v2903 = vmax.f32 %v2827, 0.0
      %v2904 = vmax.f32 %v2832, 0.0
      %v2905 = vmax.f32 %v2835, 0.0
      %v2906 = vmax.f32 %v2840, 0.0
      %v2907 = vmax.f32 %v2843, 0.0
      %v2908 = vmax.f32 %v2848, 0.0
      %v2909 = vmax.f32 %v2851, 0.0
      %v2910 = vmax.f32 %v2856, 0.0
      %v2911 = vmax.f32 %v2859, 0.0
      %v2912 = vmax.f32 %v2864, 0.0
      %v2913 = vmax.f32 %v2867, 0.0
      %v2914 = vmax.f32 %v2872, 0.0
      %v2915 = vmax.f32 %v2875, 0.0
      %v2916 = vmax.f32 %v2880, 0.0
      %v2917 = vmax.f32 %v2883, 0.0
      %v2918 = vlaneseq
      %v2919 = vshrl.u32 %v2918, 7
      %v2920 = vsub.s32 2, %v2919
      %v2921 = vrot.slane %v331, %v2920
      %v2922 = vmul.f32 %v2886, %v2921
      %v2923 = vmul.f32 %v2887, %v2921
      %v2924 = vmul.f32 %v2888, %v2921
      %v2925 = vmul.f32 %v2889, %v2921
      %v2926 = vmul.f32 %v2890, %v2921
      %v2927 = vmul.f32 %v2891, %v2921
      %v2928 = vmul.f32 %v2892, %v2921
      %v2929 = vmul.f32 %v2893, %v2921
      %v2930 = vmul.f32 %v2894, %v2921
      %v2931 = vmul.f32 %v2895, %v2921
      %v2932 = vmul.f32 %v2896, %v2921
      %v2933 = vmul.f32 %v2897, %v2921
      %v2934 = vmul.f32 %v2898, %v2921
      %v2935 = vmul.f32 %v2899, %v2921
      %v2936 = vmul.f32 %v2900, %v2921
      %v2937 = vmul.f32 %v2901, %v2921
      %v2938 = vmul.f32 %v2902, %v2921
      %v2939 = vmul.f32 %v2903, %v2921
      %v2940 = vmul.f32 %v2904, %v2921
      %v2941 = vmul.f32 %v2905, %v2921
      %v2942 = vmul.f32 %v2906, %v2921
      %v2943 = vmul.f32 %v2907, %v2921
      %v2944 = vmul.f32 %v2908, %v2921
      %v2945 = vmul.f32 %v2909, %v2921
      %v2946 = vmul.f32 %v2910, %v2921
      %v2947 = vmul.f32 %v2911, %v2921
      %v2948 = vmul.f32 %v2912, %v2921
      %v2949 = vmul.f32 %v2913, %v2921
      %v2950 = vmul.f32 %v2914, %v2921
      %v2951 = vmul.f32 %v2915, %v2921
      %v2952 = vmul.f32 %v2916, %v2921
      %v2953 = vmul.f32 %v2917, %v2921
      %v2954 = vlaneseq
      %v2955 = vshrl.u32 %v2954, 7
      %v2956 = vsub.s32 3, %v2955
      %v2957 = vrot.slane %v331, %v2956
      %v2958 = vadd.f32 %v2922, %v2957
      %v2959 = vadd.f32 %v2923, %v2957
      %v2960 = vadd.f32 %v2924, %v2957
      %v2961 = vadd.f32 %v2925, %v2957
      %v2962 = vadd.f32 %v2926, %v2957
      %v2963 = vadd.f32 %v2927, %v2957
      %v2964 = vadd.f32 %v2928, %v2957
      %v2965 = vadd.f32 %v2929, %v2957
      %v2966 = vadd.f32 %v2930, %v2957
      %v2967 = vadd.f32 %v2931, %v2957
      %v2968 = vadd.f32 %v2932, %v2957
      %v2969 = vadd.f32 %v2933, %v2957
      %v2970 = vadd.f32 %v2934, %v2957
      %v2971 = vadd.f32 %v2935, %v2957
      %v2972 = vadd.f32 %v2936, %v2957
      %v2973 = vadd.f32 %v2937, %v2957
      %v2974 = vadd.f32 %v2938, %v2957
      %v2975 = vadd.f32 %v2939, %v2957
      %v2976 = vadd.f32 %v2940, %v2957
      %v2977 = vadd.f32 %v2941, %v2957
      %v2978 = vadd.f32 %v2942, %v2957
      %v2979 = vadd.f32 %v2943, %v2957
      %v2980 = vadd.f32 %v2944, %v2957
      %v2981 = vadd.f32 %v2945, %v2957
      %v2982 = vadd.f32 %v2946, %v2957
      %v2983 = vadd.f32 %v2947, %v2957
      %v2984 = vadd.f32 %v2948, %v2957
      %v2985 = vadd.f32 %v2949, %v2957
      %v2986 = vadd.f32 %v2950, %v2957
      %v2987 = vadd.f32 %v2951, %v2957
      %v2988 = vadd.f32 %v2952, %v2957
      %v2989 = vadd.f32 %v2953, %v2957
      %v2990 = vld [vmem:[%s259] sm:$0xf]
      %v2991 = vld [vmem:[%s259 + $0x4] sm:$0xf]
      %v2992 = vld [vmem:[%s259 + $0x8] sm:$0xf]
      %v2993 = vld [vmem:[%s259 + $0xc] sm:$0xf]
      %v2994 = vld [vmem:[%s259 + $0x10] sm:$0xf]
      %v2995 = vld [vmem:[%s259 + $0x14] sm:$0xf]
      %v2996 = vld [vmem:[%s259 + $0x18] sm:$0xf]
      %v2997 = vld [vmem:[%s259 + $0x1c] sm:$0xf]
      %v2998 = vld [vmem:[%s259 + $0x20] sm:$0xf]
      %v2999 = vld [vmem:[%s259 + $0x24] sm:$0xf]
      %v3000 = vld [vmem:[%s259 + $0x28] sm:$0xf]
      %v3001 = vld [vmem:[%s259 + $0x2c] sm:$0xf]
      %v3002 = vld [vmem:[%s259 + $0x30] sm:$0xf]
      %v3003 = vld [vmem:[%s259 + $0x34] sm:$0xf]
      %v3004 = vld [vmem:[%s259 + $0x38] sm:$0xf]
      %v3005 = vld [vmem:[%s259 + $0x3c] sm:$0xf]
      %v3006 = vld [vmem:[%s259 + $0x40] sm:$0xf]
      %v3007 = vld [vmem:[%s259 + $0x44] sm:$0xf]
      %v3008 = vld [vmem:[%s259 + $0x48] sm:$0xf]
      %v3009 = vld [vmem:[%s259 + $0x4c] sm:$0xf]
      %v3010 = vld [vmem:[%s259 + $0x50] sm:$0xf]
      %v3011 = vld [vmem:[%s259 + $0x54] sm:$0xf]
      %v3012 = vld [vmem:[%s259 + $0x58] sm:$0xf]
      %v3013 = vld [vmem:[%s259 + $0x5c] sm:$0xf]
      %v3014 = vld [vmem:[%s259 + $0x60] sm:$0xf]
      %v3015 = vld [vmem:[%s259 + $0x64] sm:$0xf]
      %v3016 = vld [vmem:[%s259 + $0x68] sm:$0xf]
      %v3017 = vld [vmem:[%s259 + $0x6c] sm:$0xf]
      %v3018 = vld [vmem:[%s259 + $0x70] sm:$0xf]
      %v3019 = vld [vmem:[%s259 + $0x74] sm:$0xf]
      %v3020 = vld [vmem:[%s259 + $0x78] sm:$0xf]
      %v3021 = vld [vmem:[%s259 + $0x7c] sm:$0xf]
      %v3022 = vunpack.c.l.bf16 %v2990
      %v3023 = vunpack.c.l.bf16 %v2991
      %v3024 = vunpack.c.l.bf16 %v2992
      %v3025 = vunpack.c.l.bf16 %v2993
      %v3026 = vunpack.c.l.bf16 %v2994
      %v3027 = vunpack.c.l.bf16 %v2995
      %v3028 = vunpack.c.l.bf16 %v2996
      %v3029 = vunpack.c.l.bf16 %v2997
      %v3030 = vunpack.c.l.bf16 %v2998
      %v3031 = vunpack.c.l.bf16 %v2999
      %v3032 = vunpack.c.l.bf16 %v3000
      %v3033 = vunpack.c.l.bf16 %v3001
      %v3034 = vunpack.c.l.bf16 %v3002
      %v3035 = vunpack.c.l.bf16 %v3003
      %v3036 = vunpack.c.l.bf16 %v3004
      %v3037 = vunpack.c.l.bf16 %v3005
      %v3038 = vunpack.c.l.bf16 %v3006
      %v3039 = vunpack.c.l.bf16 %v3007
      %v3040 = vunpack.c.l.bf16 %v3008
      %v3041 = vunpack.c.l.bf16 %v3009
      %v3042 = vunpack.c.l.bf16 %v3010
      %v3043 = vunpack.c.l.bf16 %v3011
      %v3044 = vunpack.c.l.bf16 %v3012
      %v3045 = vunpack.c.l.bf16 %v3013
      %v3046 = vunpack.c.l.bf16 %v3014
      %v3047 = vunpack.c.l.bf16 %v3015
      %v3048 = vunpack.c.l.bf16 %v3016
      %v3049 = vunpack.c.l.bf16 %v3017
      %v3050 = vunpack.c.l.bf16 %v3018
      %v3051 = vunpack.c.l.bf16 %v3019
      %v3052 = vunpack.c.l.bf16 %v3020
      %v3053 = vunpack.c.l.bf16 %v3021
      %v3054 = vadd.f32 %v2958, %v3022
      %v3055 = vadd.f32 %v2959, %v3023
      %v3056 = vadd.f32 %v2960, %v3024
      %v3057 = vadd.f32 %v2961, %v3025
      %v3058 = vadd.f32 %v2962, %v3026
      %v3059 = vadd.f32 %v2963, %v3027
      %v3060 = vadd.f32 %v2964, %v3028
      %v3061 = vadd.f32 %v2965, %v3029
      %v3062 = vadd.f32 %v2966, %v3030
      %v3063 = vadd.f32 %v2967, %v3031
      %v3064 = vadd.f32 %v2968, %v3032
      %v3065 = vadd.f32 %v2969, %v3033
      %v3066 = vadd.f32 %v2970, %v3034
      %v3067 = vadd.f32 %v2971, %v3035
      %v3068 = vadd.f32 %v2972, %v3036
      %v3069 = vadd.f32 %v2973, %v3037
      %v3070 = vadd.f32 %v2974, %v3038
      %v3071 = vadd.f32 %v2975, %v3039
      %v3072 = vadd.f32 %v2976, %v3040
      %v3073 = vadd.f32 %v2977, %v3041
      %v3074 = vadd.f32 %v2978, %v3042
      %v3075 = vadd.f32 %v2979, %v3043
      %v3076 = vadd.f32 %v2980, %v3044
      %v3077 = vadd.f32 %v2981, %v3045
      %v3078 = vadd.f32 %v2982, %v3046
      %v3079 = vadd.f32 %v2983, %v3047
      %v3080 = vadd.f32 %v2984, %v3048
      %v3081 = vadd.f32 %v2985, %v3049
      %v3082 = vadd.f32 %v2986, %v3050
      %v3083 = vadd.f32 %v2987, %v3051
      %v3084 = vadd.f32 %v2988, %v3052
      %v3085 = vadd.f32 %v2989, %v3053
      %v3086 = vsel %vm813, %v3054, -inf
      %v3087 = vrot.slane %v3086, 4
      %v3088 = vmax.f32 %v3086, %v3087
      %v3089 = vrot.slane %v3088, 2
      %v3090 = vmax.f32 %v3088, %v3089
      %v3091 = vrot.slane %v3090, 1
      %v3092 = vmax.f32 %v3090, %v3091
      %v3093 = vsel %vm813, %v3055, -inf
      %v3094 = vrot.slane %v3093, 4
      %v3095 = vmax.f32 %v3093, %v3094
      %v3096 = vrot.slane %v3095, 2
      %v3097 = vmax.f32 %v3095, %v3096
      %v3098 = vrot.slane %v3097, 1
      %v3099 = vmax.f32 %v3097, %v3098
      %v3100 = vsel %vm813, %v3056, -inf
      %v3101 = vrot.slane %v3100, 4
      %v3102 = vmax.f32 %v3100, %v3101
      %v3103 = vrot.slane %v3102, 2
      %v3104 = vmax.f32 %v3102, %v3103
      %v3105 = vrot.slane %v3104, 1
      %v3106 = vmax.f32 %v3104, %v3105
      %v3107 = vsel %vm813, %v3057, -inf
      %v3108 = vrot.slane %v3107, 4
      %v3109 = vmax.f32 %v3107, %v3108
      %v3110 = vrot.slane %v3109, 2
      %v3111 = vmax.f32 %v3109, %v3110
      %v3112 = vrot.slane %v3111, 1
      %v3113 = vmax.f32 %v3111, %v3112
      %v3114 = vsel %vm813, %v3058, -inf
      %v3115 = vrot.slane %v3114, 4
      %v3116 = vmax.f32 %v3114, %v3115
      %v3117 = vrot.slane %v3116, 2
      %v3118 = vmax.f32 %v3116, %v3117
      %v3119 = vrot.slane %v3118, 1
      %v3120 = vmax.f32 %v3118, %v3119
      %v3121 = vsel %vm813, %v3059, -inf
      %v3122 = vrot.slane %v3121, 4
      %v3123 = vmax.f32 %v3121, %v3122
      %v3124 = vrot.slane %v3123, 2
      %v3125 = vmax.f32 %v3123, %v3124
      %v3126 = vrot.slane %v3125, 1
      %v3127 = vmax.f32 %v3125, %v3126
      %v3128 = vsel %vm813, %v3060, -inf
      %v3129 = vrot.slane %v3128, 4
      %v3130 = vmax.f32 %v3128, %v3129
      %v3131 = vrot.slane %v3130, 2
      %v3132 = vmax.f32 %v3130, %v3131
      %v3133 = vrot.slane %v3132, 1
      %v3134 = vmax.f32 %v3132, %v3133
      %v3135 = vsel %vm813, %v3061, -inf
      %v3136 = vrot.slane %v3135, 4
      %v3137 = vmax.f32 %v3135, %v3136
      %v3138 = vrot.slane %v3137, 2
      %v3139 = vmax.f32 %v3137, %v3138
      %v3140 = vrot.slane %v3139, 1
      %v3141 = vmax.f32 %v3139, %v3140
      %v3142 = vsel %vm813, %v3062, -inf
      %v3143 = vrot.slane %v3142, 4
      %v3144 = vmax.f32 %v3142, %v3143
      %v3145 = vrot.slane %v3144, 2
      %v3146 = vmax.f32 %v3144, %v3145
      %v3147 = vrot.slane %v3146, 1
      %v3148 = vmax.f32 %v3146, %v3147
      %v3149 = vsel %vm813, %v3063, -inf
      %v3150 = vrot.slane %v3149, 4
      %v3151 = vmax.f32 %v3149, %v3150
      %v3152 = vrot.slane %v3151, 2
      %v3153 = vmax.f32 %v3151, %v3152
      %v3154 = vrot.slane %v3153, 1
      %v3155 = vmax.f32 %v3153, %v3154
      %v3156 = vsel %vm813, %v3064, -inf
      %v3157 = vrot.slane %v3156, 4
      %v3158 = vmax.f32 %v3156, %v3157
      %v3159 = vrot.slane %v3158, 2
      %v3160 = vmax.f32 %v3158, %v3159
      %v3161 = vrot.slane %v3160, 1
      %v3162 = vmax.f32 %v3160, %v3161
      %v3163 = vsel %vm813, %v3065, -inf
      %v3164 = vrot.slane %v3163, 4
      %v3165 = vmax.f32 %v3163, %v3164
      %v3166 = vrot.slane %v3165, 2
      %v3167 = vmax.f32 %v3165, %v3166
      %v3168 = vrot.slane %v3167, 1
      %v3169 = vmax.f32 %v3167, %v3168
      %v3170 = vsel %vm813, %v3066, -inf
      %v3171 = vrot.slane %v3170, 4
      %v3172 = vmax.f32 %v3170, %v3171
      %v3173 = vrot.slane %v3172, 2
      %v3174 = vmax.f32 %v3172, %v3173
      %v3175 = vrot.slane %v3174, 1
      %v3176 = vmax.f32 %v3174, %v3175
      %v3177 = vsel %vm813, %v3067, -inf
      %v3178 = vrot.slane %v3177, 4
      %v3179 = vmax.f32 %v3177, %v3178
      %v3180 = vrot.slane %v3179, 2
      %v3181 = vmax.f32 %v3179, %v3180
      %v3182 = vrot.slane %v3181, 1
      %v3183 = vmax.f32 %v3181, %v3182
      %v3184 = vsel %vm813, %v3068, -inf
      %v3185 = vrot.slane %v3184, 4
      %v3186 = vmax.f32 %v3184, %v3185
      %v3187 = vrot.slane %v3186, 2
      %v3188 = vmax.f32 %v3186, %v3187
      %v3189 = vrot.slane %v3188, 1
      %v3190 = vmax.f32 %v3188, %v3189
      %v3191 = vsel %vm813, %v3069, -inf
      %v3192 = vrot.slane %v3191, 4
      %v3193 = vmax.f32 %v3191, %v3192
      %v3194 = vrot.slane %v3193, 2
      %v3195 = vmax.f32 %v3193, %v3194
      %v3196 = vrot.slane %v3195, 1
      %v3197 = vmax.f32 %v3195, %v3196
      %v3198 = vsel %vm813, %v3070, -inf
      %v3199 = vrot.slane %v3198, 4
      %v3200 = vmax.f32 %v3198, %v3199
      %v3201 = vrot.slane %v3200, 2
      %v3202 = vmax.f32 %v3200, %v3201
      %v3203 = vrot.slane %v3202, 1
      %v3204 = vmax.f32 %v3202, %v3203
      %v3205 = vsel %vm813, %v3071, -inf
      %v3206 = vrot.slane %v3205, 4
      %v3207 = vmax.f32 %v3205, %v3206
      %v3208 = vrot.slane %v3207, 2
      %v3209 = vmax.f32 %v3207, %v3208
      %v3210 = vrot.slane %v3209, 1
      %v3211 = vmax.f32 %v3209, %v3210
      %v3212 = vsel %vm813, %v3072, -inf
      %v3213 = vrot.slane %v3212, 4
      %v3214 = vmax.f32 %v3212, %v3213
      %v3215 = vrot.slane %v3214, 2
      %v3216 = vmax.f32 %v3214, %v3215
      %v3217 = vrot.slane %v3216, 1
      %v3218 = vmax.f32 %v3216, %v3217
      %v3219 = vsel %vm813, %v3073, -inf
      %v3220 = vrot.slane %v3219, 4
      %v3221 = vmax.f32 %v3219, %v3220
      %v3222 = vrot.slane %v3221, 2
      %v3223 = vmax.f32 %v3221, %v3222
      %v3224 = vrot.slane %v3223, 1
      %v3225 = vmax.f32 %v3223, %v3224
      %v3226 = vsel %vm813, %v3074, -inf
      %v3227 = vrot.slane %v3226, 4
      %v3228 = vmax.f32 %v3226, %v3227
      %v3229 = vrot.slane %v3228, 2
      %v3230 = vmax.f32 %v3228, %v3229
      %v3231 = vrot.slane %v3230, 1
      %v3232 = vmax.f32 %v3230, %v3231
      %v3233 = vsel %vm813, %v3075, -inf
      %v3234 = vrot.slane %v3233, 4
      %v3235 = vmax.f32 %v3233, %v3234
      %v3236 = vrot.slane %v3235, 2
      %v3237 = vmax.f32 %v3235, %v3236
      %v3238 = vrot.slane %v3237, 1
      %v3239 = vmax.f32 %v3237, %v3238
      %v3240 = vsel %vm813, %v3076, -inf
      %v3241 = vrot.slane %v3240, 4
      %v3242 = vmax.f32 %v3240, %v3241
      %v3243 = vrot.slane %v3242, 2
      %v3244 = vmax.f32 %v3242, %v3243
      %v3245 = vrot.slane %v3244, 1
      %v3246 = vmax.f32 %v3244, %v3245
      %v3247 = vsel %vm813, %v3077, -inf
      %v3248 = vrot.slane %v3247, 4
      %v3249 = vmax.f32 %v3247, %v3248
      %v3250 = vrot.slane %v3249, 2
      %v3251 = vmax.f32 %v3249, %v3250
      %v3252 = vrot.slane %v3251, 1
      %v3253 = vmax.f32 %v3251, %v3252
      %v3254 = vsel %vm813, %v3078, -inf
      %v3255 = vrot.slane %v3254, 4
      %v3256 = vmax.f32 %v3254, %v3255
      %v3257 = vrot.slane %v3256, 2
      %v3258 = vmax.f32 %v3256, %v3257
      %v3259 = vrot.slane %v3258, 1
      %v3260 = vmax.f32 %v3258, %v3259
      %v3261 = vsel %vm813, %v3079, -inf
      %v3262 = vrot.slane %v3261, 4
      %v3263 = vmax.f32 %v3261, %v3262
      %v3264 = vrot.slane %v3263, 2
      %v3265 = vmax.f32 %v3263, %v3264
      %v3266 = vrot.slane %v3265, 1
      %v3267 = vmax.f32 %v3265, %v3266
      %v3268 = vsel %vm813, %v3080, -inf
      %v3269 = vrot.slane %v3268, 4
      %v3270 = vmax.f32 %v3268, %v3269
      %v3271 = vrot.slane %v3270, 2
      %v3272 = vmax.f32 %v3270, %v3271
      %v3273 = vrot.slane %v3272, 1
      %v3274 = vmax.f32 %v3272, %v3273
      %v3275 = vsel %vm813, %v3081, -inf
      %v3276 = vrot.slane %v3275, 4
      %v3277 = vmax.f32 %v3275, %v3276
      %v3278 = vrot.slane %v3277, 2
      %v3279 = vmax.f32 %v3277, %v3278
      %v3280 = vrot.slane %v3279, 1
      %v3281 = vmax.f32 %v3279, %v3280
      %v3282 = vsel %vm813, %v3082, -inf
      %v3283 = vrot.slane %v3282, 4
      %v3284 = vmax.f32 %v3282, %v3283
      %v3285 = vrot.slane %v3284, 2
      %v3286 = vmax.f32 %v3284, %v3285
      %v3287 = vrot.slane %v3286, 1
      %v3288 = vmax.f32 %v3286, %v3287
      %v3289 = vsel %vm813, %v3083, -inf
      %v3290 = vrot.slane %v3289, 4
      %v3291 = vmax.f32 %v3289, %v3290
      %v3292 = vrot.slane %v3291, 2
      %v3293 = vmax.f32 %v3291, %v3292
      %v3294 = vrot.slane %v3293, 1
      %v3295 = vmax.f32 %v3293, %v3294
      %v3296 = vsel %vm813, %v3084, -inf
      %v3297 = vrot.slane %v3296, 4
      %v3298 = vmax.f32 %v3296, %v3297
      %v3299 = vrot.slane %v3298, 2
      %v3300 = vmax.f32 %v3298, %v3299
      %v3301 = vrot.slane %v3300, 1
      %v3302 = vmax.f32 %v3300, %v3301
      %v3303 = vsel %vm813, %v3085, -inf
      %v3304 = vrot.slane %v3303, 4
      %v3305 = vmax.f32 %v3303, %v3304
      %v3306 = vrot.slane %v3305, 2
      %v3307 = vmax.f32 %v3305, %v3306
      %v3308 = vrot.slane %v3307, 1
      %v3309 = vmax.f32 %v3307, %v3308
      %v3310 = vpack.c.bf16 %v3092, %v3092
      %v3311 = vpack.c.bf16 %v3099, %v3099
      %v3312 = vpack.c.bf16 %v3106, %v3106
      %v3313 = vpack.c.bf16 %v3113, %v3113
      %v3314 = vpack.c.bf16 %v3120, %v3120
      %v3315 = vpack.c.bf16 %v3127, %v3127
      %v3316 = vpack.c.bf16 %v3134, %v3134
      %v3317 = vpack.c.bf16 %v3141, %v3141
      %v3318 = vpack.c.bf16 %v3148, %v3148
      %v3319 = vpack.c.bf16 %v3155, %v3155
      %v3320 = vpack.c.bf16 %v3162, %v3162
      %v3321 = vpack.c.bf16 %v3169, %v3169
      %v3322 = vpack.c.bf16 %v3176, %v3176
      %v3323 = vpack.c.bf16 %v3183, %v3183
      %v3324 = vpack.c.bf16 %v3190, %v3190
      %v3325 = vpack.c.bf16 %v3197, %v3197
      %v3326 = vpack.c.bf16 %v3204, %v3204
      %v3327 = vpack.c.bf16 %v3211, %v3211
      %v3328 = vpack.c.bf16 %v3218, %v3218
      %v3329 = vpack.c.bf16 %v3225, %v3225
      %v3330 = vpack.c.bf16 %v3232, %v3232
      %v3331 = vpack.c.bf16 %v3239, %v3239
      %v3332 = vpack.c.bf16 %v3246, %v3246
      %v3333 = vpack.c.bf16 %v3253, %v3253
      %v3334 = vpack.c.bf16 %v3260, %v3260
      %v3335 = vpack.c.bf16 %v3267, %v3267
      %v3336 = vpack.c.bf16 %v3274, %v3274
      %v3337 = vpack.c.bf16 %v3281, %v3281
      %v3338 = vpack.c.bf16 %v3288, %v3288
      %v3339 = vpack.c.bf16 %v3295, %v3295
      %v3340 = vpack.c.bf16 %v3302, %v3302
      %v3341 = vpack.c.bf16 %v3309, %v3309
      %v3342 = vlaneseq
      %v3343 = vshrl.u32 %v3342, 7
      %v3344 = vsub.s32 4, %v3343
      %v3345 = vrot.slane %v331, %v3344
      %v3378 = vunpack.c.l.b16 %v3310
      %v3379 = vunpack.c.l.b16 %v3311
      %v3380 = vunpack.c.l.b16 %v3312
      %v3381 = vunpack.c.l.b16 %v3313
      %v3382 = vunpack.c.l.b16 %v3314
      %v3383 = vunpack.c.l.b16 %v3315
      %v3384 = vunpack.c.l.b16 %v3316
      %v3385 = vunpack.c.l.b16 %v3317
      %v3386 = vunpack.c.l.b16 %v3318
      %v3387 = vunpack.c.l.b16 %v3319
      %v3388 = vunpack.c.l.b16 %v3320
      %v3389 = vunpack.c.l.b16 %v3321
      %v3390 = vunpack.c.l.b16 %v3322
      %v3391 = vunpack.c.l.b16 %v3323
      %v3392 = vunpack.c.l.b16 %v3324
      %v3393 = vunpack.c.l.b16 %v3325
      %v3394 = vunpack.c.l.b16 %v3326
      %v3395 = vunpack.c.l.b16 %v3327
      %v3396 = vunpack.c.l.b16 %v3328
      %v3397 = vunpack.c.l.b16 %v3329
      %v3398 = vunpack.c.l.b16 %v3330
      %v3399 = vunpack.c.l.b16 %v3331
      %v3400 = vunpack.c.l.b16 %v3332
      %v3401 = vunpack.c.l.b16 %v3333
      %v3402 = vunpack.c.l.b16 %v3334
      %v3403 = vunpack.c.l.b16 %v3335
      %v3404 = vunpack.c.l.b16 %v3336
      %v3405 = vunpack.c.l.b16 %v3337
      %v3406 = vunpack.c.l.b16 %v3338
      %v3407 = vunpack.c.l.b16 %v3339
      %v3408 = vunpack.c.l.b16 %v3340
      %v3409 = vunpack.c.l.b16 %v3341
      %vm3410 = vcmask 1041409
      %v3411 = vsel %vm3410, %v3379, %v3378
      %vm3412 = vcmask 1042434
      %v3413 = vsel %vm3412, %v3380, %v3411
      %vm3414 = vcmask 1043459
      %v3415 = vsel %vm3414, %v3381, %v3413
      %vm3416 = vcmask 1044484
      %v3417 = vsel %vm3416, %v3382, %v3415
      %vm3418 = vcmask 1045509
      %v3419 = vsel %vm3418, %v3383, %v3417
      %vm3420 = vcmask 1046534
      %v3421 = vsel %vm3420, %v3384, %v3419
      %vm3422 = vcmask 1047559
      %v3423 = vsel %vm3422, %v3385, %v3421
      %v3424 = vsel %vm3410, %v3387, %v3386
      %v3425 = vsel %vm3412, %v3388, %v3424
      %v3426 = vsel %vm3414, %v3389, %v3425
      %v3427 = vsel %vm3416, %v3390, %v3426
      %v3428 = vsel %vm3418, %v3391, %v3427
      %v3429 = vsel %vm3420, %v3392, %v3428
      %v3430 = vsel %vm3422, %v3393, %v3429
      %v3431 = vsel %vm3410, %v3395, %v3394
      %v3432 = vsel %vm3412, %v3396, %v3431
      %v3433 = vsel %vm3414, %v3397, %v3432
      %v3434 = vsel %vm3416, %v3398, %v3433
      %v3435 = vsel %vm3418, %v3399, %v3434
      %v3436 = vsel %vm3420, %v3400, %v3435
      %v3437 = vsel %vm3422, %v3401, %v3436
      %v3438 = vsel %vm3410, %v3403, %v3402
      %v3439 = vsel %vm3412, %v3404, %v3438
      %v3440 = vsel %vm3414, %v3405, %v3439
      %v3441 = vsel %vm3416, %v3406, %v3440
      %v3442 = vsel %vm3418, %v3407, %v3441
      %v3443 = vsel %vm3420, %v3408, %v3442
      %v3444 = vsel %vm3422, %v3409, %v3443
      %v3445 = vpack.c.b16 %v3430, %v3423
      %v3446 = vpack.c.b16 %v3444, %v3437
      %v3451 = vunpack.c.l.b16 %v322
      %v3452 = vunpack.c.l.b16 %v323
      %v3453 = vunpack.c.l.b16 %v324
      %v3454 = vunpack.c.l.b16 %v325
      %v3455 = vpack.c.b16 %v3452, %v3451
      %v3456 = vpack.c.b16 %v3454, %v3453
      %v3460 = vsel %vm813, %v3445, 0
      %v3463 = vsel %vm813, %v3446, 0
      %3465 = vmatprep.subr.bf16.mxu0 0
      %3466 = vmatpush1.bf16.msra.mxu0 0
      %3467 = vmatprep.subr.bf16.mxu0 0
      %3468 = vmatpush1.bf16.msra.mxu0 0
      %3469 = vmatprep.subr.bf16.mxu0 0
      %3470 = vmatpush1.bf16.msra.mxu0 0
      %3471 = vmatprep.subr.bf16.mxu0 0
      %3472 = vmatpush1.bf16.msra.mxu0 0
      %3473 = vmatprep.subr.bf16.mxu0 0
      %3474 = vmatpush1.bf16.msra.mxu0 0
      %3475 = vmatprep.subr.bf16.mxu0 0
      %3476 = vmatpush1.bf16.msra.mxu0 0
      %3477 = vmatprep.subr.bf16.mxu0 0
      %3478 = vmatpush1.bf16.msra.mxu0 %v3456
      %3479 = vmatprep.subr.bf16.mxu0 0
      %3480 = vmatpush1.bf16.msra.mxu0 %v3455
      %3481 = vmatprep.subr.bf16.mxu0 0
      %3482 = vmatpush2.bf16.msra.mxu0 0
      %3483 = vmatprep.subr.bf16.mxu0 0
      %3484 = vmatpush2.bf16.msra.mxu0 0
      %3485 = vmatprep.subr.bf16.mxu0 0
      %3486 = vmatpush2.bf16.msra.mxu0 0
      %3487 = vmatprep.subr.bf16.mxu0 0
      %3488 = vmatpush2.bf16.msra.mxu0 0
      %3489 = vmatprep.subr.bf16.mxu0 0
      %3490 = vmatpush2.bf16.msra.mxu0 0
      %3491 = vmatprep.subr.bf16.mxu0 0
      %3492 = vmatpush2.bf16.msra.mxu0 0
      %3493 = vmatprep.subr.bf16.mxu0 0
      %3494 = vmatpush2.bf16.msra.mxu0 0
      %3495 = vmatprep.subr.bf16.mxu0 0
      %3496 = vmatpush2.bf16.msra.mxu0 0
      %3497 = vmatprep.mubr.bf16.mxu0 0
      %3498 = vmatmul.mubr.bf16.gmra.mxu0 %v3460
      %v3499 = vpop.f32.mrf.mxu0
      %v3500 = vadd.f32 %v3345, %v3499
      %v3501 = vpop.f32.mrf.mxu0
      %v3502 = vpop.f32.mrf.mxu0
      %v3503 = vadd.f32 %v3345, %v3502
      %v3504 = vpop.f32.mrf.mxu0
      %3505 = vmatprep.mubr.bf16.mxu0 0
      %3506 = vmatmul.mubr.bf16.gmra.mxu0 %v3463
      %v3507 = vpop.f32.mrf.mxu0
      %v3508 = vadd.f32 %v3345, %v3507
      %v3509 = vpop.f32.mrf.mxu0
      %v3510 = vpop.f32.mrf.mxu0
      %v3511 = vadd.f32 %v3345, %v3510
      %v3512 = vpop.f32.mrf.mxu0
      %3513 = vdwg.mxu0
      %v3514 = vmax.f32 %v3500, 0.0
      %v3515 = vmax.f32 %v3503, 0.0
      %v3516 = vmax.f32 %v3508, 0.0
      %v3517 = vmax.f32 %v3511, 0.0
      %v3518 = vpack.c.bf16 %v3515, %v3514
      %v3519 = vpack.c.bf16 %v3517, %v3516
      %v3520 = vlaneseq
      %v3521 = vshrl.u32 %v3520, 7
      %v3522 = vsub.s32 5, %v3521
      %v3523 = vrot.slane %v331, %v3522
      %v3528 = vunpack.c.l.b16 %v326
      %v3529 = vunpack.c.l.b16 %v327
      %v3530 = vunpack.c.l.b16 %v328
      %v3531 = vunpack.c.l.b16 %v329
      %v3532 = vpack.c.b16 %v3529, %v3528
      %v3533 = vpack.c.b16 %v3531, %v3530
      %v3537 = vsel %vm813, %v3518, 0
      %v3540 = vsel %vm813, %v3519, 0
      %3542 = vmatprep.subr.bf16.mxu0 0
      %3543 = vmatpush1.bf16.msra.mxu0 0
      %3544 = vmatprep.subr.bf16.mxu0 0
      %3545 = vmatpush1.bf16.msra.mxu0 0
      %3546 = vmatprep.subr.bf16.mxu0 0
      %3547 = vmatpush1.bf16.msra.mxu0 0
      %3548 = vmatprep.subr.bf16.mxu0 0
      %3549 = vmatpush1.bf16.msra.mxu0 0
      %3550 = vmatprep.subr.bf16.mxu0 0
      %3551 = vmatpush1.bf16.msra.mxu0 0
      %3552 = vmatprep.subr.bf16.mxu0 0
      %3553 = vmatpush1.bf16.msra.mxu0 0
      %3554 = vmatprep.subr.bf16.mxu0 0
      %3555 = vmatpush1.bf16.msra.mxu0 %v3533
      %3556 = vmatprep.subr.bf16.mxu0 0
      %3557 = vmatpush1.bf16.msra.mxu0 %v3532
      %3558 = vmatprep.subr.bf16.mxu0 0
      %3559 = vmatpush2.bf16.msra.mxu0 0
      %3560 = vmatprep.subr.bf16.mxu0 0
      %3561 = vmatpush2.bf16.msra.mxu0 0
      %3562 = vmatprep.subr.bf16.mxu0 0
      %3563 = vmatpush2.bf16.msra.mxu0 0
      %3564 = vmatprep.subr.bf16.mxu0 0
      %3565 = vmatpush2.bf16.msra.mxu0 0
      %3566 = vmatprep.subr.bf16.mxu0 0
      %3567 = vmatpush2.bf16.msra.mxu0 0
      %3568 = vmatprep.subr.bf16.mxu0 0
      %3569 = vmatpush2.bf16.msra.mxu0 0
      %3570 = vmatprep.subr.bf16.mxu0 0
      %3571 = vmatpush2.bf16.msra.mxu0 0
      %3572 = vmatprep.subr.bf16.mxu0 0
      %3573 = vmatpush2.bf16.msra.mxu0 0
      %3574 = vmatprep.mubr.bf16.mxu0 0
      %3575 = vmatmul.mubr.bf16.gmra.mxu0 %v3537
      %v3576 = vpop.f32.mrf.mxu0
      %v3577 = vadd.f32 %v3523, %v3576
      %v3578 = vpop.f32.mrf.mxu0
      %v3579 = vpop.f32.mrf.mxu0
      %v3580 = vadd.f32 %v3523, %v3579
      %v3581 = vpop.f32.mrf.mxu0
      %3582 = vmatprep.mubr.bf16.mxu0 0
      %3583 = vmatmul.mubr.bf16.gmra.mxu0 %v3540
      %v3584 = vpop.f32.mrf.mxu0
      %v3585 = vadd.f32 %v3523, %v3584
      %v3586 = vpop.f32.mrf.mxu0
      %v3587 = vpop.f32.mrf.mxu0
      %v3588 = vadd.f32 %v3523, %v3587
      %v3589 = vpop.f32.mrf.mxu0
      %3590 = vdwg.mxu0
      %v3591 = vxor.u32 %v3577, 2147483648
      %v3592 = vxor.u32 %v3580, 2147483648
      %v3593 = vxor.u32 %v3585, 2147483648
      %v3594 = vxor.u32 %v3588, 2147483648
      %v3595 = vmul.f32 %v3591, 1.442695
      %v3596 = vpow.pop %v3595
      %v3597 = vmul.f32 %v3592, 1.442695
      %v3598 = vpow.pop %v3597
      %v3599 = vmul.f32 %v3593, 1.442695
      %v3600 = vpow.pop %v3599
      %v3601 = vmul.f32 %v3594, 1.442695
      %v3602 = vpow.pop %v3601
      %v3603 = vadd.f32 %v3596, 1.0
      %v3604 = vadd.f32 %v3598, 1.0
      %v3605 = vadd.f32 %v3600, 1.0
      %v3606 = vadd.f32 %v3602, 1.0
      %v3607 = vrcp.pop %v3603
      %v3608 = vmul.f32 1.0, %v3607
      %v3609 = vrcp.pop %v3604
      %v3610 = vmul.f32 1.0, %v3609
      %v3611 = vrcp.pop %v3605
      %v3612 = vmul.f32 1.0, %v3611
      %v3613 = vrcp.pop %v3606
      %v3614 = vmul.f32 1.0, %v3613
      %3615 = vst.msk [vmem:[%s264] sm:$0xff] %vm813, %v3608
      %3616 = vst.msk [vmem:[%s264 + $0x8] sm:$0xff] %vm813, %v3610
      %3617 = vst.msk [vmem:[%s264 + $0x10] sm:$0xff] %vm813, %v3612
      %3618 = vst.msk [vmem:[%s264 + $0x18] sm:$0xff] %vm813, %v3614
      %p3619 = scmp.lt.s32.totalorder %s16, 2
      %s3620 = scalar_select %p3619, %s16, 2
      %s3621 = smul.addr %s3620, 4
      %s3622 = smul.addr %s3621, 8
      %s3623 = scalar_lea.vmem %s5, %s3622
      // Predicated region
      $region41: #{gin_predictor_forward.1} parent=39 // pred_check
        %p3624 = pneg %p154
      $region42: #{gin_predictor_forward.1} parent=39 // pred_check_branch
        %3626 = sbr.rel (%p3624) target = $region44
      $region43: #{gin_predictor_forward.1} parent=39 // pred_region
        _
      $region44: #{gin_predictor_forward.1} parent=39 // pred_fallthru
        _
    $region40: #{gin_predictor_forward.1} parent=5 // pred_fallthru
      _
    %p3627 = scmp.le.s32.totalorder 2, %s11
    // Predicated region
    $region45: #{gin_predictor_forward.1} parent=5 // pred_check
      %p3628 = pneg %p3627
    $region46: #{gin_predictor_forward.1} parent=5 // pred_check_branch
      %3630 = sbr.rel (%p3628) target = $region48
    $region47: #{gin_predictor_forward.1} parent=5 // pred_region
      %s3631 = ssub.s32 %s11, 2
      // Predicated region
      $region49: #{gin_predictor_forward.1} parent=47 // pred_check
        %p3632 = pneg %p160
      $region50: #{gin_predictor_forward.1} parent=47 // pred_check_branch
        %3634 = sbr.rel (%p3632) target = $region52
      $region51: #{gin_predictor_forward.1} parent=47 // pred_region
        %p3635 = scmp.lt.s32.totalorder %s17, 2
        %s3636 = scalar_select %p3635, %s17, 2
        %s3637 = smul.addr %s3636, 4
        %s3638 = smul.addr %s3637, 8
        %s3639 = scalar_lea.vmem %s5, %s3638
      $region52: #{gin_predictor_forward.1} parent=47 // pred_fallthru
        _
    $region48: #{gin_predictor_forward.1} parent=5 // pred_fallthru
      _
  $region6: #{gin_predictor_forward.1} parent=0 // loop_footer
    %s15 = sadd.s32 1, %s11
  $region7: #{gin_predictor_forward.1} parent=0 // loop_footer_branch
    %10 = sbr.rel target = $region3
  $region8: #{gin_predictor_forward.1} parent=0 // loop_exit
    _

</llo_original>
